<compile_context>
chip_gen: v5e
topology: v5e:2x2
jax: 0.10.0
libtpu: 0.0.40
codegen_flags: <defaults>
</compile_context>

<pallas_src>
import numpy as np

import jax
import jax.numpy as jnp
from jax.experimental import pallas as pl
from jax.experimental.pallas import tpu as pltpu

# ----------------------------- configuration -------------------------------
IMG = 32          # input spatial size
PATCH = 16        # patch size (vit_base_patch16 analogue)
IN_CH = 3         # RGB input
EMBED = 32        # embed_dim (scaled down from 768)
DEPTH = 2         # transformer depth (scaled down from 12)
HEADS = 4         # num heads (scaled down from 12)
HEAD_DIM = EMBED // HEADS
MLP = EMBED * 4
HEAD_CH = 16      # decode-head channels (scaled down from 512/256)
NUM_CLASSES = 1
GH = IMG // PATCH
GW = IMG // PATCH
NPATCH = GH * GW  # number of patch tokens
NTOK = NPATCH + 1 # + cls token
PKC = PATCH * PATCH * IN_CH
LN_EPS = 1e-6
WDT = jnp.bfloat16      # matmul-operand dtype (accumulation stays f32)


# ------------------------------ fused kernel --------------------------------
def _make_setr_kernel(BB):
    """Builds the fused forward kernel for a batch-block of BB elements."""
    MTOK = BB * NTOK
    f32 = jnp.float32

    def mxu(a, b):
        # bf16 MXU matmul with f32 accumulation.
        return jnp.dot(a.astype(WDT), b.astype(WDT), preferred_element_type=f32)

    def mxu_bt(a, b):
        # a @ b.T (contract last dims) without materializing a transpose.
        return jax.lax.dot_general(a.astype(WDT), b.astype(WDT),
                                   (((1,), (1,)), ((), ())),
                                   preferred_element_type=f32)

    def ln(v, g, b):
        m = jnp.mean(v, axis=-1, keepdims=True)
        c = v - m
        var = jnp.mean(c * c, axis=-1, keepdims=True)
        return c * jax.lax.rsqrt(var + LN_EPS) * g + b

    def kernel(patches_ref, scat_ref, tok_ref, patch_w_ref,
               qkv_w_ref, proj_w_ref, fc1_w_ref, fc2_w_ref,
               vecs_ref, norms_ref, wpack_ref, bpack_ref,
               u0_ref, u1_ref, u2_ref, u3_ref, out_ref):
        # --- patch embed, batch folded into M ---
        pe = mxu(patches_ref[...], patch_w_ref[...])               # (BB*NPATCH, C)
        # scatter patch rows around the cls slots + add (cls/pos/patch-bias) term
        x = jnp.dot(scat_ref[...], pe, preferred_element_type=f32) + tok_ref[...]
        # x: (BB*NTOK, C)

        # --- block-diagonal additive attention mask (no cross-batch attention) ---
        ri = jax.lax.broadcasted_iota(jnp.int32, (MTOK, MTOK), 0)
        ci = jax.lax.broadcasted_iota(jnp.int32, (MTOK, MTOK), 1)
        same = jnp.zeros((MTOK, MTOK), jnp.bool_)
        for b in range(BB):                                        # static, BB small
            lo_, hi_ = b * NTOK, (b + 1) * NTOK
            same = same | (((ri >= lo_) & (ri < hi_)) & ((ci >= lo_) & (ci < hi_)))
        neg_mask = jnp.where(same, 0.0, -1e30).astype(f32)

        # --- transformer encoder (static unroll; fine at DEPTH=2) ---
        for l in range(DEPTH):
            vl = vecs_ref[l]                                       # (8, 128) f32
            ln1_g, ln1_b = vl[0:1, :EMBED], vl[1:2, :EMBED]
            ln2_g, ln2_b = vl[2:3, :EMBED], vl[3:4, :EMBED]
            proj_b, fc2_b = vl[4:5, :EMBED], vl[5:6, :EMBED]
            qkv_b, fc1_b = vl[6:7, :3 * EMBED], vl[7:8, :MLP]

            h = ln(x, ln1_g, ln1_b)
            qkv = mxu(h, qkv_w_ref[l]) + qkv_b                     # (M, 3C), q pre-scaled
            heads = []
            for hd in range(HEADS):                                # static unroll
                lo = hd * HEAD_DIM
                q = qkv[:, lo:lo + HEAD_DIM]
                k = qkv[:, EMBED + lo:EMBED + lo + HEAD_DIM]
                v = qkv[:, 2 * EMBED + lo:2 * EMBED + lo + HEAD_DIM]
                s = mxu_bt(q, k) + neg_mask                        # (M, M)
                s = s - jnp.max(s, axis=-1, keepdims=True)
                p = jnp.exp(s)
                p = p * pl.reciprocal(jnp.sum(p, axis=-1, keepdims=True), approx=True)
                heads.append(mxu(p, v))                            # (M, Dh)
            o = jnp.concatenate(heads, axis=-1)                    # (M, C)
            x = x + mxu(o, proj_w_ref[l]) + proj_b                 # single output proj

            h = ln(x, ln2_g, ln2_b)
            h = jax.nn.gelu(mxu(h, fc1_w_ref[l]) + fc1_b)          # (M, MLP)
            x = x + mxu(h, fc2_w_ref[l]) + fc2_b

        # --- backbone final LN + decode-head LN (row-wise, cls rows are wasted) ---
        nm = norms_ref[...]
        x = ln(x, nm[0:1, :], nm[1:2, :])
        hx = ln(x, nm[2:3, :], nm[3:4, :])                         # (BB*NTOK, C)

        # --- PUP decode head, channel-first, per batch element (tiny) ---
        for b in range(BB):                                        # static unroll
            t = hx[b * NTOK + 1: b * NTOK + 1 + NPATCH, :]         # (NPATCH, C)
            y = jnp.maximum(mxu_bt(wpack_ref[0], t) + bpack_ref[:, 0:1], 0.0)   # (16, 4)
            y = mxu(y, u0_ref[...])                                              # (16, 16)
            y = jnp.maximum(mxu(wpack_ref[1, :, :HEAD_CH], y) + bpack_ref[:, 1:2], 0.0)
            y = mxu(y, u1_ref[...])                                              # (16, 64)
            y = jnp.maximum(mxu(wpack_ref[2, :, :HEAD_CH], y) + bpack_ref[:, 2:3], 0.0)
            y = mxu(y, u2_ref[...])                                              # (16, 256)
            y = mxu(wpack_ref[3, 0:1, :HEAD_CH], y) + bpack_ref[0:1, 3:4]        # (1, 256)
            y = mxu(y, u3_ref[...])                                              # (1, 1024)
            out_ref[b] = y                                          # lane-dense store

    return kernel


# ------------------------------ forward wrapper ------------------------------
def setr_forward(prep, x_nchw):
    """Full SETR forward (== encoder.forward_dummy): NCHW in -> NCHW logits."""
    B = x_nchw.shape[0]
    BB = min(B, 8)
    assert B % BB == 0, "batch must be divisible by the batch block"

    # patch extraction is pure layout glue (stays in XLA)
    x = jnp.transpose(x_nchw, (0, 2, 3, 1))                        # NHWC
    x = x.reshape(B, GH, PATCH, GW, PATCH, IN_CH)
    patches = jnp.transpose(x, (0, 1, 3, 2, 4, 5)).reshape(B * NPATCH, PKC)

    # constant scatter matrix: places patch rows after each batch's cls slot.
    scat_np = np.zeros((BB * NTOK, BB * NPATCH), np.float32)
    for b in range(BB):
        scat_np[b * NTOK + 1:(b + 1) * NTOK, b * NPATCH:(b + 1) * NPATCH] = np.eye(NPATCH)
    scat = jnp.asarray(scat_np)
    tok_tile = jnp.tile(prep["tok_add"], (BB, 1))                  # (BB*NTOK, C)

    args = (patches, scat, tok_tile, prep["patch_w"],
            prep["qkv_w"], prep["proj_w"], prep["fc1_w"], prep["fc2_w"],
            prep["vecs"], prep["norms"], prep["wpack"], prep["bpack"],
            prep["u0t"], prep["u1t"], prep["u2t"], prep["u3t"])

    in_specs = [pl.BlockSpec((BB * NPATCH, PKC), lambda i: (i, 0))]
    for a in args[1:]:
        nd = a.ndim
        in_specs.append(pl.BlockSpec(a.shape, lambda i, _nd=nd: (0,) * _nd))

    out = pl.pallas_call(
        _make_setr_kernel(BB),
        out_shape=jax.ShapeDtypeStruct((B, NUM_CLASSES, IMG * IMG), jnp.float32),
        grid=(B // BB,),
        in_specs=in_specs,
        out_specs=pl.BlockSpec((BB, NUM_CLASSES, IMG * IMG), lambda i: (i, 0, 0)),
        compiler_params=pltpu.CompilerParams(
            dimension_semantics=("parallel",)),
    )(*args)
    return out.reshape(B, NUM_CLASSES, IMG, IMG)                   # NCHW logits


# ------------------------------ parameter init ------------------------------
def init_params(key):
    keys = iter(jax.random.split(key, 64))

    def nrm(shape, s=0.02):
        return jax.random.normal(next(keys), shape, jnp.float32) * s

    p = {
        "patch_w": nrm((PKC, EMBED)),
        "patch_b": jnp.zeros((EMBED,), jnp.float32),
        "cls": nrm((1, 1, EMBED)),
        "pos": nrm((1, NTOK, EMBED)),
        "norm_g": jnp.ones((EMBED,), jnp.float32),
        "norm_b": jnp.zeros((EMBED,), jnp.float32),
        "head_ln_g": jnp.ones((EMBED,), jnp.float32),
        "head_ln_b": jnp.zeros((EMBED,), jnp.float32),
        "blocks": [],
    }
    for _ in range(DEPTH):
        p["blocks"].append(dict(
            ln1_g=jnp.ones((EMBED,), jnp.float32), ln1_b=jnp.zeros((EMBED,), jnp.float32),
            qkv_w=nrm((EMBED, 3 * EMBED)), qkv_b=jnp.zeros((3 * EMBED,), jnp.float32),
            proj_w=nrm((EMBED, EMBED)), proj_b=jnp.zeros((EMBED,), jnp.float32),
            ln2_g=jnp.ones((EMBED,), jnp.float32), ln2_b=jnp.zeros((EMBED,), jnp.float32),
            fc1_w=nrm((EMBED, MLP)), fc1_b=jnp.zeros((MLP,), jnp.float32),
            fc2_w=nrm((MLP, EMBED)), fc2_b=jnp.zeros((EMBED,), jnp.float32),
        ))
    dims = [EMBED, HEAD_CH, HEAD_CH, HEAD_CH, NUM_CLASSES]
    for i in range(4):
        p[f"conv{i}_w"] = nrm((dims[i], dims[i + 1]))
        p[f"conv{i}_b"] = jnp.zeros((dims[i + 1],), jnp.float32)
        if i < 3:
            p[f"bn{i}_g"] = jnp.ones((dims[i + 1],), jnp.float32)
            p[f"bn{i}_b"] = jnp.zeros((dims[i + 1],), jnp.float32)
    return p


def _bilinear_matrix_np(n_out, n_in):
    """Row-interp matrix matching F.interpolate(bilinear, align_corners=False)."""
    i = np.arange(n_out, dtype=np.float64)
    src = np.clip((i + 0.5) * (n_in / n_out) - 0.5, 0.0, n_in - 1)
    lo = np.floor(src).astype(np.int64)
    hi = np.minimum(lo + 1, n_in - 1)
    w_hi = src - lo
    m = np.zeros((n_out, n_in), np.float64)
    m[np.arange(n_out), lo] += 1.0 - w_hi
    m[np.arange(n_out), hi] += w_hi
    return m


def prepare_params(p):
    """One-time parameter preprocessing (outside jit): fold attention scale into
    qkv, fold eval-mode BN into the 1x1 convs, pack all small per-layer vectors
    into one slab, pack decode-head weights/biases, build kron bilinear-upsample
    matrices, and store matmul weights as bf16."""
    f32, bf16 = jnp.float32, jnp.bfloat16
    pos = p["pos"].reshape(NTOK, EMBED)
    cls = p["cls"].reshape(1, EMBED)
    tok_add = jnp.concatenate(
        [cls + pos[:1], p["patch_b"][None, :] + pos[1:]], axis=0)   # (NTOK, C)

    def stack(name):
        return jnp.stack([blk[name] for blk in p["blocks"]], axis=0)

    scale = 1.0 / float(HEAD_DIM) ** 0.5
    qkv_w = stack("qkv_w")
    qkv_b = stack("qkv_b")
    qkv_w = qkv_w.at[:, :, :EMBED].multiply(scale)     # fold 1/sqrt(Dh) into q
    qkv_b = qkv_b.at[:, :EMBED].multiply(scale)

    def pad128(v):
        return jnp.pad(v, (0, 128 - v.shape[0]))

    vec_layers = []
    for l in range(DEPTH):
        blk = p["blocks"][l]
        vec_layers.append(jnp.stack([
            pad128(blk["ln1_g"]), pad128(blk["ln1_b"]),
            pad128(blk["ln2_g"]), pad128(blk["ln2_b"]),
            pad128(blk["proj_b"]), pad128(blk["fc2_b"]),
            pad128(qkv_b[l]), pad128(blk["fc1_b"]),
        ], axis=0))
    vecs = jnp.stack(vec_layers, axis=0).astype(f32)                # (DEPTH, 8, 128)

    norms = jnp.stack([p["norm_g"], p["norm_b"],
                       p["head_ln_g"], p["head_ln_b"]], axis=0).astype(f32)  # (4, C)

    prep = dict(
        tok_add=tok_add,
        patch_w=p["patch_w"].astype(bf16),
        qkv_w=qkv_w.astype(bf16),
        proj_w=stack("proj_w").astype(bf16),
        fc1_w=stack("fc1_w").astype(bf16),
        fc2_w=stack("fc2_w").astype(bf16),
        vecs=vecs, norms=norms,
    )

    # decode-head 1x1 convs with eval-mode BN (running_mean=0, running_var=1,
    # eps=1e-5) folded in; packed as (4, C_out_max, C_in_max) for channel-first.
    dims = [EMBED, HEAD_CH, HEAD_CH, HEAD_CH, NUM_CLASSES]
    wpack = jnp.zeros((4, HEAD_CH, EMBED), f32)
    bpack = jnp.zeros((HEAD_CH, 4), f32)
    for i in range(4):
        w = p[f"conv{i}_w"]
        b = p[f"conv{i}_b"]
        if i < 3:
            s = p[f"bn{i}_g"] * jax.lax.rsqrt(jnp.float32(1.0 + 1e-5))
            w = w * s[None, :]
            b = b * s + p[f"bn{i}_b"]
        wpack = wpack.at[i, :dims[i + 1], :dims[i]].set(jnp.transpose(w))
        bpack = bpack.at[:dims[i + 1], i].set(b)
    prep["wpack"] = wpack.astype(bf16)
    prep["bpack"] = bpack

    # 2x bilinear upsample (align_corners=False) as one kron(Uh, Uw).T matmul per
    # stage; exact in bf16 (weights are small dyadic fractions). TODO(synk):
    # switch to separable row/col interpolation at real output resolutions.
    side = GH  # square feature maps: GH == GW
    for i in range(4):
        u = _bilinear_matrix_np(2 * side, side)
        prep[f"u{i}t"] = jnp.asarray(np.kron(u, u).T, dtype=np.float32).astype(bf16)
        side *= 2
    return prep


# ---------------------------------- main ------------------------------------
if __name__ == "__main__":
    key = jax.random.PRNGKey(0)
    pkey, xkey = jax.random.split(key)
    params = init_params(pkey)
    prep = prepare_params(params)
    x = jax.random.normal(xkey, (2, IN_CH, IMG, IMG), jnp.float32)

    fwd = jax.jit(setr_forward)
    pred_mask = fwd(prep, x)
    jax.block_until_ready(pred_mask)

    assert pred_mask.shape == (2, NUM_CLASSES, IMG, IMG), pred_mask.shape
    assert pred_mask.dtype == jnp.float32
    assert bool(jnp.all(jnp.isfinite(pred_mask)))
    print("KERNEL_OK")
</pallas_src>

<mosaic_0001>
module attributes {stable_mosaic.version = 11 : i64} {
  func.func @kernel(%arg0: i32, %arg1: memref<8x768xf32, #tpu.memory_space<vmem>>, %arg2: memref<10x8xf32, #tpu.memory_space<vmem>>, %arg3: memref<10x32xf32, #tpu.memory_space<vmem>>, %arg4: memref<768x32xbf16, #tpu.memory_space<vmem>>, %arg5: memref<2x32x96xbf16, #tpu.memory_space<vmem>>, %arg6: memref<2x32x32xbf16, #tpu.memory_space<vmem>>, %arg7: memref<2x32x128xbf16, #tpu.memory_space<vmem>>, %arg8: memref<2x128x32xbf16, #tpu.memory_space<vmem>>, %arg9: memref<2x8x128xf32, #tpu.memory_space<vmem>>, %arg10: memref<4x32xf32, #tpu.memory_space<vmem>>, %arg11: memref<4x16x32xbf16, #tpu.memory_space<vmem>>, %arg12: memref<16x4xf32, #tpu.memory_space<vmem>>, %arg13: memref<4x16xbf16, #tpu.memory_space<vmem>>, %arg14: memref<16x64xbf16, #tpu.memory_space<vmem>>, %arg15: memref<64x256xbf16, #tpu.memory_space<vmem>>, %arg16: memref<256x1024xbf16, #tpu.memory_space<vmem>>, %arg17: memref<2x1x1024xf32, #tpu.memory_space<vmem>>) attributes {dimension_semantics = [#tpu.dimension_semantics<parallel>], iteration_bounds = array<i64: 1>, scalar_prefetch = 0 : i64, scratch_operands = 0 : i64, tpu.core_type = #tpu.core_type<tc>, window_params = [{transform_indices = @transform_0, window_bounds = array<i64: 8, 768>}, {pipeline_mode = #tpu.pipeline_mode<synchronous>, transform_indices = @transform_1, window_bounds = array<i64: 10, 8>}, {pipeline_mode = #tpu.pipeline_mode<synchronous>, transform_indices = @transform_2, window_bounds = array<i64: 10, 32>}, {pipeline_mode = #tpu.pipeline_mode<synchronous>, transform_indices = @transform_3, window_bounds = array<i64: 768, 32>}, {pipeline_mode = #tpu.pipeline_mode<synchronous>, transform_indices = @transform_4, window_bounds = array<i64: 2, 32, 96>}, {pipeline_mode = #tpu.pipeline_mode<synchronous>, transform_indices = @transform_5, window_bounds = array<i64: 2, 32, 32>}, {pipeline_mode = #tpu.pipeline_mode<synchronous>, transform_indices = @transform_6, window_bounds = array<i64: 2, 32, 128>}, {pipeline_mode = #tpu.pipeline_mode<synchronous>, transform_indices = @transform_7, window_bounds = array<i64: 2, 128, 32>}, {pipeline_mode = #tpu.pipeline_mode<synchronous>, transform_indices = @transform_8, window_bounds = array<i64: 2, 8, 128>}, {pipeline_mode = #tpu.pipeline_mode<synchronous>, transform_indices = @transform_9, window_bounds = array<i64: 4, 32>}, {pipeline_mode = #tpu.pipeline_mode<synchronous>, transform_indices = @transform_10, window_bounds = array<i64: 4, 16, 32>}, {pipeline_mode = #tpu.pipeline_mode<synchronous>, transform_indices = @transform_11, window_bounds = array<i64: 16, 4>}, {pipeline_mode = #tpu.pipeline_mode<synchronous>, transform_indices = @transform_12, window_bounds = array<i64: 4, 16>}, {pipeline_mode = #tpu.pipeline_mode<synchronous>, transform_indices = @transform_13, window_bounds = array<i64: 16, 64>}, {pipeline_mode = #tpu.pipeline_mode<synchronous>, transform_indices = @transform_14, window_bounds = array<i64: 64, 256>}, {pipeline_mode = #tpu.pipeline_mode<synchronous>, transform_indices = @transform_15, window_bounds = array<i64: 256, 1024>}, {transform_indices = @transform_16, window_bounds = array<i64: 2, 1, 1024>}]} {
    %c0 = arith.constant 0 : index
    %c0_0 = arith.constant 0 : index
    %0 = vector.load %arg1[%c0, %c0_0] : memref<8x768xf32, #tpu.memory_space<vmem>>, vector<8x768xf32>
    %c0_1 = arith.constant 0 : index
    %c0_2 = arith.constant 0 : index
    %1 = vector.load %arg4[%c0_1, %c0_2] : memref<768x32xbf16, #tpu.memory_space<vmem>>, vector<768x32xbf16>
    %2 = arith.truncf %0 : vector<8x768xf32> to vector<8x768xbf16>
    %cst = arith.constant dense<0.000000e+00> : vector<8x32xf32>
    %3 = tpu.matmul %2, %1, %cst {dimension_numbers = #tpu.dot_dimension_numbers<[1], [0], [0], [1], [0, 0, 1, 1], [], []>} : vector<8x768xbf16>, vector<768x32xbf16>, vector<8x32xf32> -> vector<8x32xf32>
    %c0_3 = arith.constant 0 : index
    %c0_4 = arith.constant 0 : index
    %4 = vector.load %arg2[%c0_3, %c0_4] : memref<10x8xf32, #tpu.memory_space<vmem>>, vector<10x8xf32>
    %cst_5 = arith.constant dense<0.000000e+00> : vector<10x32xf32>
    %5 = tpu.matmul %4, %3, %cst_5 {dimension_numbers = #tpu.dot_dimension_numbers<[1], [0], [0], [1], [0, 0, 1, 1], [], []>} : vector<10x8xf32>, vector<8x32xf32>, vector<10x32xf32> -> vector<10x32xf32>
    %c0_6 = arith.constant 0 : index
    %c0_7 = arith.constant 0 : index
    %6 = vector.load %arg3[%c0_6, %c0_7] : memref<10x32xf32, #tpu.memory_space<vmem>>, vector<10x32xf32>
    %7 = arith.addf %5, %6 : vector<10x32xf32>
    %8 = tpu.iota {dimensions = array<i32: 0>} : vector<10x10xi32>
    %9 = tpu.iota {dimensions = array<i32: 1>} : vector<10x10xi32>
    %false = arith.constant false
    %10 = vector.broadcast %false : i1 to vector<10x10xi1>
    %c0_i32 = arith.constant 0 : i32
    %11 = vector.broadcast %c0_i32 : i32 to vector<10x10xi32>
    %12 = arith.cmpi sge, %8, %11 : vector<10x10xi32>
    %c5_i32 = arith.constant 5 : i32
    %13 = vector.broadcast %c5_i32 : i32 to vector<10x10xi32>
    %14 = arith.cmpi slt, %8, %13 : vector<10x10xi32>
    %15 = arith.andi %12, %14 : vector<10x10xi1>
    %c0_i32_8 = arith.constant 0 : i32
    %16 = vector.broadcast %c0_i32_8 : i32 to vector<10x10xi32>
    %17 = arith.cmpi sge, %9, %16 : vector<10x10xi32>
    %c5_i32_9 = arith.constant 5 : i32
    %18 = vector.broadcast %c5_i32_9 : i32 to vector<10x10xi32>
    %19 = arith.cmpi slt, %9, %18 : vector<10x10xi32>
    %20 = arith.andi %17, %19 : vector<10x10xi1>
    %21 = arith.andi %15, %20 : vector<10x10xi1>
    %22 = arith.ori %10, %21 : vector<10x10xi1>
    %c5_i32_10 = arith.constant 5 : i32
    %23 = vector.broadcast %c5_i32_10 : i32 to vector<10x10xi32>
    %24 = arith.cmpi sge, %8, %23 : vector<10x10xi32>
    %c10_i32 = arith.constant 10 : i32
    %25 = vector.broadcast %c10_i32 : i32 to vector<10x10xi32>
    %26 = arith.cmpi slt, %8, %25 : vector<10x10xi32>
    %27 = arith.andi %24, %26 : vector<10x10xi1>
    %c5_i32_11 = arith.constant 5 : i32
    %28 = vector.broadcast %c5_i32_11 : i32 to vector<10x10xi32>
    %29 = arith.cmpi sge, %9, %28 : vector<10x10xi32>
    %c10_i32_12 = arith.constant 10 : i32
    %30 = vector.broadcast %c10_i32_12 : i32 to vector<10x10xi32>
    %31 = arith.cmpi slt, %9, %30 : vector<10x10xi32>
    %32 = arith.andi %29, %31 : vector<10x10xi1>
    %33 = arith.andi %27, %32 : vector<10x10xi1>
    %34 = arith.ori %22, %33 : vector<10x10xi1>
    %cst_13 = arith.constant 0.000000e+00 : f32
    %cst_14 = arith.constant -1.000000e+30 : f32
    %35 = vector.broadcast %cst_13 : f32 to vector<10x10xf32>
    %36 = vector.broadcast %cst_14 : f32 to vector<10x10xf32>
    %37 = arith.select %34, %35, %36 : vector<10x10xi1>, vector<10x10xf32>
    %c0_15 = arith.constant 0 : index
    %c0_16 = arith.constant 0 : index
    %c0_17 = arith.constant 0 : index
    %38 = vector.load %arg9[%c0_15, %c0_16, %c0_17] : memref<2x8x128xf32, #tpu.memory_space<vmem>>, vector<1x8x128xf32>
    %39 = vector.shape_cast %38 : vector<1x8x128xf32> to vector<8x128xf32>
    %40 = vector.extract_strided_slice %39 {offsets = [0, 0], sizes = [1, 32], strides = [1, 1]} : vector<8x128xf32> to vector<1x32xf32>
    %41 = vector.extract_strided_slice %39 {offsets = [1, 0], sizes = [1, 32], strides = [1, 1]} : vector<8x128xf32> to vector<1x32xf32>
    %42 = vector.extract_strided_slice %39 {offsets = [2, 0], sizes = [1, 32], strides = [1, 1]} : vector<8x128xf32> to vector<1x32xf32>
    %43 = vector.extract_strided_slice %39 {offsets = [3, 0], sizes = [1, 32], strides = [1, 1]} : vector<8x128xf32> to vector<1x32xf32>
    %44 = vector.extract_strided_slice %39 {offsets = [4, 0], sizes = [1, 32], strides = [1, 1]} : vector<8x128xf32> to vector<1x32xf32>
    %45 = vector.extract_strided_slice %39 {offsets = [5, 0], sizes = [1, 32], strides = [1, 1]} : vector<8x128xf32> to vector<1x32xf32>
    %46 = vector.extract_strided_slice %39 {offsets = [6, 0], sizes = [1, 96], strides = [1, 1]} : vector<8x128xf32> to vector<1x96xf32>
    %47 = vector.extract_strided_slice %39 {offsets = [7, 0], sizes = [1, 128], strides = [1, 1]} : vector<8x128xf32> to vector<1x128xf32>
    %cst_18 = arith.constant dense<0.000000e+00> : vector<10xf32>
    %48 = vector.multi_reduction <add>, %7, %cst_18 [1] : vector<10x32xf32> to vector<10xf32>
    %49 = vector.shape_cast %48 : vector<10xf32> to vector<10x1xf32>
    %cst_19 = arith.constant 3.200000e+01 : f32
    %50 = vector.broadcast %cst_19 : f32 to vector<10x1xf32>
    %51 = arith.divf %49, %50 : vector<10x1xf32>
    %52 = vector.broadcast %51 : vector<10x1xf32> to vector<10x32xf32>
    %53 = arith.subf %7, %52 : vector<10x32xf32>
    %54 = arith.mulf %53, %53 : vector<10x32xf32>
    %cst_20 = arith.constant dense<0.000000e+00> : vector<10xf32>
    %55 = vector.multi_reduction <add>, %54, %cst_20 [1] : vector<10x32xf32> to vector<10xf32>
    %56 = vector.shape_cast %55 : vector<10xf32> to vector<10x1xf32>
    %cst_21 = arith.constant 3.200000e+01 : f32
    %57 = vector.broadcast %cst_21 : f32 to vector<10x1xf32>
    %58 = arith.divf %56, %57 : vector<10x1xf32>
    %cst_22 = arith.constant 9.99999997E-7 : f32
    %59 = vector.broadcast %cst_22 : f32 to vector<10x1xf32>
    %60 = arith.addf %58, %59 : vector<10x1xf32>
    %61 = math.rsqrt %60 : vector<10x1xf32>
    %62 = vector.broadcast %61 : vector<10x1xf32> to vector<10x32xf32>
    %63 = arith.mulf %53, %62 : vector<10x32xf32>
    %64 = vector.broadcast %40 : vector<1x32xf32> to vector<10x32xf32>
    %65 = arith.mulf %63, %64 : vector<10x32xf32>
    %66 = vector.broadcast %41 : vector<1x32xf32> to vector<10x32xf32>
    %67 = arith.addf %65, %66 : vector<10x32xf32>
    %c0_23 = arith.constant 0 : index
    %c0_24 = arith.constant 0 : index
    %c0_25 = arith.constant 0 : index
    %68 = vector.load %arg5[%c0_23, %c0_24, %c0_25] : memref<2x32x96xbf16, #tpu.memory_space<vmem>>, vector<1x32x96xbf16>
    %69 = vector.shape_cast %68 : vector<1x32x96xbf16> to vector<32x96xbf16>
    %70 = arith.truncf %67 : vector<10x32xf32> to vector<10x32xbf16>
    %cst_26 = arith.constant dense<0.000000e+00> : vector<10x96xf32>
    %71 = tpu.matmul %70, %69, %cst_26 {dimension_numbers = #tpu.dot_dimension_numbers<[1], [0], [0], [1], [0, 0, 1, 1], [], []>} : vector<10x32xbf16>, vector<32x96xbf16>, vector<10x96xf32> -> vector<10x96xf32>
    %72 = vector.broadcast %46 : vector<1x96xf32> to vector<10x96xf32>
    %73 = arith.addf %71, %72 : vector<10x96xf32>
    %74 = vector.extract_strided_slice %73 {offsets = [0, 0], sizes = [10, 8], strides = [1, 1]} : vector<10x96xf32> to vector<10x8xf32>
    %75 = vector.extract_strided_slice %73 {offsets = [0, 32], sizes = [10, 8], strides = [1, 1]} : vector<10x96xf32> to vector<10x8xf32>
    %76 = vector.extract_strided_slice %73 {offsets = [0, 64], sizes = [10, 8], strides = [1, 1]} : vector<10x96xf32> to vector<10x8xf32>
    %77 = arith.truncf %74 : vector<10x8xf32> to vector<10x8xbf16>
    %78 = arith.truncf %75 : vector<10x8xf32> to vector<10x8xbf16>
    %cst_27 = arith.constant dense<0.000000e+00> : vector<10x10xf32>
    %79 = tpu.matmul %77, %78, %cst_27 {dimension_numbers = #tpu.dot_dimension_numbers<[1], [1], [0], [0], [0, 0, 1, 0], [], []>} : vector<10x8xbf16>, vector<10x8xbf16>, vector<10x10xf32> -> vector<10x10xf32>
    %80 = arith.addf %79, %37 : vector<10x10xf32>
    %cst_28 = arith.constant dense<0xFF800000> : vector<10xf32>
    %81 = vector.multi_reduction <maximumf>, %80, %cst_28 [1] : vector<10x10xf32> to vector<10xf32>
    %82 = vector.shape_cast %81 : vector<10xf32> to vector<10x1xf32>
    %83 = vector.broadcast %82 : vector<10x1xf32> to vector<10x10xf32>
    %84 = arith.subf %80, %83 : vector<10x10xf32>
    %85 = math.exp %84 : vector<10x10xf32>
    %cst_29 = arith.constant dense<0.000000e+00> : vector<10xf32>
    %86 = vector.multi_reduction <add>, %85, %cst_29 [1] : vector<10x10xf32> to vector<10xf32>
    %87 = vector.shape_cast %86 : vector<10xf32> to vector<10x1xf32>
    %88 = tpu.reciprocal %87 {approx = true} : vector<10x1xf32> -> vector<10x1xf32>
    %89 = vector.broadcast %88 : vector<10x1xf32> to vector<10x10xf32>
    %90 = arith.mulf %85, %89 : vector<10x10xf32>
    %91 = arith.truncf %90 : vector<10x10xf32> to vector<10x10xbf16>
    %92 = arith.truncf %76 : vector<10x8xf32> to vector<10x8xbf16>
    %cst_30 = arith.constant dense<0.000000e+00> : vector<10x8xf32>
    %93 = tpu.matmul %91, %92, %cst_30 {dimension_numbers = #tpu.dot_dimension_numbers<[1], [0], [0], [1], [0, 0, 1, 1], [], []>} : vector<10x10xbf16>, vector<10x8xbf16>, vector<10x8xf32> -> vector<10x8xf32>
    %94 = vector.extract_strided_slice %73 {offsets = [0, 8], sizes = [10, 8], strides = [1, 1]} : vector<10x96xf32> to vector<10x8xf32>
    %95 = vector.extract_strided_slice %73 {offsets = [0, 40], sizes = [10, 8], strides = [1, 1]} : vector<10x96xf32> to vector<10x8xf32>
    %96 = vector.extract_strided_slice %73 {offsets = [0, 72], sizes = [10, 8], strides = [1, 1]} : vector<10x96xf32> to vector<10x8xf32>
    %97 = arith.truncf %94 : vector<10x8xf32> to vector<10x8xbf16>
    %98 = arith.truncf %95 : vector<10x8xf32> to vector<10x8xbf16>
    %cst_31 = arith.constant dense<0.000000e+00> : vector<10x10xf32>
    %99 = tpu.matmul %97, %98, %cst_31 {dimension_numbers = #tpu.dot_dimension_numbers<[1], [1], [0], [0], [0, 0, 1, 0], [], []>} : vector<10x8xbf16>, vector<10x8xbf16>, vector<10x10xf32> -> vector<10x10xf32>
    %100 = arith.addf %99, %37 : vector<10x10xf32>
    %cst_32 = arith.constant dense<0xFF800000> : vector<10xf32>
    %101 = vector.multi_reduction <maximumf>, %100, %cst_32 [1] : vector<10x10xf32> to vector<10xf32>
    %102 = vector.shape_cast %101 : vector<10xf32> to vector<10x1xf32>
    %103 = vector.broadcast %102 : vector<10x1xf32> to vector<10x10xf32>
    %104 = arith.subf %100, %103 : vector<10x10xf32>
    %105 = math.exp %104 : vector<10x10xf32>
    %cst_33 = arith.constant dense<0.000000e+00> : vector<10xf32>
    %106 = vector.multi_reduction <add>, %105, %cst_33 [1] : vector<10x10xf32> to vector<10xf32>
    %107 = vector.shape_cast %106 : vector<10xf32> to vector<10x1xf32>
    %108 = tpu.reciprocal %107 {approx = true} : vector<10x1xf32> -> vector<10x1xf32>
    %109 = vector.broadcast %108 : vector<10x1xf32> to vector<10x10xf32>
    %110 = arith.mulf %105, %109 : vector<10x10xf32>
    %111 = arith.truncf %110 : vector<10x10xf32> to vector<10x10xbf16>
    %112 = arith.truncf %96 : vector<10x8xf32> to vector<10x8xbf16>
    %cst_34 = arith.constant dense<0.000000e+00> : vector<10x8xf32>
    %113 = tpu.matmul %111, %112, %cst_34 {dimension_numbers = #tpu.dot_dimension_numbers<[1], [0], [0], [1], [0, 0, 1, 1], [], []>} : vector<10x10xbf16>, vector<10x8xbf16>, vector<10x8xf32> -> vector<10x8xf32>
    %114 = vector.extract_strided_slice %73 {offsets = [0, 16], sizes = [10, 8], strides = [1, 1]} : vector<10x96xf32> to vector<10x8xf32>
    %115 = vector.extract_strided_slice %73 {offsets = [0, 48], sizes = [10, 8], strides = [1, 1]} : vector<10x96xf32> to vector<10x8xf32>
    %116 = vector.extract_strided_slice %73 {offsets = [0, 80], sizes = [10, 8], strides = [1, 1]} : vector<10x96xf32> to vector<10x8xf32>
    %117 = arith.truncf %114 : vector<10x8xf32> to vector<10x8xbf16>
    %118 = arith.truncf %115 : vector<10x8xf32> to vector<10x8xbf16>
    %cst_35 = arith.constant dense<0.000000e+00> : vector<10x10xf32>
    %119 = tpu.matmul %117, %118, %cst_35 {dimension_numbers = #tpu.dot_dimension_numbers<[1], [1], [0], [0], [0, 0, 1, 0], [], []>} : vector<10x8xbf16>, vector<10x8xbf16>, vector<10x10xf32> -> vector<10x10xf32>
    %120 = arith.addf %119, %37 : vector<10x10xf32>
    %cst_36 = arith.constant dense<0xFF800000> : vector<10xf32>
    %121 = vector.multi_reduction <maximumf>, %120, %cst_36 [1] : vector<10x10xf32> to vector<10xf32>
    %122 = vector.shape_cast %121 : vector<10xf32> to vector<10x1xf32>
    %123 = vector.broadcast %122 : vector<10x1xf32> to vector<10x10xf32>
    %124 = arith.subf %120, %123 : vector<10x10xf32>
    %125 = math.exp %124 : vector<10x10xf32>
    %cst_37 = arith.constant dense<0.000000e+00> : vector<10xf32>
    %126 = vector.multi_reduction <add>, %125, %cst_37 [1] : vector<10x10xf32> to vector<10xf32>
    %127 = vector.shape_cast %126 : vector<10xf32> to vector<10x1xf32>
    %128 = tpu.reciprocal %127 {approx = true} : vector<10x1xf32> -> vector<10x1xf32>
    %129 = vector.broadcast %128 : vector<10x1xf32> to vector<10x10xf32>
    %130 = arith.mulf %125, %129 : vector<10x10xf32>
    %131 = arith.truncf %130 : vector<10x10xf32> to vector<10x10xbf16>
    %132 = arith.truncf %116 : vector<10x8xf32> to vector<10x8xbf16>
    %cst_38 = arith.constant dense<0.000000e+00> : vector<10x8xf32>
    %133 = tpu.matmul %131, %132, %cst_38 {dimension_numbers = #tpu.dot_dimension_numbers<[1], [0], [0], [1], [0, 0, 1, 1], [], []>} : vector<10x10xbf16>, vector<10x8xbf16>, vector<10x8xf32> -> vector<10x8xf32>
    %134 = vector.extract_strided_slice %73 {offsets = [0, 24], sizes = [10, 8], strides = [1, 1]} : vector<10x96xf32> to vector<10x8xf32>
    %135 = vector.extract_strided_slice %73 {offsets = [0, 56], sizes = [10, 8], strides = [1, 1]} : vector<10x96xf32> to vector<10x8xf32>
    %136 = vector.extract_strided_slice %73 {offsets = [0, 88], sizes = [10, 8], strides = [1, 1]} : vector<10x96xf32> to vector<10x8xf32>
    %137 = arith.truncf %134 : vector<10x8xf32> to vector<10x8xbf16>
    %138 = arith.truncf %135 : vector<10x8xf32> to vector<10x8xbf16>
    %cst_39 = arith.constant dense<0.000000e+00> : vector<10x10xf32>
    %139 = tpu.matmul %137, %138, %cst_39 {dimension_numbers = #tpu.dot_dimension_numbers<[1], [1], [0], [0], [0, 0, 1, 0], [], []>} : vector<10x8xbf16>, vector<10x8xbf16>, vector<10x10xf32> -> vector<10x10xf32>
    %140 = arith.addf %139, %37 : vector<10x10xf32>
    %cst_40 = arith.constant dense<0xFF800000> : vector<10xf32>
    %141 = vector.multi_reduction <maximumf>, %140, %cst_40 [1] : vector<10x10xf32> to vector<10xf32>
    %142 = vector.shape_cast %141 : vector<10xf32> to vector<10x1xf32>
    %143 = vector.broadcast %142 : vector<10x1xf32> to vector<10x10xf32>
    %144 = arith.subf %140, %143 : vector<10x10xf32>
    %145 = math.exp %144 : vector<10x10xf32>
    %cst_41 = arith.constant dense<0.000000e+00> : vector<10xf32>
    %146 = vector.multi_reduction <add>, %145, %cst_41 [1] : vector<10x10xf32> to vector<10xf32>
    %147 = vector.shape_cast %146 : vector<10xf32> to vector<10x1xf32>
    %148 = tpu.reciprocal %147 {approx = true} : vector<10x1xf32> -> vector<10x1xf32>
    %149 = vector.broadcast %148 : vector<10x1xf32> to vector<10x10xf32>
    %150 = arith.mulf %145, %149 : vector<10x10xf32>
    %151 = arith.truncf %150 : vector<10x10xf32> to vector<10x10xbf16>
    %152 = arith.truncf %136 : vector<10x8xf32> to vector<10x8xbf16>
    %cst_42 = arith.constant dense<0.000000e+00> : vector<10x8xf32>
    %153 = tpu.matmul %151, %152, %cst_42 {dimension_numbers = #tpu.dot_dimension_numbers<[1], [0], [0], [1], [0, 0, 1, 1], [], []>} : vector<10x10xbf16>, vector<10x8xbf16>, vector<10x8xf32> -> vector<10x8xf32>
    %154 = tpu.concatenate %93, %113, %133, %153 in 1 : vector<10x8xf32>, vector<10x8xf32>, vector<10x8xf32>, vector<10x8xf32> -> vector<10x32xf32>
    %c0_43 = arith.constant 0 : index
    %c0_44 = arith.constant 0 : index
    %c0_45 = arith.constant 0 : index
    %155 = vector.load %arg6[%c0_43, %c0_44, %c0_45] : memref<2x32x32xbf16, #tpu.memory_space<vmem>>, vector<1x32x32xbf16>
    %156 = vector.shape_cast %155 : vector<1x32x32xbf16> to vector<32x32xbf16>
    %157 = arith.truncf %154 : vector<10x32xf32> to vector<10x32xbf16>
    %cst_46 = arith.constant dense<0.000000e+00> : vector<10x32xf32>
    %158 = tpu.matmul %157, %156, %cst_46 {dimension_numbers = #tpu.dot_dimension_numbers<[1], [0], [0], [1], [0, 0, 1, 1], [], []>} : vector<10x32xbf16>, vector<32x32xbf16>, vector<10x32xf32> -> vector<10x32xf32>
    %159 = arith.addf %7, %158 : vector<10x32xf32>
    %160 = vector.broadcast %44 : vector<1x32xf32> to vector<10x32xf32>
    %161 = arith.addf %159, %160 : vector<10x32xf32>
    %cst_47 = arith.constant dense<0.000000e+00> : vector<10xf32>
    %162 = vector.multi_reduction <add>, %161, %cst_47 [1] : vector<10x32xf32> to vector<10xf32>
    %163 = vector.shape_cast %162 : vector<10xf32> to vector<10x1xf32>
    %cst_48 = arith.constant 3.200000e+01 : f32
    %164 = vector.broadcast %cst_48 : f32 to vector<10x1xf32>
    %165 = arith.divf %163, %164 : vector<10x1xf32>
    %166 = vector.broadcast %165 : vector<10x1xf32> to vector<10x32xf32>
    %167 = arith.subf %161, %166 : vector<10x32xf32>
    %168 = arith.mulf %167, %167 : vector<10x32xf32>
    %cst_49 = arith.constant dense<0.000000e+00> : vector<10xf32>
    %169 = vector.multi_reduction <add>, %168, %cst_49 [1] : vector<10x32xf32> to vector<10xf32>
    %170 = vector.shape_cast %169 : vector<10xf32> to vector<10x1xf32>
    %cst_50 = arith.constant 3.200000e+01 : f32
    %171 = vector.broadcast %cst_50 : f32 to vector<10x1xf32>
    %172 = arith.divf %170, %171 : vector<10x1xf32>
    %cst_51 = arith.constant 9.99999997E-7 : f32
    %173 = vector.broadcast %cst_51 : f32 to vector<10x1xf32>
    %174 = arith.addf %172, %173 : vector<10x1xf32>
    %175 = math.rsqrt %174 : vector<10x1xf32>
    %176 = vector.broadcast %175 : vector<10x1xf32> to vector<10x32xf32>
    %177 = arith.mulf %167, %176 : vector<10x32xf32>
    %178 = vector.broadcast %42 : vector<1x32xf32> to vector<10x32xf32>
    %179 = arith.mulf %177, %178 : vector<10x32xf32>
    %180 = vector.broadcast %43 : vector<1x32xf32> to vector<10x32xf32>
    %181 = arith.addf %179, %180 : vector<10x32xf32>
    %c0_52 = arith.constant 0 : index
    %c0_53 = arith.constant 0 : index
    %c0_54 = arith.constant 0 : index
    %182 = vector.load %arg7[%c0_52, %c0_53, %c0_54] : memref<2x32x128xbf16, #tpu.memory_space<vmem>>, vector<1x32x128xbf16>
    %183 = vector.shape_cast %182 : vector<1x32x128xbf16> to vector<32x128xbf16>
    %184 = arith.truncf %181 : vector<10x32xf32> to vector<10x32xbf16>
    %cst_55 = arith.constant dense<0.000000e+00> : vector<10x128xf32>
    %185 = tpu.matmul %184, %183, %cst_55 {dimension_numbers = #tpu.dot_dimension_numbers<[1], [0], [0], [1], [0, 0, 1, 1], [], []>} : vector<10x32xbf16>, vector<32x128xbf16>, vector<10x128xf32> -> vector<10x128xf32>
    %186 = vector.broadcast %47 : vector<1x128xf32> to vector<10x128xf32>
    %187 = arith.addf %185, %186 : vector<10x128xf32>
    %188 = arith.mulf %187, %187 : vector<10x128xf32>
    %189 = arith.mulf %187, %188 : vector<10x128xf32>
    %cst_56 = arith.constant 4.471500e-02 : f32
    %190 = vector.broadcast %cst_56 : f32 to vector<10x128xf32>
    %191 = arith.mulf %190, %189 : vector<10x128xf32>
    %192 = arith.addf %187, %191 : vector<10x128xf32>
    %cst_57 = arith.constant 0.797884583 : f32
    %193 = vector.broadcast %cst_57 : f32 to vector<10x128xf32>
    %194 = arith.mulf %193, %192 : vector<10x128xf32>
    %195 = math.tanh %194 : vector<10x128xf32>
    %cst_58 = arith.constant 1.000000e+00 : f32
    %196 = vector.broadcast %cst_58 : f32 to vector<10x128xf32>
    %197 = arith.addf %196, %195 : vector<10x128xf32>
    %cst_59 = arith.constant 5.000000e-01 : f32
    %198 = vector.broadcast %cst_59 : f32 to vector<10x128xf32>
    %199 = arith.mulf %198, %197 : vector<10x128xf32>
    %200 = arith.mulf %187, %199 : vector<10x128xf32>
    %c0_60 = arith.constant 0 : index
    %c0_61 = arith.constant 0 : index
    %c0_62 = arith.constant 0 : index
    %201 = vector.load %arg8[%c0_60, %c0_61, %c0_62] : memref<2x128x32xbf16, #tpu.memory_space<vmem>>, vector<1x128x32xbf16>
    %202 = vector.shape_cast %201 : vector<1x128x32xbf16> to vector<128x32xbf16>
    %203 = arith.truncf %200 : vector<10x128xf32> to vector<10x128xbf16>
    %cst_63 = arith.constant dense<0.000000e+00> : vector<10x32xf32>
    %204 = tpu.matmul %203, %202, %cst_63 {dimension_numbers = #tpu.dot_dimension_numbers<[1], [0], [0], [1], [0, 0, 1, 1], [], []>} : vector<10x128xbf16>, vector<128x32xbf16>, vector<10x32xf32> -> vector<10x32xf32>
    %205 = arith.addf %161, %204 : vector<10x32xf32>
    %206 = vector.broadcast %45 : vector<1x32xf32> to vector<10x32xf32>
    %207 = arith.addf %205, %206 : vector<10x32xf32>
    %c1 = arith.constant 1 : index
    %c0_64 = arith.constant 0 : index
    %c0_65 = arith.constant 0 : index
    %208 = vector.load %arg9[%c1, %c0_64, %c0_65] : memref<2x8x128xf32, #tpu.memory_space<vmem>>, vector<1x8x128xf32>
    %209 = vector.shape_cast %208 : vector<1x8x128xf32> to vector<8x128xf32>
    %210 = vector.extract_strided_slice %209 {offsets = [0, 0], sizes = [1, 32], strides = [1, 1]} : vector<8x128xf32> to vector<1x32xf32>
    %211 = vector.extract_strided_slice %209 {offsets = [1, 0], sizes = [1, 32], strides = [1, 1]} : vector<8x128xf32> to vector<1x32xf32>
    %212 = vector.extract_strided_slice %209 {offsets = [2, 0], sizes = [1, 32], strides = [1, 1]} : vector<8x128xf32> to vector<1x32xf32>
    %213 = vector.extract_strided_slice %209 {offsets = [3, 0], sizes = [1, 32], strides = [1, 1]} : vector<8x128xf32> to vector<1x32xf32>
    %214 = vector.extract_strided_slice %209 {offsets = [4, 0], sizes = [1, 32], strides = [1, 1]} : vector<8x128xf32> to vector<1x32xf32>
    %215 = vector.extract_strided_slice %209 {offsets = [5, 0], sizes = [1, 32], strides = [1, 1]} : vector<8x128xf32> to vector<1x32xf32>
    %216 = vector.extract_strided_slice %209 {offsets = [6, 0], sizes = [1, 96], strides = [1, 1]} : vector<8x128xf32> to vector<1x96xf32>
    %217 = vector.extract_strided_slice %209 {offsets = [7, 0], sizes = [1, 128], strides = [1, 1]} : vector<8x128xf32> to vector<1x128xf32>
    %cst_66 = arith.constant dense<0.000000e+00> : vector<10xf32>
    %218 = vector.multi_reduction <add>, %207, %cst_66 [1] : vector<10x32xf32> to vector<10xf32>
    %219 = vector.shape_cast %218 : vector<10xf32> to vector<10x1xf32>
    %cst_67 = arith.constant 3.200000e+01 : f32
    %220 = vector.broadcast %cst_67 : f32 to vector<10x1xf32>
    %221 = arith.divf %219, %220 : vector<10x1xf32>
    %222 = vector.broadcast %221 : vector<10x1xf32> to vector<10x32xf32>
    %223 = arith.subf %207, %222 : vector<10x32xf32>
    %224 = arith.mulf %223, %223 : vector<10x32xf32>
    %cst_68 = arith.constant dense<0.000000e+00> : vector<10xf32>
    %225 = vector.multi_reduction <add>, %224, %cst_68 [1] : vector<10x32xf32> to vector<10xf32>
    %226 = vector.shape_cast %225 : vector<10xf32> to vector<10x1xf32>
    %cst_69 = arith.constant 3.200000e+01 : f32
    %227 = vector.broadcast %cst_69 : f32 to vector<10x1xf32>
    %228 = arith.divf %226, %227 : vector<10x1xf32>
    %cst_70 = arith.constant 9.99999997E-7 : f32
    %229 = vector.broadcast %cst_70 : f32 to vector<10x1xf32>
    %230 = arith.addf %228, %229 : vector<10x1xf32>
    %231 = math.rsqrt %230 : vector<10x1xf32>
    %232 = vector.broadcast %231 : vector<10x1xf32> to vector<10x32xf32>
    %233 = arith.mulf %223, %232 : vector<10x32xf32>
    %234 = vector.broadcast %210 : vector<1x32xf32> to vector<10x32xf32>
    %235 = arith.mulf %233, %234 : vector<10x32xf32>
    %236 = vector.broadcast %211 : vector<1x32xf32> to vector<10x32xf32>
    %237 = arith.addf %235, %236 : vector<10x32xf32>
    %c1_71 = arith.constant 1 : index
    %c0_72 = arith.constant 0 : index
    %c0_73 = arith.constant 0 : index
    %238 = vector.load %arg5[%c1_71, %c0_72, %c0_73] : memref<2x32x96xbf16, #tpu.memory_space<vmem>>, vector<1x32x96xbf16>
    %239 = vector.shape_cast %238 : vector<1x32x96xbf16> to vector<32x96xbf16>
    %240 = arith.truncf %237 : vector<10x32xf32> to vector<10x32xbf16>
    %cst_74 = arith.constant dense<0.000000e+00> : vector<10x96xf32>
    %241 = tpu.matmul %240, %239, %cst_74 {dimension_numbers = #tpu.dot_dimension_numbers<[1], [0], [0], [1], [0, 0, 1, 1], [], []>} : vector<10x32xbf16>, vector<32x96xbf16>, vector<10x96xf32> -> vector<10x96xf32>
    %242 = vector.broadcast %216 : vector<1x96xf32> to vector<10x96xf32>
    %243 = arith.addf %241, %242 : vector<10x96xf32>
    %244 = vector.extract_strided_slice %243 {offsets = [0, 0], sizes = [10, 8], strides = [1, 1]} : vector<10x96xf32> to vector<10x8xf32>
    %245 = vector.extract_strided_slice %243 {offsets = [0, 32], sizes = [10, 8], strides = [1, 1]} : vector<10x96xf32> to vector<10x8xf32>
    %246 = vector.extract_strided_slice %243 {offsets = [0, 64], sizes = [10, 8], strides = [1, 1]} : vector<10x96xf32> to vector<10x8xf32>
    %247 = arith.truncf %244 : vector<10x8xf32> to vector<10x8xbf16>
    %248 = arith.truncf %245 : vector<10x8xf32> to vector<10x8xbf16>
    %cst_75 = arith.constant dense<0.000000e+00> : vector<10x10xf32>
    %249 = tpu.matmul %247, %248, %cst_75 {dimension_numbers = #tpu.dot_dimension_numbers<[1], [1], [0], [0], [0, 0, 1, 0], [], []>} : vector<10x8xbf16>, vector<10x8xbf16>, vector<10x10xf32> -> vector<10x10xf32>
    %250 = arith.addf %249, %37 : vector<10x10xf32>
    %cst_76 = arith.constant dense<0xFF800000> : vector<10xf32>
    %251 = vector.multi_reduction <maximumf>, %250, %cst_76 [1] : vector<10x10xf32> to vector<10xf32>
    %252 = vector.shape_cast %251 : vector<10xf32> to vector<10x1xf32>
    %253 = vector.broadcast %252 : vector<10x1xf32> to vector<10x10xf32>
    %254 = arith.subf %250, %253 : vector<10x10xf32>
    %255 = math.exp %254 : vector<10x10xf32>
    %cst_77 = arith.constant dense<0.000000e+00> : vector<10xf32>
    %256 = vector.multi_reduction <add>, %255, %cst_77 [1] : vector<10x10xf32> to vector<10xf32>
    %257 = vector.shape_cast %256 : vector<10xf32> to vector<10x1xf32>
    %258 = tpu.reciprocal %257 {approx = true} : vector<10x1xf32> -> vector<10x1xf32>
    %259 = vector.broadcast %258 : vector<10x1xf32> to vector<10x10xf32>
    %260 = arith.mulf %255, %259 : vector<10x10xf32>
    %261 = arith.truncf %260 : vector<10x10xf32> to vector<10x10xbf16>
    %262 = arith.truncf %246 : vector<10x8xf32> to vector<10x8xbf16>
    %cst_78 = arith.constant dense<0.000000e+00> : vector<10x8xf32>
    %263 = tpu.matmul %261, %262, %cst_78 {dimension_numbers = #tpu.dot_dimension_numbers<[1], [0], [0], [1], [0, 0, 1, 1], [], []>} : vector<10x10xbf16>, vector<10x8xbf16>, vector<10x8xf32> -> vector<10x8xf32>
    %264 = vector.extract_strided_slice %243 {offsets = [0, 8], sizes = [10, 8], strides = [1, 1]} : vector<10x96xf32> to vector<10x8xf32>
    %265 = vector.extract_strided_slice %243 {offsets = [0, 40], sizes = [10, 8], strides = [1, 1]} : vector<10x96xf32> to vector<10x8xf32>
    %266 = vector.extract_strided_slice %243 {offsets = [0, 72], sizes = [10, 8], strides = [1, 1]} : vector<10x96xf32> to vector<10x8xf32>
    %267 = arith.truncf %264 : vector<10x8xf32> to vector<10x8xbf16>
    %268 = arith.truncf %265 : vector<10x8xf32> to vector<10x8xbf16>
    %cst_79 = arith.constant dense<0.000000e+00> : vector<10x10xf32>
    %269 = tpu.matmul %267, %268, %cst_79 {dimension_numbers = #tpu.dot_dimension_numbers<[1], [1], [0], [0], [0, 0, 1, 0], [], []>} : vector<10x8xbf16>, vector<10x8xbf16>, vector<10x10xf32> -> vector<10x10xf32>
    %270 = arith.addf %269, %37 : vector<10x10xf32>
    %cst_80 = arith.constant dense<0xFF800000> : vector<10xf32>
    %271 = vector.multi_reduction <maximumf>, %270, %cst_80 [1] : vector<10x10xf32> to vector<10xf32>
    %272 = vector.shape_cast %271 : vector<10xf32> to vector<10x1xf32>
    %273 = vector.broadcast %272 : vector<10x1xf32> to vector<10x10xf32>
    %274 = arith.subf %270, %273 : vector<10x10xf32>
    %275 = math.exp %274 : vector<10x10xf32>
    %cst_81 = arith.constant dense<0.000000e+00> : vector<10xf32>
    %276 = vector.multi_reduction <add>, %275, %cst_81 [1] : vector<10x10xf32> to vector<10xf32>
    %277 = vector.shape_cast %276 : vector<10xf32> to vector<10x1xf32>
    %278 = tpu.reciprocal %277 {approx = true} : vector<10x1xf32> -> vector<10x1xf32>
    %279 = vector.broadcast %278 : vector<10x1xf32> to vector<10x10xf32>
    %280 = arith.mulf %275, %279 : vector<10x10xf32>
    %281 = arith.truncf %280 : vector<10x10xf32> to vector<10x10xbf16>
    %282 = arith.truncf %266 : vector<10x8xf32> to vector<10x8xbf16>
    %cst_82 = arith.constant dense<0.000000e+00> : vector<10x8xf32>
    %283 = tpu.matmul %281, %282, %cst_82 {dimension_numbers = #tpu.dot_dimension_numbers<[1], [0], [0], [1], [0, 0, 1, 1], [], []>} : vector<10x10xbf16>, vector<10x8xbf16>, vector<10x8xf32> -> vector<10x8xf32>
    %284 = vector.extract_strided_slice %243 {offsets = [0, 16], sizes = [10, 8], strides = [1, 1]} : vector<10x96xf32> to vector<10x8xf32>
    %285 = vector.extract_strided_slice %243 {offsets = [0, 48], sizes = [10, 8], strides = [1, 1]} : vector<10x96xf32> to vector<10x8xf32>
    %286 = vector.extract_strided_slice %243 {offsets = [0, 80], sizes = [10, 8], strides = [1, 1]} : vector<10x96xf32> to vector<10x8xf32>
    %287 = arith.truncf %284 : vector<10x8xf32> to vector<10x8xbf16>
    %288 = arith.truncf %285 : vector<10x8xf32> to vector<10x8xbf16>
    %cst_83 = arith.constant dense<0.000000e+00> : vector<10x10xf32>
    %289 = tpu.matmul %287, %288, %cst_83 {dimension_numbers = #tpu.dot_dimension_numbers<[1], [1], [0], [0], [0, 0, 1, 0], [], []>} : vector<10x8xbf16>, vector<10x8xbf16>, vector<10x10xf32> -> vector<10x10xf32>
    %290 = arith.addf %289, %37 : vector<10x10xf32>
    %cst_84 = arith.constant dense<0xFF800000> : vector<10xf32>
    %291 = vector.multi_reduction <maximumf>, %290, %cst_84 [1] : vector<10x10xf32> to vector<10xf32>
    %292 = vector.shape_cast %291 : vector<10xf32> to vector<10x1xf32>
    %293 = vector.broadcast %292 : vector<10x1xf32> to vector<10x10xf32>
    %294 = arith.subf %290, %293 : vector<10x10xf32>
    %295 = math.exp %294 : vector<10x10xf32>
    %cst_85 = arith.constant dense<0.000000e+00> : vector<10xf32>
    %296 = vector.multi_reduction <add>, %295, %cst_85 [1] : vector<10x10xf32> to vector<10xf32>
    %297 = vector.shape_cast %296 : vector<10xf32> to vector<10x1xf32>
    %298 = tpu.reciprocal %297 {approx = true} : vector<10x1xf32> -> vector<10x1xf32>
    %299 = vector.broadcast %298 : vector<10x1xf32> to vector<10x10xf32>
    %300 = arith.mulf %295, %299 : vector<10x10xf32>
    %301 = arith.truncf %300 : vector<10x10xf32> to vector<10x10xbf16>
    %302 = arith.truncf %286 : vector<10x8xf32> to vector<10x8xbf16>
    %cst_86 = arith.constant dense<0.000000e+00> : vector<10x8xf32>
    %303 = tpu.matmul %301, %302, %cst_86 {dimension_numbers = #tpu.dot_dimension_numbers<[1], [0], [0], [1], [0, 0, 1, 1], [], []>} : vector<10x10xbf16>, vector<10x8xbf16>, vector<10x8xf32> -> vector<10x8xf32>
    %304 = vector.extract_strided_slice %243 {offsets = [0, 24], sizes = [10, 8], strides = [1, 1]} : vector<10x96xf32> to vector<10x8xf32>
    %305 = vector.extract_strided_slice %243 {offsets = [0, 56], sizes = [10, 8], strides = [1, 1]} : vector<10x96xf32> to vector<10x8xf32>
    %306 = vector.extract_strided_slice %243 {offsets = [0, 88], sizes = [10, 8], strides = [1, 1]} : vector<10x96xf32> to vector<10x8xf32>
    %307 = arith.truncf %304 : vector<10x8xf32> to vector<10x8xbf16>
    %308 = arith.truncf %305 : vector<10x8xf32> to vector<10x8xbf16>
    %cst_87 = arith.constant dense<0.000000e+00> : vector<10x10xf32>
    %309 = tpu.matmul %307, %308, %cst_87 {dimension_numbers = #tpu.dot_dimension_numbers<[1], [1], [0], [0], [0, 0, 1, 0], [], []>} : vector<10x8xbf16>, vector<10x8xbf16>, vector<10x10xf32> -> vector<10x10xf32>
    %310 = arith.addf %309, %37 : vector<10x10xf32>
    %cst_88 = arith.constant dense<0xFF800000> : vector<10xf32>
    %311 = vector.multi_reduction <maximumf>, %310, %cst_88 [1] : vector<10x10xf32> to vector<10xf32>
    %312 = vector.shape_cast %311 : vector<10xf32> to vector<10x1xf32>
    %313 = vector.broadcast %312 : vector<10x1xf32> to vector<10x10xf32>
    %314 = arith.subf %310, %313 : vector<10x10xf32>
    %315 = math.exp %314 : vector<10x10xf32>
    %cst_89 = arith.constant dense<0.000000e+00> : vector<10xf32>
    %316 = vector.multi_reduction <add>, %315, %cst_89 [1] : vector<10x10xf32> to vector<10xf32>
    %317 = vector.shape_cast %316 : vector<10xf32> to vector<10x1xf32>
    %318 = tpu.reciprocal %317 {approx = true} : vector<10x1xf32> -> vector<10x1xf32>
    %319 = vector.broadcast %318 : vector<10x1xf32> to vector<10x10xf32>
    %320 = arith.mulf %315, %319 : vector<10x10xf32>
    %321 = arith.truncf %320 : vector<10x10xf32> to vector<10x10xbf16>
    %322 = arith.truncf %306 : vector<10x8xf32> to vector<10x8xbf16>
    %cst_90 = arith.constant dense<0.000000e+00> : vector<10x8xf32>
    %323 = tpu.matmul %321, %322, %cst_90 {dimension_numbers = #tpu.dot_dimension_numbers<[1], [0], [0], [1], [0, 0, 1, 1], [], []>} : vector<10x10xbf16>, vector<10x8xbf16>, vector<10x8xf32> -> vector<10x8xf32>
    %324 = tpu.concatenate %263, %283, %303, %323 in 1 : vector<10x8xf32>, vector<10x8xf32>, vector<10x8xf32>, vector<10x8xf32> -> vector<10x32xf32>
    %c1_91 = arith.constant 1 : index
    %c0_92 = arith.constant 0 : index
    %c0_93 = arith.constant 0 : index
    %325 = vector.load %arg6[%c1_91, %c0_92, %c0_93] : memref<2x32x32xbf16, #tpu.memory_space<vmem>>, vector<1x32x32xbf16>
    %326 = vector.shape_cast %325 : vector<1x32x32xbf16> to vector<32x32xbf16>
    %327 = arith.truncf %324 : vector<10x32xf32> to vector<10x32xbf16>
    %cst_94 = arith.constant dense<0.000000e+00> : vector<10x32xf32>
    %328 = tpu.matmul %327, %326, %cst_94 {dimension_numbers = #tpu.dot_dimension_numbers<[1], [0], [0], [1], [0, 0, 1, 1], [], []>} : vector<10x32xbf16>, vector<32x32xbf16>, vector<10x32xf32> -> vector<10x32xf32>
    %329 = arith.addf %207, %328 : vector<10x32xf32>
    %330 = vector.broadcast %214 : vector<1x32xf32> to vector<10x32xf32>
    %331 = arith.addf %329, %330 : vector<10x32xf32>
    %cst_95 = arith.constant dense<0.000000e+00> : vector<10xf32>
    %332 = vector.multi_reduction <add>, %331, %cst_95 [1] : vector<10x32xf32> to vector<10xf32>
    %333 = vector.shape_cast %332 : vector<10xf32> to vector<10x1xf32>
    %cst_96 = arith.constant 3.200000e+01 : f32
    %334 = vector.broadcast %cst_96 : f32 to vector<10x1xf32>
    %335 = arith.divf %333, %334 : vector<10x1xf32>
    %336 = vector.broadcast %335 : vector<10x1xf32> to vector<10x32xf32>
    %337 = arith.subf %331, %336 : vector<10x32xf32>
    %338 = arith.mulf %337, %337 : vector<10x32xf32>
    %cst_97 = arith.constant dense<0.000000e+00> : vector<10xf32>
    %339 = vector.multi_reduction <add>, %338, %cst_97 [1] : vector<10x32xf32> to vector<10xf32>
    %340 = vector.shape_cast %339 : vector<10xf32> to vector<10x1xf32>
    %cst_98 = arith.constant 3.200000e+01 : f32
    %341 = vector.broadcast %cst_98 : f32 to vector<10x1xf32>
    %342 = arith.divf %340, %341 : vector<10x1xf32>
    %cst_99 = arith.constant 9.99999997E-7 : f32
    %343 = vector.broadcast %cst_99 : f32 to vector<10x1xf32>
    %344 = arith.addf %342, %343 : vector<10x1xf32>
    %345 = math.rsqrt %344 : vector<10x1xf32>
    %346 = vector.broadcast %345 : vector<10x1xf32> to vector<10x32xf32>
    %347 = arith.mulf %337, %346 : vector<10x32xf32>
    %348 = vector.broadcast %212 : vector<1x32xf32> to vector<10x32xf32>
    %349 = arith.mulf %347, %348 : vector<10x32xf32>
    %350 = vector.broadcast %213 : vector<1x32xf32> to vector<10x32xf32>
    %351 = arith.addf %349, %350 : vector<10x32xf32>
    %c1_100 = arith.constant 1 : index
    %c0_101 = arith.constant 0 : index
    %c0_102 = arith.constant 0 : index
    %352 = vector.load %arg7[%c1_100, %c0_101, %c0_102] : memref<2x32x128xbf16, #tpu.memory_space<vmem>>, vector<1x32x128xbf16>
    %353 = vector.shape_cast %352 : vector<1x32x128xbf16> to vector<32x128xbf16>
    %354 = arith.truncf %351 : vector<10x32xf32> to vector<10x32xbf16>
    %cst_103 = arith.constant dense<0.000000e+00> : vector<10x128xf32>
    %355 = tpu.matmul %354, %353, %cst_103 {dimension_numbers = #tpu.dot_dimension_numbers<[1], [0], [0], [1], [0, 0, 1, 1], [], []>} : vector<10x32xbf16>, vector<32x128xbf16>, vector<10x128xf32> -> vector<10x128xf32>
    %356 = vector.broadcast %217 : vector<1x128xf32> to vector<10x128xf32>
    %357 = arith.addf %355, %356 : vector<10x128xf32>
    %358 = arith.mulf %357, %357 : vector<10x128xf32>
    %359 = arith.mulf %357, %358 : vector<10x128xf32>
    %cst_104 = arith.constant 4.471500e-02 : f32
    %360 = vector.broadcast %cst_104 : f32 to vector<10x128xf32>
    %361 = arith.mulf %360, %359 : vector<10x128xf32>
    %362 = arith.addf %357, %361 : vector<10x128xf32>
    %cst_105 = arith.constant 0.797884583 : f32
    %363 = vector.broadcast %cst_105 : f32 to vector<10x128xf32>
    %364 = arith.mulf %363, %362 : vector<10x128xf32>
    %365 = math.tanh %364 : vector<10x128xf32>
    %cst_106 = arith.constant 1.000000e+00 : f32
    %366 = vector.broadcast %cst_106 : f32 to vector<10x128xf32>
    %367 = arith.addf %366, %365 : vector<10x128xf32>
    %cst_107 = arith.constant 5.000000e-01 : f32
    %368 = vector.broadcast %cst_107 : f32 to vector<10x128xf32>
    %369 = arith.mulf %368, %367 : vector<10x128xf32>
    %370 = arith.mulf %357, %369 : vector<10x128xf32>
    %c1_108 = arith.constant 1 : index
    %c0_109 = arith.constant 0 : index
    %c0_110 = arith.constant 0 : index
    %371 = vector.load %arg8[%c1_108, %c0_109, %c0_110] : memref<2x128x32xbf16, #tpu.memory_space<vmem>>, vector<1x128x32xbf16>
    %372 = vector.shape_cast %371 : vector<1x128x32xbf16> to vector<128x32xbf16>
    %373 = arith.truncf %370 : vector<10x128xf32> to vector<10x128xbf16>
    %cst_111 = arith.constant dense<0.000000e+00> : vector<10x32xf32>
    %374 = tpu.matmul %373, %372, %cst_111 {dimension_numbers = #tpu.dot_dimension_numbers<[1], [0], [0], [1], [0, 0, 1, 1], [], []>} : vector<10x128xbf16>, vector<128x32xbf16>, vector<10x32xf32> -> vector<10x32xf32>
    %375 = arith.addf %331, %374 : vector<10x32xf32>
    %376 = vector.broadcast %215 : vector<1x32xf32> to vector<10x32xf32>
    %377 = arith.addf %375, %376 : vector<10x32xf32>
    %c0_112 = arith.constant 0 : index
    %c0_113 = arith.constant 0 : index
    %378 = vector.load %arg10[%c0_112, %c0_113] : memref<4x32xf32, #tpu.memory_space<vmem>>, vector<4x32xf32>
    %379 = vector.extract_strided_slice %378 {offsets = [0, 0], sizes = [1, 32], strides = [1, 1]} : vector<4x32xf32> to vector<1x32xf32>
    %380 = vector.extract_strided_slice %378 {offsets = [1, 0], sizes = [1, 32], strides = [1, 1]} : vector<4x32xf32> to vector<1x32xf32>
    %cst_114 = arith.constant dense<0.000000e+00> : vector<10xf32>
    %381 = vector.multi_reduction <add>, %377, %cst_114 [1] : vector<10x32xf32> to vector<10xf32>
    %382 = vector.shape_cast %381 : vector<10xf32> to vector<10x1xf32>
    %cst_115 = arith.constant 3.200000e+01 : f32
    %383 = vector.broadcast %cst_115 : f32 to vector<10x1xf32>
    %384 = arith.divf %382, %383 : vector<10x1xf32>
    %385 = vector.broadcast %384 : vector<10x1xf32> to vector<10x32xf32>
    %386 = arith.subf %377, %385 : vector<10x32xf32>
    %387 = arith.mulf %386, %386 : vector<10x32xf32>
    %cst_116 = arith.constant dense<0.000000e+00> : vector<10xf32>
    %388 = vector.multi_reduction <add>, %387, %cst_116 [1] : vector<10x32xf32> to vector<10xf32>
    %389 = vector.shape_cast %388 : vector<10xf32> to vector<10x1xf32>
    %cst_117 = arith.constant 3.200000e+01 : f32
    %390 = vector.broadcast %cst_117 : f32 to vector<10x1xf32>
    %391 = arith.divf %389, %390 : vector<10x1xf32>
    %cst_118 = arith.constant 9.99999997E-7 : f32
    %392 = vector.broadcast %cst_118 : f32 to vector<10x1xf32>
    %393 = arith.addf %391, %392 : vector<10x1xf32>
    %394 = math.rsqrt %393 : vector<10x1xf32>
    %395 = vector.broadcast %394 : vector<10x1xf32> to vector<10x32xf32>
    %396 = arith.mulf %386, %395 : vector<10x32xf32>
    %397 = vector.broadcast %379 : vector<1x32xf32> to vector<10x32xf32>
    %398 = arith.mulf %396, %397 : vector<10x32xf32>
    %399 = vector.broadcast %380 : vector<1x32xf32> to vector<10x32xf32>
    %400 = arith.addf %398, %399 : vector<10x32xf32>
    %401 = vector.extract_strided_slice %378 {offsets = [2, 0], sizes = [1, 32], strides = [1, 1]} : vector<4x32xf32> to vector<1x32xf32>
    %402 = vector.extract_strided_slice %378 {offsets = [3, 0], sizes = [1, 32], strides = [1, 1]} : vector<4x32xf32> to vector<1x32xf32>
    %cst_119 = arith.constant dense<0.000000e+00> : vector<10xf32>
    %403 = vector.multi_reduction <add>, %400, %cst_119 [1] : vector<10x32xf32> to vector<10xf32>
    %404 = vector.shape_cast %403 : vector<10xf32> to vector<10x1xf32>
    %cst_120 = arith.constant 3.200000e+01 : f32
    %405 = vector.broadcast %cst_120 : f32 to vector<10x1xf32>
    %406 = arith.divf %404, %405 : vector<10x1xf32>
    %407 = vector.broadcast %406 : vector<10x1xf32> to vector<10x32xf32>
    %408 = arith.subf %400, %407 : vector<10x32xf32>
    %409 = arith.mulf %408, %408 : vector<10x32xf32>
    %cst_121 = arith.constant dense<0.000000e+00> : vector<10xf32>
    %410 = vector.multi_reduction <add>, %409, %cst_121 [1] : vector<10x32xf32> to vector<10xf32>
    %411 = vector.shape_cast %410 : vector<10xf32> to vector<10x1xf32>
    %cst_122 = arith.constant 3.200000e+01 : f32
    %412 = vector.broadcast %cst_122 : f32 to vector<10x1xf32>
    %413 = arith.divf %411, %412 : vector<10x1xf32>
    %cst_123 = arith.constant 9.99999997E-7 : f32
    %414 = vector.broadcast %cst_123 : f32 to vector<10x1xf32>
    %415 = arith.addf %413, %414 : vector<10x1xf32>
    %416 = math.rsqrt %415 : vector<10x1xf32>
    %417 = vector.broadcast %416 : vector<10x1xf32> to vector<10x32xf32>
    %418 = arith.mulf %408, %417 : vector<10x32xf32>
    %419 = vector.broadcast %401 : vector<1x32xf32> to vector<10x32xf32>
    %420 = arith.mulf %418, %419 : vector<10x32xf32>
    %421 = vector.broadcast %402 : vector<1x32xf32> to vector<10x32xf32>
    %422 = arith.addf %420, %421 : vector<10x32xf32>
    %423 = vector.extract_strided_slice %422 {offsets = [1, 0], sizes = [4, 32], strides = [1, 1]} : vector<10x32xf32> to vector<4x32xf32>
    %c0_124 = arith.constant 0 : index
    %c0_125 = arith.constant 0 : index
    %c0_126 = arith.constant 0 : index
    %424 = vector.load %arg11[%c0_124, %c0_125, %c0_126] : memref<4x16x32xbf16, #tpu.memory_space<vmem>>, vector<1x16x32xbf16>
    %425 = vector.shape_cast %424 : vector<1x16x32xbf16> to vector<16x32xbf16>
    %426 = arith.truncf %423 : vector<4x32xf32> to vector<4x32xbf16>
    %cst_127 = arith.constant dense<0.000000e+00> : vector<16x4xf32>
    %427 = tpu.matmul %425, %426, %cst_127 {dimension_numbers = #tpu.dot_dimension_numbers<[1], [1], [0], [0], [0, 0, 1, 0], [], []>} : vector<16x32xbf16>, vector<4x32xbf16>, vector<16x4xf32> -> vector<16x4xf32>
    %c0_128 = arith.constant 0 : index
    %c0_129 = arith.constant 0 : index
    %428 = vector.load %arg12[%c0_128, %c0_129] : memref<16x4xf32, #tpu.memory_space<vmem>>, vector<16x1xf32>
    %429 = vector.broadcast %428 : vector<16x1xf32> to vector<16x4xf32>
    %430 = arith.addf %427, %429 : vector<16x4xf32>
    %cst_130 = arith.constant 0.000000e+00 : f32
    %431 = vector.broadcast %cst_130 : f32 to vector<16x4xf32>
    %432 = arith.maximumf %430, %431 : vector<16x4xf32>
    %c0_131 = arith.constant 0 : index
    %c0_132 = arith.constant 0 : index
    %433 = vector.load %arg13[%c0_131, %c0_132] : memref<4x16xbf16, #tpu.memory_space<vmem>>, vector<4x16xbf16>
    %434 = arith.truncf %432 : vector<16x4xf32> to vector<16x4xbf16>
    %cst_133 = arith.constant dense<0.000000e+00> : vector<16x16xf32>
    %435 = tpu.matmul %434, %433, %cst_133 {dimension_numbers = #tpu.dot_dimension_numbers<[1], [0], [0], [1], [0, 0, 1, 1], [], []>} : vector<16x4xbf16>, vector<4x16xbf16>, vector<16x16xf32> -> vector<16x16xf32>
    %c1_134 = arith.constant 1 : index
    %c0_135 = arith.constant 0 : index
    %c0_136 = arith.constant 0 : index
    %436 = vector.load %arg11[%c1_134, %c0_135, %c0_136] : memref<4x16x32xbf16, #tpu.memory_space<vmem>>, vector<1x16x16xbf16>
    %437 = vector.shape_cast %436 : vector<1x16x16xbf16> to vector<16x16xbf16>
    %438 = arith.truncf %435 : vector<16x16xf32> to vector<16x16xbf16>
    %cst_137 = arith.constant dense<0.000000e+00> : vector<16x16xf32>
    %439 = tpu.matmul %437, %438, %cst_137 {dimension_numbers = #tpu.dot_dimension_numbers<[1], [0], [0], [1], [0, 0, 1, 1], [], []>} : vector<16x16xbf16>, vector<16x16xbf16>, vector<16x16xf32> -> vector<16x16xf32>
    %c0_138 = arith.constant 0 : index
    %c1_139 = arith.constant 1 : index
    %440 = vector.load %arg12[%c0_138, %c1_139] : memref<16x4xf32, #tpu.memory_space<vmem>>, vector<16x1xf32>
    %441 = vector.broadcast %440 : vector<16x1xf32> to vector<16x16xf32>
    %442 = arith.addf %439, %441 : vector<16x16xf32>
    %cst_140 = arith.constant 0.000000e+00 : f32
    %443 = vector.broadcast %cst_140 : f32 to vector<16x16xf32>
    %444 = arith.maximumf %442, %443 : vector<16x16xf32>
    %c0_141 = arith.constant 0 : index
    %c0_142 = arith.constant 0 : index
    %445 = vector.load %arg14[%c0_141, %c0_142] : memref<16x64xbf16, #tpu.memory_space<vmem>>, vector<16x64xbf16>
    %446 = arith.truncf %444 : vector<16x16xf32> to vector<16x16xbf16>
    %cst_143 = arith.constant dense<0.000000e+00> : vector<16x64xf32>
    %447 = tpu.matmul %446, %445, %cst_143 {dimension_numbers = #tpu.dot_dimension_numbers<[1], [0], [0], [1], [0, 0, 1, 1], [], []>} : vector<16x16xbf16>, vector<16x64xbf16>, vector<16x64xf32> -> vector<16x64xf32>
    %c2 = arith.constant 2 : index
    %c0_144 = arith.constant 0 : index
    %c0_145 = arith.constant 0 : index
    %448 = vector.load %arg11[%c2, %c0_144, %c0_145] : memref<4x16x32xbf16, #tpu.memory_space<vmem>>, vector<1x16x16xbf16>
    %449 = vector.shape_cast %448 : vector<1x16x16xbf16> to vector<16x16xbf16>
    %450 = arith.truncf %447 : vector<16x64xf32> to vector<16x64xbf16>
    %cst_146 = arith.constant dense<0.000000e+00> : vector<16x64xf32>
    %451 = tpu.matmul %449, %450, %cst_146 {dimension_numbers = #tpu.dot_dimension_numbers<[1], [0], [0], [1], [0, 0, 1, 1], [], []>} : vector<16x16xbf16>, vector<16x64xbf16>, vector<16x64xf32> -> vector<16x64xf32>
    %c0_147 = arith.constant 0 : index
    %c2_148 = arith.constant 2 : index
    %452 = vector.load %arg12[%c0_147, %c2_148] : memref<16x4xf32, #tpu.memory_space<vmem>>, vector<16x1xf32>
    %453 = vector.broadcast %452 : vector<16x1xf32> to vector<16x64xf32>
    %454 = arith.addf %451, %453 : vector<16x64xf32>
    %cst_149 = arith.constant 0.000000e+00 : f32
    %455 = vector.broadcast %cst_149 : f32 to vector<16x64xf32>
    %456 = arith.maximumf %454, %455 : vector<16x64xf32>
    %c0_150 = arith.constant 0 : index
    %c0_151 = arith.constant 0 : index
    %457 = vector.load %arg15[%c0_150, %c0_151] : memref<64x256xbf16, #tpu.memory_space<vmem>>, vector<64x256xbf16>
    %458 = arith.truncf %456 : vector<16x64xf32> to vector<16x64xbf16>
    %cst_152 = arith.constant dense<0.000000e+00> : vector<16x256xf32>
    %459 = tpu.matmul %458, %457, %cst_152 {dimension_numbers = #tpu.dot_dimension_numbers<[1], [0], [0], [1], [0, 0, 1, 1], [], []>} : vector<16x64xbf16>, vector<64x256xbf16>, vector<16x256xf32> -> vector<16x256xf32>
    %c3 = arith.constant 3 : index
    %c0_153 = arith.constant 0 : index
    %c0_154 = arith.constant 0 : index
    %460 = vector.load %arg11[%c3, %c0_153, %c0_154] : memref<4x16x32xbf16, #tpu.memory_space<vmem>>, vector<1x1x16xbf16>
    %461 = vector.shape_cast %460 : vector<1x1x16xbf16> to vector<1x16xbf16>
    %462 = arith.truncf %459 : vector<16x256xf32> to vector<16x256xbf16>
    %cst_155 = arith.constant dense<0.000000e+00> : vector<1x256xf32>
    %463 = tpu.matmul %461, %462, %cst_155 {dimension_numbers = #tpu.dot_dimension_numbers<[1], [0], [0], [1], [0, 0, 1, 1], [], []>} : vector<1x16xbf16>, vector<16x256xbf16>, vector<1x256xf32> -> vector<1x256xf32>
    %c0_156 = arith.constant 0 : index
    %c3_157 = arith.constant 3 : index
    %464 = vector.load %arg12[%c0_156, %c3_157] : memref<16x4xf32, #tpu.memory_space<vmem>>, vector<1x1xf32>
    %465 = vector.broadcast %464 : vector<1x1xf32> to vector<1x256xf32>
    %466 = arith.addf %463, %465 : vector<1x256xf32>
    %c0_158 = arith.constant 0 : index
    %c0_159 = arith.constant 0 : index
    %467 = vector.load %arg16[%c0_158, %c0_159] : memref<256x1024xbf16, #tpu.memory_space<vmem>>, vector<256x1024xbf16>
    %468 = arith.truncf %466 : vector<1x256xf32> to vector<1x256xbf16>
    %cst_160 = arith.constant dense<0.000000e+00> : vector<1x1024xf32>
    %469 = tpu.matmul %468, %467, %cst_160 {dimension_numbers = #tpu.dot_dimension_numbers<[1], [0], [0], [1], [0, 0, 1, 1], [], []>} : vector<1x256xbf16>, vector<256x1024xbf16>, vector<1x1024xf32> -> vector<1x1024xf32>
    %c0_161 = arith.constant 0 : index
    %c0_162 = arith.constant 0 : index
    %c0_163 = arith.constant 0 : index
    %470 = vector.load %arg17[%c0_161, %c0_162, %c0_163] : memref<2x1x1024xf32, #tpu.memory_space<vmem>>, vector<1x1x1024xf32>
    %471 = vector.shape_cast %470 : vector<1x1x1024xf32> to vector<1x1024xf32>
    %472 = vector.shape_cast %469 : vector<1x1024xf32> to vector<1x1x1024xf32>
    tpu.vector_store %arg17[%c0_161, %c0_162, %c0_163], %472 {strides = array<i32>} : memref<2x1x1024xf32, #tpu.memory_space<vmem>>, vector<1x1x1024xf32>,
    %473 = vector.extract_strided_slice %422 {offsets = [6, 0], sizes = [4, 32], strides = [1, 1]} : vector<10x32xf32> to vector<4x32xf32>
    %c0_164 = arith.constant 0 : index
    %c0_165 = arith.constant 0 : index
    %c0_166 = arith.constant 0 : index
    %474 = vector.load %arg11[%c0_164, %c0_165, %c0_166] : memref<4x16x32xbf16, #tpu.memory_space<vmem>>, vector<1x16x32xbf16>
    %475 = vector.shape_cast %474 : vector<1x16x32xbf16> to vector<16x32xbf16>
    %476 = arith.truncf %473 : vector<4x32xf32> to vector<4x32xbf16>
    %cst_167 = arith.constant dense<0.000000e+00> : vector<16x4xf32>
    %477 = tpu.matmul %475, %476, %cst_167 {dimension_numbers = #tpu.dot_dimension_numbers<[1], [1], [0], [0], [0, 0, 1, 0], [], []>} : vector<16x32xbf16>, vector<4x32xbf16>, vector<16x4xf32> -> vector<16x4xf32>
    %c0_168 = arith.constant 0 : index
    %c0_169 = arith.constant 0 : index
    %478 = vector.load %arg12[%c0_168, %c0_169] : memref<16x4xf32, #tpu.memory_space<vmem>>, vector<16x1xf32>
    %479 = vector.broadcast %478 : vector<16x1xf32> to vector<16x4xf32>
    %480 = arith.addf %477, %479 : vector<16x4xf32>
    %cst_170 = arith.constant 0.000000e+00 : f32
    %481 = vector.broadcast %cst_170 : f32 to vector<16x4xf32>
    %482 = arith.maximumf %480, %481 : vector<16x4xf32>
    %c0_171 = arith.constant 0 : index
    %c0_172 = arith.constant 0 : index
    %483 = vector.load %arg13[%c0_171, %c0_172] : memref<4x16xbf16, #tpu.memory_space<vmem>>, vector<4x16xbf16>
    %484 = arith.truncf %482 : vector<16x4xf32> to vector<16x4xbf16>
    %cst_173 = arith.constant dense<0.000000e+00> : vector<16x16xf32>
    %485 = tpu.matmul %484, %483, %cst_173 {dimension_numbers = #tpu.dot_dimension_numbers<[1], [0], [0], [1], [0, 0, 1, 1], [], []>} : vector<16x4xbf16>, vector<4x16xbf16>, vector<16x16xf32> -> vector<16x16xf32>
    %c1_174 = arith.constant 1 : index
    %c0_175 = arith.constant 0 : index
    %c0_176 = arith.constant 0 : index
    %486 = vector.load %arg11[%c1_174, %c0_175, %c0_176] : memref<4x16x32xbf16, #tpu.memory_space<vmem>>, vector<1x16x16xbf16>
    %487 = vector.shape_cast %486 : vector<1x16x16xbf16> to vector<16x16xbf16>
    %488 = arith.truncf %485 : vector<16x16xf32> to vector<16x16xbf16>
    %cst_177 = arith.constant dense<0.000000e+00> : vector<16x16xf32>
    %489 = tpu.matmul %487, %488, %cst_177 {dimension_numbers = #tpu.dot_dimension_numbers<[1], [0], [0], [1], [0, 0, 1, 1], [], []>} : vector<16x16xbf16>, vector<16x16xbf16>, vector<16x16xf32> -> vector<16x16xf32>
    %c0_178 = arith.constant 0 : index
    %c1_179 = arith.constant 1 : index
    %490 = vector.load %arg12[%c0_178, %c1_179] : memref<16x4xf32, #tpu.memory_space<vmem>>, vector<16x1xf32>
    %491 = vector.broadcast %490 : vector<16x1xf32> to vector<16x16xf32>
    %492 = arith.addf %489, %491 : vector<16x16xf32>
    %cst_180 = arith.constant 0.000000e+00 : f32
    %493 = vector.broadcast %cst_180 : f32 to vector<16x16xf32>
    %494 = arith.maximumf %492, %493 : vector<16x16xf32>
    %c0_181 = arith.constant 0 : index
    %c0_182 = arith.constant 0 : index
    %495 = vector.load %arg14[%c0_181, %c0_182] : memref<16x64xbf16, #tpu.memory_space<vmem>>, vector<16x64xbf16>
    %496 = arith.truncf %494 : vector<16x16xf32> to vector<16x16xbf16>
    %cst_183 = arith.constant dense<0.000000e+00> : vector<16x64xf32>
    %497 = tpu.matmul %496, %495, %cst_183 {dimension_numbers = #tpu.dot_dimension_numbers<[1], [0], [0], [1], [0, 0, 1, 1], [], []>} : vector<16x16xbf16>, vector<16x64xbf16>, vector<16x64xf32> -> vector<16x64xf32>
    %c2_184 = arith.constant 2 : index
    %c0_185 = arith.constant 0 : index
    %c0_186 = arith.constant 0 : index
    %498 = vector.load %arg11[%c2_184, %c0_185, %c0_186] : memref<4x16x32xbf16, #tpu.memory_space<vmem>>, vector<1x16x16xbf16>
    %499 = vector.shape_cast %498 : vector<1x16x16xbf16> to vector<16x16xbf16>
    %500 = arith.truncf %497 : vector<16x64xf32> to vector<16x64xbf16>
    %cst_187 = arith.constant dense<0.000000e+00> : vector<16x64xf32>
    %501 = tpu.matmul %499, %500, %cst_187 {dimension_numbers = #tpu.dot_dimension_numbers<[1], [0], [0], [1], [0, 0, 1, 1], [], []>} : vector<16x16xbf16>, vector<16x64xbf16>, vector<16x64xf32> -> vector<16x64xf32>
    %c0_188 = arith.constant 0 : index
    %c2_189 = arith.constant 2 : index
    %502 = vector.load %arg12[%c0_188, %c2_189] : memref<16x4xf32, #tpu.memory_space<vmem>>, vector<16x1xf32>
    %503 = vector.broadcast %502 : vector<16x1xf32> to vector<16x64xf32>
    %504 = arith.addf %501, %503 : vector<16x64xf32>
    %cst_190 = arith.constant 0.000000e+00 : f32
    %505 = vector.broadcast %cst_190 : f32 to vector<16x64xf32>
    %506 = arith.maximumf %504, %505 : vector<16x64xf32>
    %c0_191 = arith.constant 0 : index
    %c0_192 = arith.constant 0 : index
    %507 = vector.load %arg15[%c0_191, %c0_192] : memref<64x256xbf16, #tpu.memory_space<vmem>>, vector<64x256xbf16>
    %508 = arith.truncf %506 : vector<16x64xf32> to vector<16x64xbf16>
    %cst_193 = arith.constant dense<0.000000e+00> : vector<16x256xf32>
    %509 = tpu.matmul %508, %507, %cst_193 {dimension_numbers = #tpu.dot_dimension_numbers<[1], [0], [0], [1], [0, 0, 1, 1], [], []>} : vector<16x64xbf16>, vector<64x256xbf16>, vector<16x256xf32> -> vector<16x256xf32>
    %c3_194 = arith.constant 3 : index
    %c0_195 = arith.constant 0 : index
    %c0_196 = arith.constant 0 : index
    %510 = vector.load %arg11[%c3_194, %c0_195, %c0_196] : memref<4x16x32xbf16, #tpu.memory_space<vmem>>, vector<1x1x16xbf16>
    %511 = vector.shape_cast %510 : vector<1x1x16xbf16> to vector<1x16xbf16>
    %512 = arith.truncf %509 : vector<16x256xf32> to vector<16x256xbf16>
    %cst_197 = arith.constant dense<0.000000e+00> : vector<1x256xf32>
    %513 = tpu.matmul %511, %512, %cst_197 {dimension_numbers = #tpu.dot_dimension_numbers<[1], [0], [0], [1], [0, 0, 1, 1], [], []>} : vector<1x16xbf16>, vector<16x256xbf16>, vector<1x256xf32> -> vector<1x256xf32>
    %c0_198 = arith.constant 0 : index
    %c3_199 = arith.constant 3 : index
    %514 = vector.load %arg12[%c0_198, %c3_199] : memref<16x4xf32, #tpu.memory_space<vmem>>, vector<1x1xf32>
    %515 = vector.broadcast %514 : vector<1x1xf32> to vector<1x256xf32>
    %516 = arith.addf %513, %515 : vector<1x256xf32>
    %c0_200 = arith.constant 0 : index
    %c0_201 = arith.constant 0 : index
    %517 = vector.load %arg16[%c0_200, %c0_201] : memref<256x1024xbf16, #tpu.memory_space<vmem>>, vector<256x1024xbf16>
    %518 = arith.truncf %516 : vector<1x256xf32> to vector<1x256xbf16>
    %cst_202 = arith.constant dense<0.000000e+00> : vector<1x1024xf32>
    %519 = tpu.matmul %518, %517, %cst_202 {dimension_numbers = #tpu.dot_dimension_numbers<[1], [0], [0], [1], [0, 0, 1, 1], [], []>} : vector<1x256xbf16>, vector<256x1024xbf16>, vector<1x1024xf32> -> vector<1x1024xf32>
    %c1_203 = arith.constant 1 : index
    %c0_204 = arith.constant 0 : index
    %c0_205 = arith.constant 0 : index
    %520 = vector.load %arg17[%c1_203, %c0_204, %c0_205] : memref<2x1x1024xf32, #tpu.memory_space<vmem>>, vector<1x1x1024xf32>
    %521 = vector.shape_cast %520 : vector<1x1x1024xf32> to vector<1x1024xf32>
    %522 = vector.shape_cast %519 : vector<1x1024xf32> to vector<1x1x1024xf32>
    tpu.vector_store %arg17[%c1_203, %c0_204, %c0_205], %522 {strides = array<i32>} : memref<2x1x1024xf32, #tpu.memory_space<vmem>>, vector<1x1x1024xf32>,
    return
  }
  func.func @transform_0(%arg0: i32) -> (i32, i32) {
    %c0_i32 = arith.constant 0 : i32
    %c0_i32_0 = arith.constant 0 : i32
    return %arg0, %c0_i32 : i32, i32
  }
  func.func @transform_1(%arg0: i32) -> (i32, i32) {
    %c0_i32 = arith.constant 0 : i32
    %c0_i32_0 = arith.constant 0 : i32
    %c0_i32_1 = arith.constant 0 : i32
    return %c0_i32, %c0_i32_0 : i32, i32
  }
  func.func @transform_2(%arg0: i32) -> (i32, i32) {
    %c0_i32 = arith.constant 0 : i32
    %c0_i32_0 = arith.constant 0 : i32
    %c0_i32_1 = arith.constant 0 : i32
    return %c0_i32, %c0_i32_0 : i32, i32
  }
  func.func @transform_3(%arg0: i32) -> (i32, i32) {
    %c0_i32 = arith.constant 0 : i32
    %c0_i32_0 = arith.constant 0 : i32
    %c0_i32_1 = arith.constant 0 : i32
    return %c0_i32, %c0_i32_0 : i32, i32
  }
  func.func @transform_4(%arg0: i32) -> (i32, i32, i32) {
    %c0_i32 = arith.constant 0 : i32
    %c0_i32_0 = arith.constant 0 : i32
    %c0_i32_1 = arith.constant 0 : i32
    %c0_i32_2 = arith.constant 0 : i32
    return %c0_i32, %c0_i32_0, %c0_i32_1 : i32, i32, i32
  }
  func.func @transform_5(%arg0: i32) -> (i32, i32, i32) {
    %c0_i32 = arith.constant 0 : i32
    %c0_i32_0 = arith.constant 0 : i32
    %c0_i32_1 = arith.constant 0 : i32
    %c0_i32_2 = arith.constant 0 : i32
    return %c0_i32, %c0_i32_0, %c0_i32_1 : i32, i32, i32
  }
  func.func @transform_6(%arg0: i32) -> (i32, i32, i32) {
    %c0_i32 = arith.constant 0 : i32
    %c0_i32_0 = arith.constant 0 : i32
    %c0_i32_1 = arith.constant 0 : i32
    %c0_i32_2 = arith.constant 0 : i32
    return %c0_i32, %c0_i32_0, %c0_i32_1 : i32, i32, i32
  }
  func.func @transform_7(%arg0: i32) -> (i32, i32, i32) {
    %c0_i32 = arith.constant 0 : i32
    %c0_i32_0 = arith.constant 0 : i32
    %c0_i32_1 = arith.constant 0 : i32
    %c0_i32_2 = arith.constant 0 : i32
    return %c0_i32, %c0_i32_0, %c0_i32_1 : i32, i32, i32
  }
  func.func @transform_8(%arg0: i32) -> (i32, i32, i32) {
    %c0_i32 = arith.constant 0 : i32
    %c0_i32_0 = arith.constant 0 : i32
    %c0_i32_1 = arith.constant 0 : i32
    %c0_i32_2 = arith.constant 0 : i32
    return %c0_i32, %c0_i32_0, %c0_i32_1 : i32, i32, i32
  }
  func.func @transform_9(%arg0: i32) -> (i32, i32) {
    %c0_i32 = arith.constant 0 : i32
    %c0_i32_0 = arith.constant 0 : i32
    %c0_i32_1 = arith.constant 0 : i32
    return %c0_i32, %c0_i32_0 : i32, i32
  }
  func.func @transform_10(%arg0: i32) -> (i32, i32, i32) {
    %c0_i32 = arith.constant 0 : i32
    %c0_i32_0 = arith.constant 0 : i32
    %c0_i32_1 = arith.constant 0 : i32
    %c0_i32_2 = arith.constant 0 : i32
    return %c0_i32, %c0_i32_0, %c0_i32_1 : i32, i32, i32
  }
  func.func @transform_11(%arg0: i32) -> (i32, i32) {
    %c0_i32 = arith.constant 0 : i32
    %c0_i32_0 = arith.constant 0 : i32
    %c0_i32_1 = arith.constant 0 : i32
    return %c0_i32, %c0_i32_0 : i32, i32
  }
  func.func @transform_12(%arg0: i32) -> (i32, i32) {
    %c0_i32 = arith.constant 0 : i32
    %c0_i32_0 = arith.constant 0 : i32
    %c0_i32_1 = arith.constant 0 : i32
    return %c0_i32, %c0_i32_0 : i32, i32
  }
  func.func @transform_13(%arg0: i32) -> (i32, i32) {
    %c0_i32 = arith.constant 0 : i32
    %c0_i32_0 = arith.constant 0 : i32
    %c0_i32_1 = arith.constant 0 : i32
    return %c0_i32, %c0_i32_0 : i32, i32
  }
  func.func @transform_14(%arg0: i32) -> (i32, i32) {
    %c0_i32 = arith.constant 0 : i32
    %c0_i32_0 = arith.constant 0 : i32
    %c0_i32_1 = arith.constant 0 : i32
    return %c0_i32, %c0_i32_0 : i32, i32
  }
  func.func @transform_15(%arg0: i32) -> (i32, i32) {
    %c0_i32 = arith.constant 0 : i32
    %c0_i32_0 = arith.constant 0 : i32
    %c0_i32_1 = arith.constant 0 : i32
    return %c0_i32, %c0_i32_0 : i32, i32
  }
  func.func @transform_16(%arg0: i32) -> (i32, i32, i32) {
    %c0_i32 = arith.constant 0 : i32
    %c0_i32_0 = arith.constant 0 : i32
    %c0_i32_1 = arith.constant 0 : i32
    return %arg0, %c0_i32, %c0_i32_0 : i32, i32, i32
  }
}

</mosaic_0001>

<llo_original>
// kernel: tile.9
$region0: #{tile.9}
  %s0 = inlined_call_operand.vmem [shape: f32[2,5,32], index: 0, kind: input, shape index: {}]
  %s1 = inlined_call_operand.vmem [shape: f32[10,32], index: 1, kind: output, shape index: {}]
  %v2 = vld [vmem:[%s0] sm:$0x1f]
  %vm3 = vcmask 261120
  %4 = vst.msk [vmem:[%s1] sm:$0x1f] %vm3, %v2
  %s5 = scalar_lea.vmem %s0, 8
  %v6 = vld [vmem:[%s5] sm:$0x1f]
  %vm7 = vcmask 261120
  %s8 = scalar_lea.vmem %s1, 5
  %9 = vst.msk [vmem:[%s8] sm:$0x1f] %vm7, %v6

// kernel: setr_forward.1
$region0: #{setr_forward.1}
  #allocation0 [shape = 'u32[]', space=smem, size = 0x4, offset = 0x4, fixed_abs, tag = 'smem constant byte address 0x4 - core index']
  #allocation1 [shape = 'u32[72,128]{1,0:T(1,128)}', space=vmem, size = 0x9000, scoped, tag = 'internal scratch']
  %s0 = inlined_call_operand.vmem [shape: f32[8,768], index: 0, kind: input, shape index: {}]
  %s1 = inlined_call_operand.vmem [shape: f32[10,8], index: 1, kind: input, shape index: {}]
  %s2 = inlined_call_operand.vmem [shape: f32[10,32], index: 2, kind: input, shape index: {}]
  %s3 = inlined_call_operand.vmem [shape: bf16[768,32], index: 3, kind: input, shape index: {}]
  %s4 = inlined_call_operand.vmem [shape: bf16[2,32,96], index: 4, kind: input, shape index: {}]
  %s5 = inlined_call_operand.vmem [shape: bf16[2,32,32], index: 5, kind: input, shape index: {}]
  %s6 = inlined_call_operand.vmem [shape: bf16[2,32,128], index: 6, kind: input, shape index: {}]
  %s7 = inlined_call_operand.vmem [shape: bf16[2,128,32], index: 7, kind: input, shape index: {}]
  %s8 = inlined_call_operand.vmem [shape: f32[2,8,128], index: 8, kind: input, shape index: {}]
  %s9 = inlined_call_operand.vmem [shape: f32[4,32], index: 9, kind: input, shape index: {}]
  %s10 = inlined_call_operand.vmem [shape: bf16[4,16,32], index: 10, kind: input, shape index: {}]
  %s11 = inlined_call_operand.vmem [shape: f32[16,4], index: 11, kind: input, shape index: {}]
  %s12 = inlined_call_operand.vmem [shape: bf16[4,16], index: 12, kind: input, shape index: {}]
  %s13 = inlined_call_operand.vmem [shape: bf16[16,64], index: 13, kind: input, shape index: {}]
  %s14 = inlined_call_operand.vmem [shape: bf16[64,256], index: 14, kind: input, shape index: {}]
  %s15 = inlined_call_operand.vmem [shape: bf16[256,1024], index: 15, kind: input, shape index: {}]
  %s16 = inlined_call_operand.vmem [shape: f32[2,1,1024], index: 16, kind: output, shape index: {}]
  %s17 = sld [smem:[#allocation0]]
  $region74: #{setr_forward.1} parent=0
    _
  %s19 = ssub.s32 1, %s17
  %s20 = scalar_select 0, %s19, %s17
  // Predicated region
  $region2: #{setr_forward.1} parent=0 // pred_check
    _
  $region3: #{setr_forward.1} parent=0 // pred_check_branch
    %22 = sbr.rel (0) target = $region5
  $region4: #{setr_forward.1} parent=0 // pred_region
    _
  $region5: #{setr_forward.1} parent=0 // pred_fallthru
    _
  // Predicated region
  $region6: #{setr_forward.1} parent=0 // pred_check
    _
  $region7: #{setr_forward.1} parent=0 // pred_check_branch
    %24 = sbr.rel (0) target = $region9
  $region8: #{setr_forward.1} parent=0 // pred_region
    _
  $region9: #{setr_forward.1} parent=0 // pred_fallthru
    _
  // Predicated region
  $region10: #{setr_forward.1} parent=0 // pred_check
    _
  $region11: #{setr_forward.1} parent=0 // pred_check_branch
    %26 = sbr.rel (0) target = $region13
  $region12: #{setr_forward.1} parent=0 // pred_region
    _
  $region13: #{setr_forward.1} parent=0 // pred_fallthru
    _
  // Predicated region
  $region14: #{setr_forward.1} parent=0 // pred_check
    _
  $region15: #{setr_forward.1} parent=0 // pred_check_branch
    %28 = sbr.rel (0) target = $region17
  $region16: #{setr_forward.1} parent=0 // pred_region
    _
  $region17: #{setr_forward.1} parent=0 // pred_fallthru
    _
  // Predicated region
  $region18: #{setr_forward.1} parent=0 // pred_check
    _
  $region19: #{setr_forward.1} parent=0 // pred_check_branch
    %30 = sbr.rel (0) target = $region21
  $region20: #{setr_forward.1} parent=0 // pred_region
    _
  $region21: #{setr_forward.1} parent=0 // pred_fallthru
    _
  // Predicated region
  $region22: #{setr_forward.1} parent=0 // pred_check
    _
  $region23: #{setr_forward.1} parent=0 // pred_check_branch
    %32 = sbr.rel (0) target = $region25
  $region24: #{setr_forward.1} parent=0 // pred_region
    _
  $region25: #{setr_forward.1} parent=0 // pred_fallthru
    _
  // Predicated region
  $region26: #{setr_forward.1} parent=0 // pred_check
    _
  $region27: #{setr_forward.1} parent=0 // pred_check_branch
    %34 = sbr.rel (0) target = $region29
  $region28: #{setr_forward.1} parent=0 // pred_region
    _
  $region29: #{setr_forward.1} parent=0 // pred_fallthru
    _
  // Predicated region
  $region30: #{setr_forward.1} parent=0 // pred_check
    _
  $region31: #{setr_forward.1} parent=0 // pred_check_branch
    %36 = sbr.rel (0) target = $region33
  $region32: #{setr_forward.1} parent=0 // pred_region
    _
  $region33: #{setr_forward.1} parent=0 // pred_fallthru
    _
  // Predicated region
  $region34: #{setr_forward.1} parent=0 // pred_check
    _
  $region35: #{setr_forward.1} parent=0 // pred_check_branch
    %38 = sbr.rel (0) target = $region37
  $region36: #{setr_forward.1} parent=0 // pred_region
    _
  $region37: #{setr_forward.1} parent=0 // pred_fallthru
    _
  // Predicated region
  $region38: #{setr_forward.1} parent=0 // pred_check
    _
  $region39: #{setr_forward.1} parent=0 // pred_check_branch
    %40 = sbr.rel (0) target = $region41
  $region40: #{setr_forward.1} parent=0 // pred_region
    _
  $region41: #{setr_forward.1} parent=0 // pred_fallthru
    _
  // Predicated region
  $region42: #{setr_forward.1} parent=0 // pred_check
    _
  $region43: #{setr_forward.1} parent=0 // pred_check_branch
    %42 = sbr.rel (0) target = $region45
  $region44: #{setr_forward.1} parent=0 // pred_region
    _
  $region45: #{setr_forward.1} parent=0 // pred_fallthru
    _
  // Predicated region
  $region46: #{setr_forward.1} parent=0 // pred_check
    _
  $region47: #{setr_forward.1} parent=0 // pred_check_branch
    %44 = sbr.rel (0) target = $region49
  $region48: #{setr_forward.1} parent=0 // pred_region
    _
  $region49: #{setr_forward.1} parent=0 // pred_fallthru
    _
  // Predicated region
  $region50: #{setr_forward.1} parent=0 // pred_check
    _
  $region51: #{setr_forward.1} parent=0 // pred_check_branch
    %46 = sbr.rel (0) target = $region53
  $region52: #{setr_forward.1} parent=0 // pred_region
    _
  $region53: #{setr_forward.1} parent=0 // pred_fallthru
    _
  // Predicated region
  $region54: #{setr_forward.1} parent=0 // pred_check
    _
  $region55: #{setr_forward.1} parent=0 // pred_check_branch
    %48 = sbr.rel (0) target = $region57
  $region56: #{setr_forward.1} parent=0 // pred_region
    _
  $region57: #{setr_forward.1} parent=0 // pred_fallthru
    _
  // Predicated region
  $region58: #{setr_forward.1} parent=0 // pred_check
    _
  $region59: #{setr_forward.1} parent=0 // pred_check_branch
    %50 = sbr.rel (0) target = $region61
  $region60: #{setr_forward.1} parent=0 // pred_region
    _
  $region61: #{setr_forward.1} parent=0 // pred_fallthru
    _
  // Predicated region
  $region62: #{setr_forward.1} parent=0 // pred_check
    _
  $region63: #{setr_forward.1} parent=0 // pred_check_branch
    %52 = sbr.rel (0) target = $region65
  $region64: #{setr_forward.1} parent=0 // pred_region
    _
  $region65: #{setr_forward.1} parent=0 // pred_fallthru
    _
  %v54 = vld [vmem:[%s0] sm:$0xff]
  %v55 = vld [vmem:[%s0 + $0x8] sm:$0xff]
  %v56 = vld [vmem:[%s0 + $0x10] sm:$0xff]
  %v57 = vld [vmem:[%s0 + $0x18] sm:$0xff]
  %v58 = vld [vmem:[%s0 + $0x20] sm:$0xff]
  %v59 = vld [vmem:[%s0 + $0x28] sm:$0xff]
  %v60 = vld [vmem:[%s3] sm:$0xf]
  %v61 = vld [vmem:[%s3 + $0x4] sm:$0xf]
  %v62 = vld [vmem:[%s3 + $0x8] sm:$0xf]
  %v63 = vld [vmem:[%s3 + $0xc] sm:$0xf]
  %v64 = vld [vmem:[%s3 + $0x10] sm:$0xf]
  %v65 = vld [vmem:[%s3 + $0x14] sm:$0xf]
  %v66 = vld [vmem:[%s3 + $0x18] sm:$0xf]
  %v67 = vld [vmem:[%s3 + $0x1c] sm:$0xf]
  %v68 = vld [vmem:[%s3 + $0x20] sm:$0xf]
  %v69 = vld [vmem:[%s3 + $0x24] sm:$0xf]
  %v70 = vld [vmem:[%s3 + $0x28] sm:$0xf]
  %v71 = vld [vmem:[%s3 + $0x2c] sm:$0xf]
  %v72 = vld [vmem:[%s3 + $0x30] sm:$0xf]
  %v73 = vld [vmem:[%s3 + $0x34] sm:$0xf]
  %v74 = vld [vmem:[%s3 + $0x38] sm:$0xf]
  %v75 = vld [vmem:[%s3 + $0x3c] sm:$0xf]
  %v76 = vld [vmem:[%s3 + $0x40] sm:$0xf]
  %v77 = vld [vmem:[%s3 + $0x44] sm:$0xf]
  %v78 = vld [vmem:[%s3 + $0x48] sm:$0xf]
  %v79 = vld [vmem:[%s3 + $0x4c] sm:$0xf]
  %v80 = vld [vmem:[%s3 + $0x50] sm:$0xf]
  %v81 = vld [vmem:[%s3 + $0x54] sm:$0xf]
  %v82 = vld [vmem:[%s3 + $0x58] sm:$0xf]
  %v83 = vld [vmem:[%s3 + $0x5c] sm:$0xf]
  %v84 = vld [vmem:[%s3 + $0x60] sm:$0xf]
  %v85 = vld [vmem:[%s3 + $0x64] sm:$0xf]
  %v86 = vld [vmem:[%s3 + $0x68] sm:$0xf]
  %v87 = vld [vmem:[%s3 + $0x6c] sm:$0xf]
  %v88 = vld [vmem:[%s3 + $0x70] sm:$0xf]
  %v89 = vld [vmem:[%s3 + $0x74] sm:$0xf]
  %v90 = vld [vmem:[%s3 + $0x78] sm:$0xf]
  %v91 = vld [vmem:[%s3 + $0x7c] sm:$0xf]
  %v92 = vld [vmem:[%s3 + $0x80] sm:$0xf]
  %v93 = vld [vmem:[%s3 + $0x84] sm:$0xf]
  %v94 = vld [vmem:[%s3 + $0x88] sm:$0xf]
  %v95 = vld [vmem:[%s3 + $0x8c] sm:$0xf]
  %v96 = vld [vmem:[%s3 + $0x90] sm:$0xf]
  %v97 = vld [vmem:[%s3 + $0x94] sm:$0xf]
  %v98 = vld [vmem:[%s3 + $0x98] sm:$0xf]
  %v99 = vld [vmem:[%s3 + $0x9c] sm:$0xf]
  %v100 = vld [vmem:[%s3 + $0xa0] sm:$0xf]
  %v101 = vld [vmem:[%s3 + $0xa4] sm:$0xf]
  %v102 = vld [vmem:[%s3 + $0xa8] sm:$0xf]
  %v103 = vld [vmem:[%s3 + $0xac] sm:$0xf]
  %v104 = vld [vmem:[%s3 + $0xb0] sm:$0xf]
  %v105 = vld [vmem:[%s3 + $0xb4] sm:$0xf]
  %v106 = vld [vmem:[%s3 + $0xb8] sm:$0xf]
  %v107 = vld [vmem:[%s3 + $0xbc] sm:$0xf]
  %v108 = vld [vmem:[%s3 + $0xc0] sm:$0xf]
  %v109 = vld [vmem:[%s3 + $0xc4] sm:$0xf]
  %v110 = vld [vmem:[%s3 + $0xc8] sm:$0xf]
  %v111 = vld [vmem:[%s3 + $0xcc] sm:$0xf]
  %v112 = vld [vmem:[%s3 + $0xd0] sm:$0xf]
  %v113 = vld [vmem:[%s3 + $0xd4] sm:$0xf]
  %v114 = vld [vmem:[%s3 + $0xd8] sm:$0xf]
  %v115 = vld [vmem:[%s3 + $0xdc] sm:$0xf]
  %v116 = vld [vmem:[%s3 + $0xe0] sm:$0xf]
  %v117 = vld [vmem:[%s3 + $0xe4] sm:$0xf]
  %v118 = vld [vmem:[%s3 + $0xe8] sm:$0xf]
  %v119 = vld [vmem:[%s3 + $0xec] sm:$0xf]
  %v120 = vld [vmem:[%s3 + $0xf0] sm:$0xf]
  %v121 = vld [vmem:[%s3 + $0xf4] sm:$0xf]
  %v122 = vld [vmem:[%s3 + $0xf8] sm:$0xf]
  %v123 = vld [vmem:[%s3 + $0xfc] sm:$0xf]
  %v124 = vld [vmem:[%s3 + $0x100] sm:$0xf]
  %v125 = vld [vmem:[%s3 + $0x104] sm:$0xf]
  %v126 = vld [vmem:[%s3 + $0x108] sm:$0xf]
  %v127 = vld [vmem:[%s3 + $0x10c] sm:$0xf]
  %v128 = vld [vmem:[%s3 + $0x110] sm:$0xf]
  %v129 = vld [vmem:[%s3 + $0x114] sm:$0xf]
  %v130 = vld [vmem:[%s3 + $0x118] sm:$0xf]
  %v131 = vld [vmem:[%s3 + $0x11c] sm:$0xf]
  %v132 = vld [vmem:[%s3 + $0x120] sm:$0xf]
  %v133 = vld [vmem:[%s3 + $0x124] sm:$0xf]
  %v134 = vld [vmem:[%s3 + $0x128] sm:$0xf]
  %v135 = vld [vmem:[%s3 + $0x12c] sm:$0xf]
  %v136 = vld [vmem:[%s3 + $0x130] sm:$0xf]
  %v137 = vld [vmem:[%s3 + $0x134] sm:$0xf]
  %v138 = vld [vmem:[%s3 + $0x138] sm:$0xf]
  %v139 = vld [vmem:[%s3 + $0x13c] sm:$0xf]
  %v140 = vld [vmem:[%s3 + $0x140] sm:$0xf]
  %v141 = vld [vmem:[%s3 + $0x144] sm:$0xf]
  %v142 = vld [vmem:[%s3 + $0x148] sm:$0xf]
  %v143 = vld [vmem:[%s3 + $0x14c] sm:$0xf]
  %v144 = vld [vmem:[%s3 + $0x150] sm:$0xf]
  %v145 = vld [vmem:[%s3 + $0x154] sm:$0xf]
  %v146 = vld [vmem:[%s3 + $0x158] sm:$0xf]
  %v147 = vld [vmem:[%s3 + $0x15c] sm:$0xf]
  %v148 = vld [vmem:[%s3 + $0x160] sm:$0xf]
  %v149 = vld [vmem:[%s3 + $0x164] sm:$0xf]
  %v150 = vld [vmem:[%s3 + $0x168] sm:$0xf]
  %v151 = vld [vmem:[%s3 + $0x16c] sm:$0xf]
  %v152 = vld [vmem:[%s3 + $0x170] sm:$0xf]
  %v153 = vld [vmem:[%s3 + $0x174] sm:$0xf]
  %v154 = vld [vmem:[%s3 + $0x178] sm:$0xf]
  %v155 = vld [vmem:[%s3 + $0x17c] sm:$0xf]
  %v156 = vpack.c.bf16 %v54, %v54
  %v157 = vpack.c.bf16 %v55, %v55
  %v158 = vpack.c.bf16 %v56, %v56
  %v159 = vpack.c.bf16 %v57, %v57
  %v160 = vpack.c.bf16 %v58, %v58
  %v161 = vpack.c.bf16 %v59, %v59
  %v258 = vunpack.c.l.b16 %v60
  %v259 = vunpack.c.l.b16 %v61
  %v260 = vunpack.c.l.b16 %v62
  %v261 = vunpack.c.l.b16 %v63
  %v262 = vunpack.c.l.b16 %v64
  %v263 = vunpack.c.l.b16 %v65
  %v264 = vunpack.c.l.b16 %v66
  %v265 = vunpack.c.l.b16 %v67
  %v266 = vunpack.c.l.b16 %v68
  %v267 = vunpack.c.l.b16 %v69
  %v268 = vunpack.c.l.b16 %v70
  %v269 = vunpack.c.l.b16 %v71
  %v270 = vunpack.c.l.b16 %v72
  %v271 = vunpack.c.l.b16 %v73
  %v272 = vunpack.c.l.b16 %v74
  %v273 = vunpack.c.l.b16 %v75
  %v274 = vunpack.c.l.b16 %v76
  %v275 = vunpack.c.l.b16 %v77
  %v276 = vunpack.c.l.b16 %v78
  %v277 = vunpack.c.l.b16 %v79
  %v278 = vunpack.c.l.b16 %v80
  %v279 = vunpack.c.l.b16 %v81
  %v280 = vunpack.c.l.b16 %v82
  %v281 = vunpack.c.l.b16 %v83
  %v282 = vunpack.c.l.b16 %v84
  %v283 = vunpack.c.l.b16 %v85
  %v284 = vunpack.c.l.b16 %v86
  %v285 = vunpack.c.l.b16 %v87
  %v286 = vunpack.c.l.b16 %v88
  %v287 = vunpack.c.l.b16 %v89
  %v288 = vunpack.c.l.b16 %v90
  %v289 = vunpack.c.l.b16 %v91
  %v290 = vunpack.c.l.b16 %v92
  %v291 = vunpack.c.l.b16 %v93
  %v292 = vunpack.c.l.b16 %v94
  %v293 = vunpack.c.l.b16 %v95
  %v294 = vunpack.c.l.b16 %v96
  %v295 = vunpack.c.l.b16 %v97
  %v296 = vunpack.c.l.b16 %v98
  %v297 = vunpack.c.l.b16 %v99
  %v298 = vunpack.c.l.b16 %v100
  %v299 = vunpack.c.l.b16 %v101
  %v300 = vunpack.c.l.b16 %v102
  %v301 = vunpack.c.l.b16 %v103
  %v302 = vunpack.c.l.b16 %v104
  %v303 = vunpack.c.l.b16 %v105
  %v304 = vunpack.c.l.b16 %v106
  %v305 = vunpack.c.l.b16 %v107
  %v306 = vunpack.c.l.b16 %v108
  %v307 = vunpack.c.l.b16 %v109
  %v308 = vunpack.c.l.b16 %v110
  %v309 = vunpack.c.l.b16 %v111
  %v310 = vunpack.c.l.b16 %v112
  %v311 = vunpack.c.l.b16 %v113
  %v312 = vunpack.c.l.b16 %v114
  %v313 = vunpack.c.l.b16 %v115
  %v314 = vunpack.c.l.b16 %v116
  %v315 = vunpack.c.l.b16 %v117
  %v316 = vunpack.c.l.b16 %v118
  %v317 = vunpack.c.l.b16 %v119
  %v318 = vunpack.c.l.b16 %v120
  %v319 = vunpack.c.l.b16 %v121
  %v320 = vunpack.c.l.b16 %v122
  %v321 = vunpack.c.l.b16 %v123
  %v322 = vunpack.c.l.b16 %v124
  %v323 = vunpack.c.l.b16 %v125
  %v324 = vunpack.c.l.b16 %v126
  %v325 = vunpack.c.l.b16 %v127
  %v326 = vunpack.c.l.b16 %v128
  %v327 = vunpack.c.l.b16 %v129
  %v328 = vunpack.c.l.b16 %v130
  %v329 = vunpack.c.l.b16 %v131
  %v330 = vunpack.c.l.b16 %v132
  %v331 = vunpack.c.l.b16 %v133
  %v332 = vunpack.c.l.b16 %v134
  %v333 = vunpack.c.l.b16 %v135
  %v334 = vunpack.c.l.b16 %v136
  %v335 = vunpack.c.l.b16 %v137
  %v336 = vunpack.c.l.b16 %v138
  %v337 = vunpack.c.l.b16 %v139
  %v338 = vunpack.c.l.b16 %v140
  %v339 = vunpack.c.l.b16 %v141
  %v340 = vunpack.c.l.b16 %v142
  %v341 = vunpack.c.l.b16 %v143
  %v342 = vunpack.c.l.b16 %v144
  %v343 = vunpack.c.l.b16 %v145
  %v344 = vunpack.c.l.b16 %v146
  %v345 = vunpack.c.l.b16 %v147
  %v346 = vunpack.c.l.b16 %v148
  %v347 = vunpack.c.l.b16 %v149
  %v348 = vunpack.c.l.b16 %v150
  %v349 = vunpack.c.l.b16 %v151
  %v350 = vunpack.c.l.b16 %v152
  %v351 = vunpack.c.l.b16 %v153
  %v352 = vunpack.c.l.b16 %v154
  %v353 = vunpack.c.l.b16 %v155
  %v354 = vpack.c.b16 %v259, %v258
  %v355 = vpack.c.b16 %v261, %v260
  %v356 = vpack.c.b16 %v263, %v262
  %v357 = vpack.c.b16 %v265, %v264
  %v358 = vpack.c.b16 %v267, %v266
  %v359 = vpack.c.b16 %v269, %v268
  %v360 = vpack.c.b16 %v271, %v270
  %v361 = vpack.c.b16 %v273, %v272
  %v362 = vpack.c.b16 %v275, %v274
  %v363 = vpack.c.b16 %v277, %v276
  %v364 = vpack.c.b16 %v279, %v278
  %v365 = vpack.c.b16 %v281, %v280
  %v366 = vpack.c.b16 %v283, %v282
  %v367 = vpack.c.b16 %v285, %v284
  %v368 = vpack.c.b16 %v287, %v286
  %v369 = vpack.c.b16 %v289, %v288
  %v370 = vpack.c.b16 %v291, %v290
  %v371 = vpack.c.b16 %v293, %v292
  %v372 = vpack.c.b16 %v295, %v294
  %v373 = vpack.c.b16 %v297, %v296
  %v374 = vpack.c.b16 %v299, %v298
  %v375 = vpack.c.b16 %v301, %v300
  %v376 = vpack.c.b16 %v303, %v302
  %v377 = vpack.c.b16 %v305, %v304
  %v378 = vpack.c.b16 %v307, %v306
  %v379 = vpack.c.b16 %v309, %v308
  %v380 = vpack.c.b16 %v311, %v310
  %v381 = vpack.c.b16 %v313, %v312
  %v382 = vpack.c.b16 %v315, %v314
  %v383 = vpack.c.b16 %v317, %v316
  %v384 = vpack.c.b16 %v319, %v318
  %v385 = vpack.c.b16 %v321, %v320
  %v386 = vpack.c.b16 %v323, %v322
  %v387 = vpack.c.b16 %v325, %v324
  %v388 = vpack.c.b16 %v327, %v326
  %v389 = vpack.c.b16 %v329, %v328
  %v390 = vpack.c.b16 %v331, %v330
  %v391 = vpack.c.b16 %v333, %v332
  %v392 = vpack.c.b16 %v335, %v334
  %v393 = vpack.c.b16 %v337, %v336
  %v394 = vpack.c.b16 %v339, %v338
  %v395 = vpack.c.b16 %v341, %v340
  %v396 = vpack.c.b16 %v343, %v342
  %v397 = vpack.c.b16 %v345, %v344
  %v398 = vpack.c.b16 %v347, %v346
  %v399 = vpack.c.b16 %v349, %v348
  %v400 = vpack.c.b16 %v351, %v350
  %v401 = vpack.c.b16 %v353, %v352
  %450 = vmatpush.bf16.msra.mxu0 %v361
  %451 = vmatpush.bf16.msra.mxu0 %v360
  %452 = vmatpush.bf16.msra.mxu0 %v359
  %453 = vmatpush.bf16.msra.mxu0 %v358
  %454 = vmatpush.bf16.msra.mxu0 %v357
  %455 = vmatpush.bf16.msra.mxu0 %v356
  %456 = vmatpush.bf16.msra.mxu0 %v355
  %457 = vmatpush.bf16.msra.mxu0 %v354
  %458 = vmatmul.bf16.gmra.mxu0 %v156
  %v459 = vpop.f32.mrf.mxu0
  %v460 = vadd.f32 0.0, %v459
  %v461 = vpop.f32.mrf.mxu0
  %462 = vdwg.mxu0
  %463 = vmatpush.bf16.msra.mxu0 %v369
  %464 = vmatpush.bf16.msra.mxu0 %v368
  %465 = vmatpush.bf16.msra.mxu0 %v367
  %466 = vmatpush.bf16.msra.mxu0 %v366
  %467 = vmatpush.bf16.msra.mxu0 %v365
  %468 = vmatpush.bf16.msra.mxu0 %v364
  %469 = vmatpush.bf16.msra.mxu0 %v363
  %470 = vmatpush.bf16.msra.mxu0 %v362
  %471 = vmatmul.bf16.gmra.mxu0 %v157
  %v472 = vpop.f32.mrf.mxu0
  %v473 = vadd.f32 %v460, %v472
  %v474 = vpop.f32.mrf.mxu0
  %475 = vdwg.mxu0
  %476 = vmatpush.bf16.msra.mxu0 %v377
  %477 = vmatpush.bf16.msra.mxu0 %v376
  %478 = vmatpush.bf16.msra.mxu0 %v375
  %479 = vmatpush.bf16.msra.mxu0 %v374
  %480 = vmatpush.bf16.msra.mxu0 %v373
  %481 = vmatpush.bf16.msra.mxu0 %v372
  %482 = vmatpush.bf16.msra.mxu0 %v371
  %483 = vmatpush.bf16.msra.mxu0 %v370
  %484 = vmatmul.bf16.gmra.mxu0 %v158
  %v485 = vpop.f32.mrf.mxu0
  %v486 = vadd.f32 %v473, %v485
  %v487 = vpop.f32.mrf.mxu0
  %488 = vdwg.mxu0
  %489 = vmatpush.bf16.msra.mxu0 %v385
  %490 = vmatpush.bf16.msra.mxu0 %v384
  %491 = vmatpush.bf16.msra.mxu0 %v383
  %492 = vmatpush.bf16.msra.mxu0 %v382
  %493 = vmatpush.bf16.msra.mxu0 %v381
  %494 = vmatpush.bf16.msra.mxu0 %v380
  %495 = vmatpush.bf16.msra.mxu0 %v379
  %496 = vmatpush.bf16.msra.mxu0 %v378
  %497 = vmatmul.bf16.gmra.mxu0 %v159
  %v498 = vpop.f32.mrf.mxu0
  %v499 = vadd.f32 %v486, %v498
  %v500 = vpop.f32.mrf.mxu0
  %501 = vdwg.mxu0
  %502 = vmatpush.bf16.msra.mxu0 %v393
  %503 = vmatpush.bf16.msra.mxu0 %v392
  %504 = vmatpush.bf16.msra.mxu0 %v391
  %505 = vmatpush.bf16.msra.mxu0 %v390
  %506 = vmatpush.bf16.msra.mxu0 %v389
  %507 = vmatpush.bf16.msra.mxu0 %v388
  %508 = vmatpush.bf16.msra.mxu0 %v387
  %509 = vmatpush.bf16.msra.mxu0 %v386
  %510 = vmatmul.bf16.gmra.mxu0 %v160
  %v511 = vpop.f32.mrf.mxu0
  %v512 = vadd.f32 %v499, %v511
  %v513 = vpop.f32.mrf.mxu0
  %514 = vdwg.mxu0
  %515 = vmatpush.bf16.msra.mxu0 %v401
  %516 = vmatpush.bf16.msra.mxu0 %v400
  %517 = vmatpush.bf16.msra.mxu0 %v399
  %518 = vmatpush.bf16.msra.mxu0 %v398
  %519 = vmatpush.bf16.msra.mxu0 %v397
  %520 = vmatpush.bf16.msra.mxu0 %v396
  %521 = vmatpush.bf16.msra.mxu0 %v395
  %522 = vmatpush.bf16.msra.mxu0 %v394
  %523 = vmatmul.bf16.gmra.mxu0 %v161
  %v524 = vpop.f32.mrf.mxu0
  %v525 = vadd.f32 %v512, %v524
  %v526 = vpop.f32.mrf.mxu0
  %527 = vdwg.mxu0
  %v528 = vld [vmem:[%s1] sm:$0xff]
  %v529 = vld [vmem:[%s1 + $0x8] sm:$0x3]
  %v530 = vld [vmem:[%s2] sm:$0xff]
  %v531 = vld [vmem:[%s2 + $0x8] sm:$0x3]
  %vm532 = vcmask 64512
  %v534 = vsel %vm532, %v528, 0
  %v537 = vsel %vm532, %v529, 0
  %539 = vmatpush.msra.mxu0 0.0
  %540 = vmatpush.msra.mxu0 0.0
  %541 = vmatpush.msra.mxu0 0.0
  %542 = vmatpush.msra.mxu0 0.0
  %543 = vmatpush.msra.mxu0 0.0
  %544 = vmatpush.msra.mxu0 0.0
  %545 = vmatpush.msra.mxu0 0.0
  %546 = vmatpush.msra.mxu0 0.0
  %547 = vmatpush.msra.mxu0 0.0
  %548 = vmatpush.msra.mxu0 0.0
  %549 = vmatpush.msra.mxu0 0.0
  %550 = vmatpush.msra.mxu0 0.0
  %551 = vmatpush.msra.mxu0 0.0
  %552 = vmatpush.msra.mxu0 0.0
  %553 = vmatpush.msra.mxu0 0.0
  %554 = vmatpush.msra.mxu0 %v525
  %555 = vmatmul.f32.gmra.mxu0 %v534
  %v556 = vpop.f32.mrf.mxu0
  %v557 = vadd.f32 %v530, %v556
  %558 = vmatmul.f32.gmra.mxu0 %v537
  %v559 = vpop.f32.mrf.mxu0
  %v560 = vadd.f32 %v531, %v559
  %561 = vdwg.mxu0
  %v562 = vlaneseq
  %v563 = vshrl.u32 %v562, 7
  %v564 = vadd.s32 %v563, 8
  %v565 = vlaneseq
  %v566 = vand.u32 %v565, 127
  %vm567 = vcmp.ge.s32.totalorder %v563, 0
  %vm568 = vcmp.ge.s32.totalorder %v564, 0
  %vm569 = vcmp.lt.s32.totalorder %v563, 5
  %vm570 = vcmp.lt.s32.totalorder %v564, 5
  %vm571 = vmand %vm567, %vm569
  %vm572 = vmand %vm568, %vm570
  %vm573 = vcmp.ge.s32.totalorder %v566, 0
  %vm574 = vcmp.lt.s32.totalorder %v566, 5
  %vm575 = vmand %vm573, %vm574
  %vm576 = vmand %vm571, %vm575
  %vm577 = vmand %vm572, %vm575
  %vm578 = vcmp.ge.s32.totalorder %v563, 5
  %vm579 = vcmp.ge.s32.totalorder %v564, 5
  %vm580 = vcmp.lt.s32.totalorder %v563, 10
  %vm581 = vcmp.lt.s32.totalorder %v564, 10
  %vm582 = vmand %vm578, %vm580
  %vm583 = vmand %vm579, %vm581
  %vm584 = vcmp.ge.s32.totalorder %v566, 5
  %vm585 = vcmp.lt.s32.totalorder %v566, 10
  %vm586 = vmand %vm584, %vm585
  %vm587 = vmand %vm582, %vm586
  %vm588 = vmand %vm583, %vm586
  %vm589 = vmor %vm576, %vm587
  %vm590 = vmor %vm577, %vm588
  %v591 = vsel %vm589, 0.0, -1e+30
  %v592 = vsel %vm590, 0.0, -1e+30
  %v593 = vld [vmem:[%s8] sm:$0xff]
  %vm594 = vcmask 261120
  %v595 = vsel %vm594, %v557, 0.0
  %596 = vadd.xlane.f32.xlu0 %v595
  %v597 = vpop.xlane.xlu0 %596
  %vm598 = vcmask 254976
  %v599 = vsel %vm598, %v560, 0.0
  %600 = vadd.xlane.f32.xlu0 %v599
  %v601 = vpop.xlane.xlu0 %600
  %v602 = vrcp.pop 32.0
  %v603 = vmul.f32 32.0, %v602
  %v604 = vsub.f32 1.0, %v603
  %v605 = vmul.f32 %v602, %v604
  %v606 = vadd.f32 %v602, %v605
  %vm607 = vweird.f32 %v602
  %v608 = vsel %vm607, %v602, %v606
  %v609 = vmul.f32 %v597, %v608
  %v610 = vmul.f32 %v601, %v608
  %v611 = vsub.f32 %v557, %v609
  %v612 = vsub.f32 %v560, %v610
  %v613 = vmul.f32 %v611, %v611
  %v614 = vmul.f32 %v612, %v612
  %v615 = vsel %vm594, %v613, 0.0
  %616 = vadd.xlane.f32.xlu0 %v615
  %v617 = vpop.xlane.xlu0 %616
  %v618 = vsel %vm598, %v614, 0.0
  %619 = vadd.xlane.f32.xlu0 %v618
  %v620 = vpop.xlane.xlu0 %619
  %v621 = vmul.f32 %v617, %v608
  %v622 = vmul.f32 %v620, %v608
  %v623 = vadd.f32 %v621, 1e-06
  %v624 = vadd.f32 %v622, 1e-06
  %v625 = vrsqrt.pop %v623
  %v626 = vmul.f32 %v625, %v623
  %v627 = vmul.f32 %v626, %v625
  %v628 = vmul.f32 0.5, %v627
  %v629 = vsub.f32 1.5, %v628
  %v630 = vmul.f32 %v625, %v629
  %vm631 = vweird.f32 %v623
  %vm632 = vweird.f32 %v625
  %vm633 = vmor %vm631, %vm632
  %v634 = vsel %vm633, %v625, %v630
  %v635 = vrsqrt.pop %v624
  %v636 = vmul.f32 %v635, %v624
  %v637 = vmul.f32 %v636, %v635
  %v638 = vmul.f32 0.5, %v637
  %v639 = vsub.f32 1.5, %v638
  %v640 = vmul.f32 %v635, %v639
  %vm641 = vweird.f32 %v624
  %vm642 = vweird.f32 %v635
  %vm643 = vmor %vm641, %vm642
  %v644 = vsel %vm643, %v635, %v640
  %v645 = vmul.f32 %v611, %v634
  %v646 = vmul.f32 %v612, %v644
  %v647 = vperm.slane %v593, 0
  %v648 = vmul.f32 %v645, %v647
  %v649 = vmul.f32 %v646, %v647
  %v650 = vperm.slane %v593, 1
  %v651 = vadd.f32 %v648, %v650
  %v652 = vadd.f32 %v649, %v650
  %v653 = vld [vmem:[%s4] sm:$0xf]
  %v654 = vld [vmem:[%s4 + $0x4] sm:$0xf]
  %v655 = vld [vmem:[%s4 + $0x8] sm:$0xf]
  %v656 = vld [vmem:[%s4 + $0xc] sm:$0xf]
  %v657 = vpack.c.bf16 %v652, %v651
  %v658 = vperm.slane %v593, 6
  %v663 = vunpack.c.l.b16 %v653
  %v664 = vunpack.c.l.b16 %v654
  %v665 = vunpack.c.l.b16 %v655
  %v666 = vunpack.c.l.b16 %v656
  %v667 = vpack.c.b16 %v664, %v663
  %v668 = vpack.c.b16 %v666, %v665
  %v672 = vsel %vm594, %v657, 0
  %674 = vmatpush.bf16.msra.mxu0 0
  %675 = vmatpush.bf16.msra.mxu0 0
  %676 = vmatpush.bf16.msra.mxu0 0
  %677 = vmatpush.bf16.msra.mxu0 0
  %678 = vmatpush.bf16.msra.mxu0 0
  %679 = vmatpush.bf16.msra.mxu0 0
  %680 = vmatpush.bf16.msra.mxu0 %v668
  %681 = vmatpush.bf16.msra.mxu0 %v667
  %682 = vmatmul.bf16.gmra.mxu0 %v672
  %v683 = vpop.f32.mrf.mxu0
  %v684 = vadd.f32 %v658, %v683
  %v685 = vpop.f32.mrf.mxu0
  %v686 = vadd.f32 %v658, %v685
  %687 = vdwg.mxu0
  %v688 = vpack.c.bf16 %v686, %v684
  %690 = vrot.lane.b32.xlu0 %v688, 96
  %v691 = vpop.permute.xlu0 %690
  %v693 = vsel %vm532, %v688, 0
  %v696 = vsel %vm532, %v691, 0
  %698 = vmatpush.bf16.xpose.msra.mxu0 0
  %699 = vmatpush.bf16.xpose.msra.mxu0 0
  %700 = vmatpush.bf16.xpose.msra.mxu0 0
  %701 = vmatpush.bf16.xpose.msra.mxu0 0
  %702 = vmatpush.bf16.xpose.msra.mxu0 0
  %703 = vmatpush.bf16.xpose.msra.mxu0 0
  %704 = vmatpush.bf16.xpose.msra.mxu0 0
  %705 = vmatpush.bf16.xpose.msra.mxu0 %v696
  %706 = vmatmul.bf16.gmra.mxu0 %v693
  %v707 = vpop.f32.mrf.mxu0
  %v708 = vadd.f32 %v591, %v707
  %v709 = vpop.f32.mrf.mxu0
  %v710 = vadd.f32 %v592, %v709
  %711 = vdwg.mxu0
  %vm712 = vcmask 80896
  %v713 = vsel %vm712, %v708, -inf
  %714 = vmax.xlane.f32.xlu0 %v713
  %v715 = vpop.xlane.xlu0 %714
  %vm716 = vcmask 74752
  %v717 = vsel %vm716, %v710, -inf
  %718 = vmax.xlane.f32.xlu0 %v717
  %v719 = vpop.xlane.xlu0 %718
  %v720 = vsub.f32 %v708, %v715
  %v721 = vsub.f32 %v710, %v719
  %v722 = vmul.f32 %v720, 1.442695
  %v723 = vpow.pop %v722
  %v724 = vmul.f32 %v721, 1.442695
  %v725 = vpow.pop %v724
  %v726 = vsel %vm712, %v723, 0.0
  %727 = vadd.xlane.f32.xlu0 %v726
  %v728 = vpop.xlane.xlu0 %727
  %v729 = vsel %vm716, %v725, 0.0
  %730 = vadd.xlane.f32.xlu0 %v729
  %v731 = vpop.xlane.xlu0 %730
  %v732 = vrcp.pop %v728
  %v733 = vrcp.pop %v731
  %v734 = vmul.f32 %v723, %v732
  %v735 = vmul.f32 %v725, %v733
  %v736 = vpack.c.bf16 %v735, %v734
  %737 = vrot.lane.b32.xlu0 %v688, 64
  %v738 = vpop.permute.xlu0 %737
  %v740 = vsel %vm712, %v736, 0
  %vm742 = vcmask 1044480
  %v744 = vsel %vm742, %v738, 0
  %746 = vmatpush.bf16.msra.mxu0 0
  %747 = vmatpush.bf16.msra.mxu0 0
  %748 = vmatpush.bf16.msra.mxu0 0
  %749 = vmatpush.bf16.msra.mxu0 0
  %750 = vmatpush.bf16.msra.mxu0 0
  %751 = vmatpush.bf16.msra.mxu0 0
  %752 = vmatpush.bf16.msra.mxu0 0
  %753 = vmatpush.bf16.msra.mxu0 %v744
  %754 = vmatmul.bf16.gmra.mxu0 %v740
  %v755 = vpop.f32.mrf.mxu0
  %v756 = vadd.f32 0.0, %v755
  %v757 = vpop.f32.mrf.mxu0
  %v758 = vadd.f32 0.0, %v757
  %759 = vdwg.mxu0
  %760 = vrot.lane.b32.xlu0 %v688, 120
  %v761 = vpop.permute.xlu0 %760
  %762 = vrot.lane.b32.xlu0 %v688, 88
  %v763 = vpop.permute.xlu0 %762
  %v765 = vsel %vm532, %v761, 0
  %v768 = vsel %vm532, %v763, 0
  %770 = vmatpush.bf16.xpose.msra.mxu0 0
  %771 = vmatpush.bf16.xpose.msra.mxu0 0
  %772 = vmatpush.bf16.xpose.msra.mxu0 0
  %773 = vmatpush.bf16.xpose.msra.mxu0 0
  %774 = vmatpush.bf16.xpose.msra.mxu0 0
  %775 = vmatpush.bf16.xpose.msra.mxu0 0
  %776 = vmatpush.bf16.xpose.msra.mxu0 0
  %777 = vmatpush.bf16.xpose.msra.mxu0 %v768
  %778 = vmatmul.bf16.gmra.mxu0 %v765
  %v779 = vpop.f32.mrf.mxu0
  %v780 = vadd.f32 %v591, %v779
  %v781 = vpop.f32.mrf.mxu0
  %v782 = vadd.f32 %v592, %v781
  %783 = vdwg.mxu0
  %v784 = vsel %vm712, %v780, -inf
  %785 = vmax.xlane.f32.xlu0 %v784
  %v786 = vpop.xlane.xlu0 %785
  %v787 = vsel %vm716, %v782, -inf
  %788 = vmax.xlane.f32.xlu0 %v787
  %v789 = vpop.xlane.xlu0 %788
  %v790 = vsub.f32 %v780, %v786
  %v791 = vsub.f32 %v782, %v789
  %v792 = vmul.f32 %v790, 1.442695
  %v793 = vpow.pop %v792
  %v794 = vmul.f32 %v791, 1.442695
  %v795 = vpow.pop %v794
  %v796 = vsel %vm712, %v793, 0.0
  %797 = vadd.xlane.f32.xlu0 %v796
  %v798 = vpop.xlane.xlu0 %797
  %v799 = vsel %vm716, %v795, 0.0
  %800 = vadd.xlane.f32.xlu0 %v799
  %v801 = vpop.xlane.xlu0 %800
  %v802 = vrcp.pop %v798
  %v803 = vrcp.pop %v801
  %v804 = vmul.f32 %v793, %v802
  %v805 = vmul.f32 %v795, %v803
  %v806 = vpack.c.bf16 %v805, %v804
  %807 = vrot.lane.b32.xlu0 %v688, 56
  %v808 = vpop.permute.xlu0 %807
  %v810 = vsel %vm712, %v806, 0
  %v813 = vsel %vm742, %v808, 0
  %815 = vmatpush.bf16.msra.mxu0 0
  %816 = vmatpush.bf16.msra.mxu0 0
  %817 = vmatpush.bf16.msra.mxu0 0
  %818 = vmatpush.bf16.msra.mxu0 0
  %819 = vmatpush.bf16.msra.mxu0 0
  %820 = vmatpush.bf16.msra.mxu0 0
  %821 = vmatpush.bf16.msra.mxu0 0
  %822 = vmatpush.bf16.msra.mxu0 %v813
  %823 = vmatmul.bf16.gmra.mxu0 %v810
  %v824 = vpop.f32.mrf.mxu0
  %v825 = vadd.f32 0.0, %v824
  %v826 = vpop.f32.mrf.mxu0
  %v827 = vadd.f32 0.0, %v826
  %828 = vdwg.mxu0
  %829 = vrot.lane.b32.xlu0 %v688, 112
  %v830 = vpop.permute.xlu0 %829
  %831 = vrot.lane.b32.xlu0 %v688, 80
  %v832 = vpop.permute.xlu0 %831
  %v834 = vsel %vm532, %v830, 0
  %v837 = vsel %vm532, %v832, 0
  %839 = vmatpush.bf16.xpose.msra.mxu0 0
  %840 = vmatpush.bf16.xpose.msra.mxu0 0
  %841 = vmatpush.bf16.xpose.msra.mxu0 0
  %842 = vmatpush.bf16.xpose.msra.mxu0 0
  %843 = vmatpush.bf16.xpose.msra.mxu0 0
  %844 = vmatpush.bf16.xpose.msra.mxu0 0
  %845 = vmatpush.bf16.xpose.msra.mxu0 0
  %846 = vmatpush.bf16.xpose.msra.mxu0 %v837
  %847 = vmatmul.bf16.gmra.mxu0 %v834
  %v848 = vpop.f32.mrf.mxu0
  %v849 = vadd.f32 %v591, %v848
  %v850 = vpop.f32.mrf.mxu0
  %v851 = vadd.f32 %v592, %v850
  %852 = vdwg.mxu0
  %v853 = vsel %vm712, %v849, -inf
  %854 = vmax.xlane.f32.xlu0 %v853
  %v855 = vpop.xlane.xlu0 %854
  %v856 = vsel %vm716, %v851, -inf
  %857 = vmax.xlane.f32.xlu0 %v856
  %v858 = vpop.xlane.xlu0 %857
  %v859 = vsub.f32 %v849, %v855
  %v860 = vsub.f32 %v851, %v858
  %v861 = vmul.f32 %v859, 1.442695
  %v862 = vpow.pop %v861
  %v863 = vmul.f32 %v860, 1.442695
  %v864 = vpow.pop %v863
  %v865 = vsel %vm712, %v862, 0.0
  %866 = vadd.xlane.f32.xlu0 %v865
  %v867 = vpop.xlane.xlu0 %866
  %v868 = vsel %vm716, %v864, 0.0
  %869 = vadd.xlane.f32.xlu0 %v868
  %v870 = vpop.xlane.xlu0 %869
  %v871 = vrcp.pop %v867
  %v872 = vrcp.pop %v870
  %v873 = vmul.f32 %v862, %v871
  %v874 = vmul.f32 %v864, %v872
  %v875 = vpack.c.bf16 %v874, %v873
  %876 = vrot.lane.b32.xlu0 %v688, 48
  %v877 = vpop.permute.xlu0 %876
  %v879 = vsel %vm712, %v875, 0
  %v882 = vsel %vm742, %v877, 0
  %884 = vmatpush.bf16.msra.mxu0 0
  %885 = vmatpush.bf16.msra.mxu0 0
  %886 = vmatpush.bf16.msra.mxu0 0
  %887 = vmatpush.bf16.msra.mxu0 0
  %888 = vmatpush.bf16.msra.mxu0 0
  %889 = vmatpush.bf16.msra.mxu0 0
  %890 = vmatpush.bf16.msra.mxu0 0
  %891 = vmatpush.bf16.msra.mxu0 %v882
  %892 = vmatmul.bf16.gmra.mxu0 %v879
  %v893 = vpop.f32.mrf.mxu0
  %v894 = vadd.f32 0.0, %v893
  %v895 = vpop.f32.mrf.mxu0
  %v896 = vadd.f32 0.0, %v895
  %897 = vdwg.mxu0
  %898 = vrot.lane.b32.xlu0 %v688, 104
  %v899 = vpop.permute.xlu0 %898
  %900 = vrot.lane.b32.xlu0 %v688, 72
  %v901 = vpop.permute.xlu0 %900
  %v903 = vsel %vm532, %v899, 0
  %v906 = vsel %vm532, %v901, 0
  %908 = vmatpush.bf16.xpose.msra.mxu0 0
  %909 = vmatpush.bf16.xpose.msra.mxu0 0
  %910 = vmatpush.bf16.xpose.msra.mxu0 0
  %911 = vmatpush.bf16.xpose.msra.mxu0 0
  %912 = vmatpush.bf16.xpose.msra.mxu0 0
  %913 = vmatpush.bf16.xpose.msra.mxu0 0
  %914 = vmatpush.bf16.xpose.msra.mxu0 0
  %915 = vmatpush.bf16.xpose.msra.mxu0 %v906
  %916 = vmatmul.bf16.gmra.mxu0 %v903
  %v917 = vpop.f32.mrf.mxu0
  %v918 = vadd.f32 %v591, %v917
  %v919 = vpop.f32.mrf.mxu0
  %v920 = vadd.f32 %v592, %v919
  %921 = vdwg.mxu0
  %v922 = vsel %vm712, %v918, -inf
  %923 = vmax.xlane.f32.xlu0 %v922
  %v924 = vpop.xlane.xlu0 %923
  %v925 = vsel %vm716, %v920, -inf
  %926 = vmax.xlane.f32.xlu0 %v925
  %v927 = vpop.xlane.xlu0 %926
  %v928 = vsub.f32 %v918, %v924
  %v929 = vsub.f32 %v920, %v927
  %v930 = vmul.f32 %v928, 1.442695
  %v931 = vpow.pop %v930
  %v932 = vmul.f32 %v929, 1.442695
  %v933 = vpow.pop %v932
  %v934 = vsel %vm712, %v931, 0.0
  %935 = vadd.xlane.f32.xlu0 %v934
  %v936 = vpop.xlane.xlu0 %935
  %v937 = vsel %vm716, %v933, 0.0
  %938 = vadd.xlane.f32.xlu0 %v937
  %v939 = vpop.xlane.xlu0 %938
  %v940 = vrcp.pop %v936
  %v941 = vrcp.pop %v939
  %v942 = vmul.f32 %v931, %v940
  %v943 = vmul.f32 %v933, %v941
  %v944 = vpack.c.bf16 %v943, %v942
  %945 = vrot.lane.b32.xlu0 %v688, 40
  %v946 = vpop.permute.xlu0 %945
  %v948 = vsel %vm712, %v944, 0
  %v951 = vsel %vm742, %v946, 0
  %953 = vmatpush.bf16.msra.mxu0 0
  %954 = vmatpush.bf16.msra.mxu0 0
  %955 = vmatpush.bf16.msra.mxu0 0
  %956 = vmatpush.bf16.msra.mxu0 0
  %957 = vmatpush.bf16.msra.mxu0 0
  %958 = vmatpush.bf16.msra.mxu0 0
  %959 = vmatpush.bf16.msra.mxu0 0
  %960 = vmatpush.bf16.msra.mxu0 %v951
  %961 = vmatmul.bf16.gmra.mxu0 %v948
  %v962 = vpop.f32.mrf.mxu0
  %v963 = vadd.f32 0.0, %v962
  %v964 = vpop.f32.mrf.mxu0
  %v965 = vadd.f32 0.0, %v964
  %966 = vdwg.mxu0
  %969 = vrot.lane.b32.xlu0 %v825, 8
  %v970 = vpop.permute.xlu0 %969
  %971 = vrot.lane.b32.xlu0 %v827, 8
  %v972 = vpop.permute.xlu0 %971
  %977 = vrot.lane.b32.xlu0 %v894, 16
  %v978 = vpop.permute.xlu0 %977
  %979 = vrot.lane.b32.xlu0 %v896, 16
  %v980 = vpop.permute.xlu0 %979
  %985 = vrot.lane.b32.xlu0 %v963, 24
  %v986 = vpop.permute.xlu0 %985
  %987 = vrot.lane.b32.xlu0 %v965, 24
  %v988 = vpop.permute.xlu0 %987
  %v991 = vsel %vm532, %v756, %v970
  %v992 = vsel %vm532, %v758, %v972
  %vm993 = vcmask 130048
  %v994 = vsel %vm993, %v991, %v978
  %v995 = vsel %vm993, %v992, %v980
  %vm996 = vcmask 195584
  %v997 = vsel %vm996, %v994, %v986
  %v998 = vsel %vm996, %v995, %v988
  %v999 = vld [vmem:[%s5] sm:$0xf]
  %v1000 = vld [vmem:[%s5 + $0x4] sm:$0xf]
  %v1001 = vld [vmem:[%s5 + $0x8] sm:$0xf]
  %v1002 = vld [vmem:[%s5 + $0xc] sm:$0xf]
  %v1003 = vpack.c.bf16 %v998, %v997
  %v1008 = vunpack.c.l.b16 %v999
  %v1009 = vunpack.c.l.b16 %v1000
  %v1010 = vunpack.c.l.b16 %v1001
  %v1011 = vunpack.c.l.b16 %v1002
  %v1012 = vpack.c.b16 %v1009, %v1008
  %v1013 = vpack.c.b16 %v1011, %v1010
  %v1017 = vsel %vm594, %v1003, 0
  %1019 = vmatpush.bf16.msra.mxu0 0
  %1020 = vmatpush.bf16.msra.mxu0 0
  %1021 = vmatpush.bf16.msra.mxu0 0
  %1022 = vmatpush.bf16.msra.mxu0 0
  %1023 = vmatpush.bf16.msra.mxu0 0
  %1024 = vmatpush.bf16.msra.mxu0 0
  %1025 = vmatpush.bf16.msra.mxu0 %v1013
  %1026 = vmatpush.bf16.msra.mxu0 %v1012
  %1027 = vmatmul.bf16.gmra.mxu0 %v1017
  %v1028 = vpop.f32.mrf.mxu0
  %v1029 = vadd.f32 0.0, %v1028
  %v1030 = vpop.f32.mrf.mxu0
  %v1031 = vadd.f32 0.0, %v1030
  %1032 = vdwg.mxu0
  %v1033 = vadd.f32 %v557, %v1029
  %v1034 = vadd.f32 %v560, %v1031
  %v1035 = vperm.slane %v593, 4
  %v1036 = vadd.f32 %v1033, %v1035
  %v1037 = vadd.f32 %v1034, %v1035
  %v1038 = vsel %vm594, %v1036, 0.0
  %1039 = vadd.xlane.f32.xlu0 %v1038
  %v1040 = vpop.xlane.xlu0 %1039
  %v1041 = vsel %vm598, %v1037, 0.0
  %1042 = vadd.xlane.f32.xlu0 %v1041
  %v1043 = vpop.xlane.xlu0 %1042
  %v1044 = vmul.f32 %v1040, %v608
  %v1045 = vmul.f32 %v1043, %v608
  %v1046 = vsub.f32 %v1036, %v1044
  %v1047 = vsub.f32 %v1037, %v1045
  %v1048 = vmul.f32 %v1046, %v1046
  %v1049 = vmul.f32 %v1047, %v1047
  %v1050 = vsel %vm594, %v1048, 0.0
  %1051 = vadd.xlane.f32.xlu0 %v1050
  %v1052 = vpop.xlane.xlu0 %1051
  %v1053 = vsel %vm598, %v1049, 0.0
  %1054 = vadd.xlane.f32.xlu0 %v1053
  %v1055 = vpop.xlane.xlu0 %1054
  %v1056 = vmul.f32 %v1052, %v608
  %v1057 = vmul.f32 %v1055, %v608
  %v1058 = vadd.f32 %v1056, 1e-06
  %v1059 = vadd.f32 %v1057, 1e-06
  %v1060 = vrsqrt.pop %v1058
  %v1061 = vmul.f32 %v1060, %v1058
  %v1062 = vmul.f32 %v1061, %v1060
  %v1063 = vmul.f32 0.5, %v1062
  %v1064 = vsub.f32 1.5, %v1063
  %v1065 = vmul.f32 %v1060, %v1064
  %vm1066 = vweird.f32 %v1058
  %vm1067 = vweird.f32 %v1060
  %vm1068 = vmor %vm1066, %vm1067
  %v1069 = vsel %vm1068, %v1060, %v1065
  %v1070 = vrsqrt.pop %v1059
  %v1071 = vmul.f32 %v1070, %v1059
  %v1072 = vmul.f32 %v1071, %v1070
  %v1073 = vmul.f32 0.5, %v1072
  %v1074 = vsub.f32 1.5, %v1073
  %v1075 = vmul.f32 %v1070, %v1074
  %vm1076 = vweird.f32 %v1059
  %vm1077 = vweird.f32 %v1070
  %vm1078 = vmor %vm1076, %vm1077
  %v1079 = vsel %vm1078, %v1070, %v1075
  %v1080 = vmul.f32 %v1046, %v1069
  %v1081 = vmul.f32 %v1047, %v1079
  %v1082 = vperm.slane %v593, 2
  %v1083 = vmul.f32 %v1080, %v1082
  %v1084 = vmul.f32 %v1081, %v1082
  %v1085 = vperm.slane %v593, 3
  %v1086 = vadd.f32 %v1083, %v1085
  %v1087 = vadd.f32 %v1084, %v1085
  %v1088 = vld [vmem:[%s6] sm:$0xf]
  %v1089 = vld [vmem:[%s6 + $0x4] sm:$0xf]
  %v1090 = vld [vmem:[%s6 + $0x8] sm:$0xf]
  %v1091 = vld [vmem:[%s6 + $0xc] sm:$0xf]
  %v1092 = vpack.c.bf16 %v1087, %v1086
  %v1093 = vperm.slane %v593, 7
  %v1098 = vunpack.c.l.b16 %v1088
  %v1099 = vunpack.c.l.b16 %v1089
  %v1100 = vunpack.c.l.b16 %v1090
  %v1101 = vunpack.c.l.b16 %v1091
  %v1102 = vpack.c.b16 %v1099, %v1098
  %v1103 = vpack.c.b16 %v1101, %v1100
  %v1107 = vsel %vm594, %v1092, 0
  %1109 = vmatpush.bf16.msra.mxu0 0
  %1110 = vmatpush.bf16.msra.mxu0 0
  %1111 = vmatpush.bf16.msra.mxu0 0
  %1112 = vmatpush.bf16.msra.mxu0 0
  %1113 = vmatpush.bf16.msra.mxu0 0
  %1114 = vmatpush.bf16.msra.mxu0 0
  %1115 = vmatpush.bf16.msra.mxu0 %v1103
  %1116 = vmatpush.bf16.msra.mxu0 %v1102
  %1117 = vmatmul.bf16.gmra.mxu0 %v1107
  %v1118 = vpop.f32.mrf.mxu0
  %v1119 = vadd.f32 %v1093, %v1118
  %v1120 = vpop.f32.mrf.mxu0
  %v1121 = vadd.f32 %v1093, %v1120
  %1122 = vdwg.mxu0
  %v1123 = vmul.f32 %v1119, %v1119
  %v1124 = vmul.f32 %v1121, %v1121
  %v1125 = vmul.f32 %v1119, %v1123
  %v1126 = vmul.f32 %v1121, %v1124
  %v1127 = vmul.f32 %v1125, 0.044715
  %v1128 = vmul.f32 %v1126, 0.044715
  %v1129 = vadd.f32 %v1119, %v1127
  %v1130 = vadd.f32 %v1121, %v1128
  %v1131 = vmul.f32 %v1129, 0.7978846
  %v1132 = vmul.f32 %v1130, 0.7978846
  %v1133 = vtanh.pop %v1131
  %v1134 = vtanh.pop %v1132
  %v1135 = vadd.f32 %v1133, 1.0
  %v1136 = vadd.f32 %v1134, 1.0
  %v1137 = vmul.f32 %v1135, 0.5
  %v1138 = vmul.f32 %v1136, 0.5
  %v1139 = vmul.f32 %v1119, %v1137
  %v1140 = vmul.f32 %v1121, %v1138
  %v1141 = vld [vmem:[%s7] sm:$0xf]
  %v1142 = vld [vmem:[%s7 + $0x4] sm:$0xf]
  %v1143 = vld [vmem:[%s7 + $0x8] sm:$0xf]
  %v1144 = vld [vmem:[%s7 + $0xc] sm:$0xf]
  %v1145 = vld [vmem:[%s7 + $0x10] sm:$0xf]
  %v1146 = vld [vmem:[%s7 + $0x14] sm:$0xf]
  %v1147 = vld [vmem:[%s7 + $0x18] sm:$0xf]
  %v1148 = vld [vmem:[%s7 + $0x1c] sm:$0xf]
  %v1149 = vld [vmem:[%s7 + $0x20] sm:$0xf]
  %v1150 = vld [vmem:[%s7 + $0x24] sm:$0xf]
  %v1151 = vld [vmem:[%s7 + $0x28] sm:$0xf]
  %v1152 = vld [vmem:[%s7 + $0x2c] sm:$0xf]
  %v1153 = vld [vmem:[%s7 + $0x30] sm:$0xf]
  %v1154 = vld [vmem:[%s7 + $0x34] sm:$0xf]
  %v1155 = vld [vmem:[%s7 + $0x38] sm:$0xf]
  %v1156 = vld [vmem:[%s7 + $0x3c] sm:$0xf]
  %v1157 = vpack.c.bf16 %v1140, %v1139
  %v1174 = vunpack.c.l.b16 %v1141
  %v1175 = vunpack.c.l.b16 %v1142
  %v1176 = vunpack.c.l.b16 %v1143
  %v1177 = vunpack.c.l.b16 %v1144
  %v1178 = vunpack.c.l.b16 %v1145
  %v1179 = vunpack.c.l.b16 %v1146
  %v1180 = vunpack.c.l.b16 %v1147
  %v1181 = vunpack.c.l.b16 %v1148
  %v1182 = vunpack.c.l.b16 %v1149
  %v1183 = vunpack.c.l.b16 %v1150
  %v1184 = vunpack.c.l.b16 %v1151
  %v1185 = vunpack.c.l.b16 %v1152
  %v1186 = vunpack.c.l.b16 %v1153
  %v1187 = vunpack.c.l.b16 %v1154
  %v1188 = vunpack.c.l.b16 %v1155
  %v1189 = vunpack.c.l.b16 %v1156
  %v1190 = vpack.c.b16 %v1175, %v1174
  %v1191 = vpack.c.b16 %v1177, %v1176
  %v1192 = vpack.c.b16 %v1179, %v1178
  %v1193 = vpack.c.b16 %v1181, %v1180
  %v1194 = vpack.c.b16 %v1183, %v1182
  %v1195 = vpack.c.b16 %v1185, %v1184
  %v1196 = vpack.c.b16 %v1187, %v1186
  %v1197 = vpack.c.b16 %v1189, %v1188
  %1206 = vmatpush.bf16.msra.mxu0 %v1197
  %1207 = vmatpush.bf16.msra.mxu0 %v1196
  %1208 = vmatpush.bf16.msra.mxu0 %v1195
  %1209 = vmatpush.bf16.msra.mxu0 %v1194
  %1210 = vmatpush.bf16.msra.mxu0 %v1193
  %1211 = vmatpush.bf16.msra.mxu0 %v1192
  %1212 = vmatpush.bf16.msra.mxu0 %v1191
  %1213 = vmatpush.bf16.msra.mxu0 %v1190
  %1214 = vmatmul.bf16.gmra.mxu0 %v1157
  %v1215 = vpop.f32.mrf.mxu0
  %v1216 = vadd.f32 0.0, %v1215
  %v1217 = vpop.f32.mrf.mxu0
  %v1218 = vadd.f32 0.0, %v1217
  %1219 = vdwg.mxu0
  %v1220 = vadd.f32 %v1036, %v1216
  %v1221 = vadd.f32 %v1037, %v1218
  %v1222 = vperm.slane %v593, 5
  %v1223 = vadd.f32 %v1220, %v1222
  %v1224 = vadd.f32 %v1221, %v1222
  %s1225 = scalar_lea.vmem %s8, 8
  %v1226 = vld [vmem:[%s1225] sm:$0xff]
  %v1227 = vsel %vm594, %v1223, 0.0
  %1228 = vadd.xlane.f32.xlu0 %v1227
  %v1229 = vpop.xlane.xlu0 %1228
  %v1230 = vsel %vm598, %v1224, 0.0
  %1231 = vadd.xlane.f32.xlu0 %v1230
  %v1232 = vpop.xlane.xlu0 %1231
  %v1233 = vmul.f32 %v1229, %v608
  %v1234 = vmul.f32 %v1232, %v608
  %v1235 = vsub.f32 %v1223, %v1233
  %v1236 = vsub.f32 %v1224, %v1234
  %v1237 = vmul.f32 %v1235, %v1235
  %v1238 = vmul.f32 %v1236, %v1236
  %v1239 = vsel %vm594, %v1237, 0.0
  %1240 = vadd.xlane.f32.xlu0 %v1239
  %v1241 = vpop.xlane.xlu0 %1240
  %v1242 = vsel %vm598, %v1238, 0.0
  %1243 = vadd.xlane.f32.xlu0 %v1242
  %v1244 = vpop.xlane.xlu0 %1243
  %v1245 = vmul.f32 %v1241, %v608
  %v1246 = vmul.f32 %v1244, %v608
  %v1247 = vadd.f32 %v1245, 1e-06
  %v1248 = vadd.f32 %v1246, 1e-06
  %v1249 = vrsqrt.pop %v1247
  %v1250 = vmul.f32 %v1249, %v1247
  %v1251 = vmul.f32 %v1250, %v1249
  %v1252 = vmul.f32 0.5, %v1251
  %v1253 = vsub.f32 1.5, %v1252
  %v1254 = vmul.f32 %v1249, %v1253
  %vm1255 = vweird.f32 %v1247
  %vm1256 = vweird.f32 %v1249
  %vm1257 = vmor %vm1255, %vm1256
  %v1258 = vsel %vm1257, %v1249, %v1254
  %v1259 = vrsqrt.pop %v1248
  %v1260 = vmul.f32 %v1259, %v1248
  %v1261 = vmul.f32 %v1260, %v1259
  %v1262 = vmul.f32 0.5, %v1261
  %v1263 = vsub.f32 1.5, %v1262
  %v1264 = vmul.f32 %v1259, %v1263
  %vm1265 = vweird.f32 %v1248
  %vm1266 = vweird.f32 %v1259
  %vm1267 = vmor %vm1265, %vm1266
  %v1268 = vsel %vm1267, %v1259, %v1264
  %v1269 = vmul.f32 %v1235, %v1258
  %v1270 = vmul.f32 %v1236, %v1268
  %v1271 = vperm.slane %v1226, 0
  %v1272 = vmul.f32 %v1269, %v1271
  %v1273 = vmul.f32 %v1270, %v1271
  %v1274 = vperm.slane %v1226, 1
  %v1275 = vadd.f32 %v1272, %v1274
  %v1276 = vadd.f32 %v1273, %v1274
  %s1277 = scalar_lea.vmem %s4, 16
  %v1278 = vld [vmem:[%s1277] sm:$0xf]
  %v1279 = vld [vmem:[%s1277 + $0x4] sm:$0xf]
  %v1280 = vld [vmem:[%s1277 + $0x8] sm:$0xf]
  %v1281 = vld [vmem:[%s1277 + $0xc] sm:$0xf]
  %v1282 = vpack.c.bf16 %v1276, %v1275
  %v1283 = vperm.slane %v1226, 6
  %v1288 = vunpack.c.l.b16 %v1278
  %v1289 = vunpack.c.l.b16 %v1279
  %v1290 = vunpack.c.l.b16 %v1280
  %v1291 = vunpack.c.l.b16 %v1281
  %v1292 = vpack.c.b16 %v1289, %v1288
  %v1293 = vpack.c.b16 %v1291, %v1290
  %v1297 = vsel %vm594, %v1282, 0
  %1299 = vmatpush.bf16.msra.mxu0 0
  %1300 = vmatpush.bf16.msra.mxu0 0
  %1301 = vmatpush.bf16.msra.mxu0 0
  %1302 = vmatpush.bf16.msra.mxu0 0
  %1303 = vmatpush.bf16.msra.mxu0 0
  %1304 = vmatpush.bf16.msra.mxu0 0
  %1305 = vmatpush.bf16.msra.mxu0 %v1293
  %1306 = vmatpush.bf16.msra.mxu0 %v1292
  %1307 = vmatmul.bf16.gmra.mxu0 %v1297
  %v1308 = vpop.f32.mrf.mxu0
  %v1309 = vadd.f32 %v1283, %v1308
  %v1310 = vpop.f32.mrf.mxu0
  %v1311 = vadd.f32 %v1283, %v1310
  %1312 = vdwg.mxu0
  %v1313 = vpack.c.bf16 %v1311, %v1309
  %1315 = vrot.lane.b32.xlu0 %v1313, 96
  %v1316 = vpop.permute.xlu0 %1315
  %v1318 = vsel %vm532, %v1313, 0
  %v1321 = vsel %vm532, %v1316, 0
  %1323 = vmatpush.bf16.xpose.msra.mxu0 0
  %1324 = vmatpush.bf16.xpose.msra.mxu0 0
  %1325 = vmatpush.bf16.xpose.msra.mxu0 0
  %1326 = vmatpush.bf16.xpose.msra.mxu0 0
  %1327 = vmatpush.bf16.xpose.msra.mxu0 0
  %1328 = vmatpush.bf16.xpose.msra.mxu0 0
  %1329 = vmatpush.bf16.xpose.msra.mxu0 0
  %1330 = vmatpush.bf16.xpose.msra.mxu0 %v1321
  %1331 = vmatmul.bf16.gmra.mxu0 %v1318
  %v1332 = vpop.f32.mrf.mxu0
  %v1333 = vadd.f32 %v591, %v1332
  %v1334 = vpop.f32.mrf.mxu0
  %v1335 = vadd.f32 %v592, %v1334
  %1336 = vdwg.mxu0
  %v1337 = vsel %vm712, %v1333, -inf
  %1338 = vmax.xlane.f32.xlu0 %v1337
  %v1339 = vpop.xlane.xlu0 %1338
  %v1340 = vsel %vm716, %v1335, -inf
  %1341 = vmax.xlane.f32.xlu0 %v1340
  %v1342 = vpop.xlane.xlu0 %1341
  %v1343 = vsub.f32 %v1333, %v1339
  %v1344 = vsub.f32 %v1335, %v1342
  %v1345 = vmul.f32 %v1343, 1.442695
  %v1346 = vpow.pop %v1345
  %v1347 = vmul.f32 %v1344, 1.442695
  %v1348 = vpow.pop %v1347
  %v1349 = vsel %vm712, %v1346, 0.0
  %1350 = vadd.xlane.f32.xlu0 %v1349
  %v1351 = vpop.xlane.xlu0 %1350
  %v1352 = vsel %vm716, %v1348, 0.0
  %1353 = vadd.xlane.f32.xlu0 %v1352
  %v1354 = vpop.xlane.xlu0 %1353
  %v1355 = vrcp.pop %v1351
  %v1356 = vrcp.pop %v1354
  %v1357 = vmul.f32 %v1346, %v1355
  %v1358 = vmul.f32 %v1348, %v1356
  %v1359 = vpack.c.bf16 %v1358, %v1357
  %1360 = vrot.lane.b32.xlu0 %v1313, 64
  %v1361 = vpop.permute.xlu0 %1360
  %v1363 = vsel %vm712, %v1359, 0
  %v1366 = vsel %vm742, %v1361, 0
  %1368 = vmatpush.bf16.msra.mxu0 0
  %1369 = vmatpush.bf16.msra.mxu0 0
  %1370 = vmatpush.bf16.msra.mxu0 0
  %1371 = vmatpush.bf16.msra.mxu0 0
  %1372 = vmatpush.bf16.msra.mxu0 0
  %1373 = vmatpush.bf16.msra.mxu0 0
  %1374 = vmatpush.bf16.msra.mxu0 0
  %1375 = vmatpush.bf16.msra.mxu0 %v1366
  %1376 = vmatmul.bf16.gmra.mxu0 %v1363
  %v1377 = vpop.f32.mrf.mxu0
  %v1378 = vadd.f32 0.0, %v1377
  %v1379 = vpop.f32.mrf.mxu0
  %v1380 = vadd.f32 0.0, %v1379
  %1381 = vdwg.mxu0
  %1382 = vrot.lane.b32.xlu0 %v1313, 120
  %v1383 = vpop.permute.xlu0 %1382
  %1384 = vrot.lane.b32.xlu0 %v1313, 88
  %v1385 = vpop.permute.xlu0 %1384
  %v1387 = vsel %vm532, %v1383, 0
  %v1390 = vsel %vm532, %v1385, 0
  %1392 = vmatpush.bf16.xpose.msra.mxu0 0
  %1393 = vmatpush.bf16.xpose.msra.mxu0 0
  %1394 = vmatpush.bf16.xpose.msra.mxu0 0
  %1395 = vmatpush.bf16.xpose.msra.mxu0 0
  %1396 = vmatpush.bf16.xpose.msra.mxu0 0
  %1397 = vmatpush.bf16.xpose.msra.mxu0 0
  %1398 = vmatpush.bf16.xpose.msra.mxu0 0
  %1399 = vmatpush.bf16.xpose.msra.mxu0 %v1390
  %1400 = vmatmul.bf16.gmra.mxu0 %v1387
  %v1401 = vpop.f32.mrf.mxu0
  %v1402 = vadd.f32 %v591, %v1401
  %v1403 = vpop.f32.mrf.mxu0
  %v1404 = vadd.f32 %v592, %v1403
  %1405 = vdwg.mxu0
  %v1406 = vsel %vm712, %v1402, -inf
  %1407 = vmax.xlane.f32.xlu0 %v1406
  %v1408 = vpop.xlane.xlu0 %1407
  %v1409 = vsel %vm716, %v1404, -inf
  %1410 = vmax.xlane.f32.xlu0 %v1409
  %v1411 = vpop.xlane.xlu0 %1410
  %v1412 = vsub.f32 %v1402, %v1408
  %v1413 = vsub.f32 %v1404, %v1411
  %v1414 = vmul.f32 %v1412, 1.442695
  %v1415 = vpow.pop %v1414
  %v1416 = vmul.f32 %v1413, 1.442695
  %v1417 = vpow.pop %v1416
  %v1418 = vsel %vm712, %v1415, 0.0
  %1419 = vadd.xlane.f32.xlu0 %v1418
  %v1420 = vpop.xlane.xlu0 %1419
  %v1421 = vsel %vm716, %v1417, 0.0
  %1422 = vadd.xlane.f32.xlu0 %v1421
  %v1423 = vpop.xlane.xlu0 %1422
  %v1424 = vrcp.pop %v1420
  %v1425 = vrcp.pop %v1423
  %v1426 = vmul.f32 %v1415, %v1424
  %v1427 = vmul.f32 %v1417, %v1425
  %v1428 = vpack.c.bf16 %v1427, %v1426
  %1429 = vrot.lane.b32.xlu0 %v1313, 56
  %v1430 = vpop.permute.xlu0 %1429
  %v1432 = vsel %vm712, %v1428, 0
  %v1435 = vsel %vm742, %v1430, 0
  %1437 = vmatpush.bf16.msra.mxu0 0
  %1438 = vmatpush.bf16.msra.mxu0 0
  %1439 = vmatpush.bf16.msra.mxu0 0
  %1440 = vmatpush.bf16.msra.mxu0 0
  %1441 = vmatpush.bf16.msra.mxu0 0
  %1442 = vmatpush.bf16.msra.mxu0 0
  %1443 = vmatpush.bf16.msra.mxu0 0
  %1444 = vmatpush.bf16.msra.mxu0 %v1435
  %1445 = vmatmul.bf16.gmra.mxu0 %v1432
  %v1446 = vpop.f32.mrf.mxu0
  %v1447 = vadd.f32 0.0, %v1446
  %v1448 = vpop.f32.mrf.mxu0
  %v1449 = vadd.f32 0.0, %v1448
  %1450 = vdwg.mxu0
  %1451 = vrot.lane.b32.xlu0 %v1313, 112
  %v1452 = vpop.permute.xlu0 %1451
  %1453 = vrot.lane.b32.xlu0 %v1313, 80
  %v1454 = vpop.permute.xlu0 %1453
  %v1456 = vsel %vm532, %v1452, 0
  %v1459 = vsel %vm532, %v1454, 0
  %1461 = vmatpush.bf16.xpose.msra.mxu0 0
  %1462 = vmatpush.bf16.xpose.msra.mxu0 0
  %1463 = vmatpush.bf16.xpose.msra.mxu0 0
  %1464 = vmatpush.bf16.xpose.msra.mxu0 0
  %1465 = vmatpush.bf16.xpose.msra.mxu0 0
  %1466 = vmatpush.bf16.xpose.msra.mxu0 0
  %1467 = vmatpush.bf16.xpose.msra.mxu0 0
  %1468 = vmatpush.bf16.xpose.msra.mxu0 %v1459
  %1469 = vmatmul.bf16.gmra.mxu0 %v1456
  %v1470 = vpop.f32.mrf.mxu0
  %v1471 = vadd.f32 %v591, %v1470
  %v1472 = vpop.f32.mrf.mxu0
  %v1473 = vadd.f32 %v592, %v1472
  %1474 = vdwg.mxu0
  %v1475 = vsel %vm712, %v1471, -inf
  %1476 = vmax.xlane.f32.xlu0 %v1475
  %v1477 = vpop.xlane.xlu0 %1476
  %v1478 = vsel %vm716, %v1473, -inf
  %1479 = vmax.xlane.f32.xlu0 %v1478
  %v1480 = vpop.xlane.xlu0 %1479
  %v1481 = vsub.f32 %v1471, %v1477
  %v1482 = vsub.f32 %v1473, %v1480
  %v1483 = vmul.f32 %v1481, 1.442695
  %v1484 = vpow.pop %v1483
  %v1485 = vmul.f32 %v1482, 1.442695
  %v1486 = vpow.pop %v1485
  %v1487 = vsel %vm712, %v1484, 0.0
  %1488 = vadd.xlane.f32.xlu0 %v1487
  %v1489 = vpop.xlane.xlu0 %1488
  %v1490 = vsel %vm716, %v1486, 0.0
  %1491 = vadd.xlane.f32.xlu0 %v1490
  %v1492 = vpop.xlane.xlu0 %1491
  %v1493 = vrcp.pop %v1489
  %v1494 = vrcp.pop %v1492
  %v1495 = vmul.f32 %v1484, %v1493
  %v1496 = vmul.f32 %v1486, %v1494
  %v1497 = vpack.c.bf16 %v1496, %v1495
  %1498 = vrot.lane.b32.xlu0 %v1313, 48
  %v1499 = vpop.permute.xlu0 %1498
  %v1501 = vsel %vm712, %v1497, 0
  %v1504 = vsel %vm742, %v1499, 0
  %1506 = vmatpush.bf16.msra.mxu0 0
  %1507 = vmatpush.bf16.msra.mxu0 0
  %1508 = vmatpush.bf16.msra.mxu0 0
  %1509 = vmatpush.bf16.msra.mxu0 0
  %1510 = vmatpush.bf16.msra.mxu0 0
  %1511 = vmatpush.bf16.msra.mxu0 0
  %1512 = vmatpush.bf16.msra.mxu0 0
  %1513 = vmatpush.bf16.msra.mxu0 %v1504
  %1514 = vmatmul.bf16.gmra.mxu0 %v1501
  %v1515 = vpop.f32.mrf.mxu0
  %v1516 = vadd.f32 0.0, %v1515
  %v1517 = vpop.f32.mrf.mxu0
  %v1518 = vadd.f32 0.0, %v1517
  %1519 = vdwg.mxu0
  %1520 = vrot.lane.b32.xlu0 %v1313, 104
  %v1521 = vpop.permute.xlu0 %1520
  %1522 = vrot.lane.b32.xlu0 %v1313, 72
  %v1523 = vpop.permute.xlu0 %1522
  %v1525 = vsel %vm532, %v1521, 0
  %v1528 = vsel %vm532, %v1523, 0
  %1530 = vmatpush.bf16.xpose.msra.mxu0 0
  %1531 = vmatpush.bf16.xpose.msra.mxu0 0
  %1532 = vmatpush.bf16.xpose.msra.mxu0 0
  %1533 = vmatpush.bf16.xpose.msra.mxu0 0
  %1534 = vmatpush.bf16.xpose.msra.mxu0 0
  %1535 = vmatpush.bf16.xpose.msra.mxu0 0
  %1536 = vmatpush.bf16.xpose.msra.mxu0 0
  %1537 = vmatpush.bf16.xpose.msra.mxu0 %v1528
  %1538 = vmatmul.bf16.gmra.mxu0 %v1525
  %v1539 = vpop.f32.mrf.mxu0
  %v1540 = vadd.f32 %v591, %v1539
  %v1541 = vpop.f32.mrf.mxu0
  %v1542 = vadd.f32 %v592, %v1541
  %1543 = vdwg.mxu0
  %v1544 = vsel %vm712, %v1540, -inf
  %1545 = vmax.xlane.f32.xlu0 %v1544
  %v1546 = vpop.xlane.xlu0 %1545
  %v1547 = vsel %vm716, %v1542, -inf
  %1548 = vmax.xlane.f32.xlu0 %v1547
  %v1549 = vpop.xlane.xlu0 %1548
  %v1550 = vsub.f32 %v1540, %v1546
  %v1551 = vsub.f32 %v1542, %v1549
  %v1552 = vmul.f32 %v1550, 1.442695
  %v1553 = vpow.pop %v1552
  %v1554 = vmul.f32 %v1551, 1.442695
  %v1555 = vpow.pop %v1554
  %v1556 = vsel %vm712, %v1553, 0.0
  %1557 = vadd.xlane.f32.xlu0 %v1556
  %v1558 = vpop.xlane.xlu0 %1557
  %v1559 = vsel %vm716, %v1555, 0.0
  %1560 = vadd.xlane.f32.xlu0 %v1559
  %v1561 = vpop.xlane.xlu0 %1560
  %v1562 = vrcp.pop %v1558
  %v1563 = vrcp.pop %v1561
  %v1564 = vmul.f32 %v1553, %v1562
  %v1565 = vmul.f32 %v1555, %v1563
  %v1566 = vpack.c.bf16 %v1565, %v1564
  %1567 = vrot.lane.b32.xlu0 %v1313, 40
  %v1568 = vpop.permute.xlu0 %1567
  %v1570 = vsel %vm712, %v1566, 0
  %v1573 = vsel %vm742, %v1568, 0
  %1575 = vmatpush.bf16.msra.mxu0 0
  %1576 = vmatpush.bf16.msra.mxu0 0
  %1577 = vmatpush.bf16.msra.mxu0 0
  %1578 = vmatpush.bf16.msra.mxu0 0
  %1579 = vmatpush.bf16.msra.mxu0 0
  %1580 = vmatpush.bf16.msra.mxu0 0
  %1581 = vmatpush.bf16.msra.mxu0 0
  %1582 = vmatpush.bf16.msra.mxu0 %v1573
  %1583 = vmatmul.bf16.gmra.mxu0 %v1570
  %v1584 = vpop.f32.mrf.mxu0
  %v1585 = vadd.f32 0.0, %v1584
  %v1586 = vpop.f32.mrf.mxu0
  %v1587 = vadd.f32 0.0, %v1586
  %1588 = vdwg.mxu0
  %1591 = vrot.lane.b32.xlu0 %v1447, 8
  %v1592 = vpop.permute.xlu0 %1591
  %1593 = vrot.lane.b32.xlu0 %v1449, 8
  %v1594 = vpop.permute.xlu0 %1593
  %1599 = vrot.lane.b32.xlu0 %v1516, 16
  %v1600 = vpop.permute.xlu0 %1599
  %1601 = vrot.lane.b32.xlu0 %v1518, 16
  %v1602 = vpop.permute.xlu0 %1601
  %1607 = vrot.lane.b32.xlu0 %v1585, 24
  %v1608 = vpop.permute.xlu0 %1607
  %1609 = vrot.lane.b32.xlu0 %v1587, 24
  %v1610 = vpop.permute.xlu0 %1609
  %v1613 = vsel %vm532, %v1378, %v1592
  %v1614 = vsel %vm532, %v1380, %v1594
  %v1615 = vsel %vm993, %v1613, %v1600
  %v1616 = vsel %vm993, %v1614, %v1602
  %v1617 = vsel %vm996, %v1615, %v1608
  %v1618 = vsel %vm996, %v1616, %v1610
  %s1619 = scalar_lea.vmem %s5, 16
  %v1620 = vld [vmem:[%s1619] sm:$0xf]
  %v1621 = vld [vmem:[%s1619 + $0x4] sm:$0xf]
  %v1622 = vld [vmem:[%s1619 + $0x8] sm:$0xf]
  %v1623 = vld [vmem:[%s1619 + $0xc] sm:$0xf]
  %v1624 = vpack.c.bf16 %v1618, %v1617
  %v1629 = vunpack.c.l.b16 %v1620
  %v1630 = vunpack.c.l.b16 %v1621
  %v1631 = vunpack.c.l.b16 %v1622
  %v1632 = vunpack.c.l.b16 %v1623
  %v1633 = vpack.c.b16 %v1630, %v1629
  %v1634 = vpack.c.b16 %v1632, %v1631
  %v1638 = vsel %vm594, %v1624, 0
  %1640 = vmatpush.bf16.msra.mxu0 0
  %1641 = vmatpush.bf16.msra.mxu0 0
  %1642 = vmatpush.bf16.msra.mxu0 0
  %1643 = vmatpush.bf16.msra.mxu0 0
  %1644 = vmatpush.bf16.msra.mxu0 0
  %1645 = vmatpush.bf16.msra.mxu0 0
  %1646 = vmatpush.bf16.msra.mxu0 %v1634
  %1647 = vmatpush.bf16.msra.mxu0 %v1633
  %1648 = vmatmul.bf16.gmra.mxu0 %v1638
  %v1649 = vpop.f32.mrf.mxu0
  %v1650 = vadd.f32 0.0, %v1649
  %v1651 = vpop.f32.mrf.mxu0
  %v1652 = vadd.f32 0.0, %v1651
  %1653 = vdwg.mxu0
  %v1654 = vadd.f32 %v1223, %v1650
  %v1655 = vadd.f32 %v1224, %v1652
  %v1656 = vperm.slane %v1226, 4
  %v1657 = vadd.f32 %v1654, %v1656
  %v1658 = vadd.f32 %v1655, %v1656
  %v1659 = vsel %vm594, %v1657, 0.0
  %1660 = vadd.xlane.f32.xlu0 %v1659
  %v1661 = vpop.xlane.xlu0 %1660
  %v1662 = vsel %vm598, %v1658, 0.0
  %1663 = vadd.xlane.f32.xlu0 %v1662
  %v1664 = vpop.xlane.xlu0 %1663
  %v1665 = vmul.f32 %v1661, %v608
  %v1666 = vmul.f32 %v1664, %v608
  %v1667 = vsub.f32 %v1657, %v1665
  %v1668 = vsub.f32 %v1658, %v1666
  %v1669 = vmul.f32 %v1667, %v1667
  %v1670 = vmul.f32 %v1668, %v1668
  %v1671 = vsel %vm594, %v1669, 0.0
  %1672 = vadd.xlane.f32.xlu0 %v1671
  %v1673 = vpop.xlane.xlu0 %1672
  %v1674 = vsel %vm598, %v1670, 0.0
  %1675 = vadd.xlane.f32.xlu0 %v1674
  %v1676 = vpop.xlane.xlu0 %1675
  %v1677 = vmul.f32 %v1673, %v608
  %v1678 = vmul.f32 %v1676, %v608
  %v1679 = vadd.f32 %v1677, 1e-06
  %v1680 = vadd.f32 %v1678, 1e-06
  %v1681 = vrsqrt.pop %v1679
  %v1682 = vmul.f32 %v1681, %v1679
  %v1683 = vmul.f32 %v1682, %v1681
  %v1684 = vmul.f32 0.5, %v1683
  %v1685 = vsub.f32 1.5, %v1684
  %v1686 = vmul.f32 %v1681, %v1685
  %vm1687 = vweird.f32 %v1679
  %vm1688 = vweird.f32 %v1681
  %vm1689 = vmor %vm1687, %vm1688
  %v1690 = vsel %vm1689, %v1681, %v1686
  %v1691 = vrsqrt.pop %v1680
  %v1692 = vmul.f32 %v1691, %v1680
  %v1693 = vmul.f32 %v1692, %v1691
  %v1694 = vmul.f32 0.5, %v1693
  %v1695 = vsub.f32 1.5, %v1694
  %v1696 = vmul.f32 %v1691, %v1695
  %vm1697 = vweird.f32 %v1680
  %vm1698 = vweird.f32 %v1691
  %vm1699 = vmor %vm1697, %vm1698
  %v1700 = vsel %vm1699, %v1691, %v1696
  %v1701 = vmul.f32 %v1667, %v1690
  %v1702 = vmul.f32 %v1668, %v1700
  %v1703 = vperm.slane %v1226, 2
  %v1704 = vmul.f32 %v1701, %v1703
  %v1705 = vmul.f32 %v1702, %v1703
  %v1706 = vperm.slane %v1226, 3
  %v1707 = vadd.f32 %v1704, %v1706
  %v1708 = vadd.f32 %v1705, %v1706
  %s1709 = scalar_lea.vmem %s6, 16
  %v1710 = vld [vmem:[%s1709] sm:$0xf]
  %v1711 = vld [vmem:[%s1709 + $0x4] sm:$0xf]
  %v1712 = vld [vmem:[%s1709 + $0x8] sm:$0xf]
  %v1713 = vld [vmem:[%s1709 + $0xc] sm:$0xf]
  %v1714 = vpack.c.bf16 %v1708, %v1707
  %v1715 = vperm.slane %v1226, 7
  %v1720 = vunpack.c.l.b16 %v1710
  %v1721 = vunpack.c.l.b16 %v1711
  %v1722 = vunpack.c.l.b16 %v1712
  %v1723 = vunpack.c.l.b16 %v1713
  %v1724 = vpack.c.b16 %v1721, %v1720
  %v1725 = vpack.c.b16 %v1723, %v1722
  %v1729 = vsel %vm594, %v1714, 0
  %1731 = vmatpush.bf16.msra.mxu0 0
  %1732 = vmatpush.bf16.msra.mxu0 0
  %1733 = vmatpush.bf16.msra.mxu0 0
  %1734 = vmatpush.bf16.msra.mxu0 0
  %1735 = vmatpush.bf16.msra.mxu0 0
  %1736 = vmatpush.bf16.msra.mxu0 0
  %1737 = vmatpush.bf16.msra.mxu0 %v1725
  %1738 = vmatpush.bf16.msra.mxu0 %v1724
  %1739 = vmatmul.bf16.gmra.mxu0 %v1729
  %v1740 = vpop.f32.mrf.mxu0
  %v1741 = vadd.f32 %v1715, %v1740
  %v1742 = vpop.f32.mrf.mxu0
  %v1743 = vadd.f32 %v1715, %v1742
  %1744 = vdwg.mxu0
  %v1745 = vmul.f32 %v1741, %v1741
  %v1746 = vmul.f32 %v1743, %v1743
  %v1747 = vmul.f32 %v1741, %v1745
  %v1748 = vmul.f32 %v1743, %v1746
  %v1749 = vmul.f32 %v1747, 0.044715
  %v1750 = vmul.f32 %v1748, 0.044715
  %v1751 = vadd.f32 %v1741, %v1749
  %v1752 = vadd.f32 %v1743, %v1750
  %v1753 = vmul.f32 %v1751, 0.7978846
  %v1754 = vmul.f32 %v1752, 0.7978846
  %v1755 = vtanh.pop %v1753
  %v1756 = vtanh.pop %v1754
  %v1757 = vadd.f32 %v1755, 1.0
  %v1758 = vadd.f32 %v1756, 1.0
  %v1759 = vmul.f32 %v1757, 0.5
  %v1760 = vmul.f32 %v1758, 0.5
  %v1761 = vmul.f32 %v1741, %v1759
  %v1762 = vmul.f32 %v1743, %v1760
  %s1763 = scalar_lea.vmem %s7, 64
  %v1764 = vld [vmem:[%s1763] sm:$0xf]
  %v1765 = vld [vmem:[%s1763 + $0x4] sm:$0xf]
  %v1766 = vld [vmem:[%s1763 + $0x8] sm:$0xf]
  %v1767 = vld [vmem:[%s1763 + $0xc] sm:$0xf]
  %v1768 = vld [vmem:[%s1763 + $0x10] sm:$0xf]
  %v1769 = vld [vmem:[%s1763 + $0x14] sm:$0xf]
  %v1770 = vld [vmem:[%s1763 + $0x18] sm:$0xf]
  %v1771 = vld [vmem:[%s1763 + $0x1c] sm:$0xf]
  %v1772 = vld [vmem:[%s1763 + $0x20] sm:$0xf]
  %v1773 = vld [vmem:[%s1763 + $0x24] sm:$0xf]
  %v1774 = vld [vmem:[%s1763 + $0x28] sm:$0xf]
  %v1775 = vld [vmem:[%s1763 + $0x2c] sm:$0xf]
  %v1776 = vld [vmem:[%s1763 + $0x30] sm:$0xf]
  %v1777 = vld [vmem:[%s1763 + $0x34] sm:$0xf]
  %v1778 = vld [vmem:[%s1763 + $0x38] sm:$0xf]
  %v1779 = vld [vmem:[%s1763 + $0x3c] sm:$0xf]
  %v1780 = vpack.c.bf16 %v1762, %v1761
  %v1797 = vunpack.c.l.b16 %v1764
  %v1798 = vunpack.c.l.b16 %v1765
  %v1799 = vunpack.c.l.b16 %v1766
  %v1800 = vunpack.c.l.b16 %v1767
  %v1801 = vunpack.c.l.b16 %v1768
  %v1802 = vunpack.c.l.b16 %v1769
  %v1803 = vunpack.c.l.b16 %v1770
  %v1804 = vunpack.c.l.b16 %v1771
  %v1805 = vunpack.c.l.b16 %v1772
  %v1806 = vunpack.c.l.b16 %v1773
  %v1807 = vunpack.c.l.b16 %v1774
  %v1808 = vunpack.c.l.b16 %v1775
  %v1809 = vunpack.c.l.b16 %v1776
  %v1810 = vunpack.c.l.b16 %v1777
  %v1811 = vunpack.c.l.b16 %v1778
  %v1812 = vunpack.c.l.b16 %v1779
  %v1813 = vpack.c.b16 %v1798, %v1797
  %v1814 = vpack.c.b16 %v1800, %v1799
  %v1815 = vpack.c.b16 %v1802, %v1801
  %v1816 = vpack.c.b16 %v1804, %v1803
  %v1817 = vpack.c.b16 %v1806, %v1805
  %v1818 = vpack.c.b16 %v1808, %v1807
  %v1819 = vpack.c.b16 %v1810, %v1809
  %v1820 = vpack.c.b16 %v1812, %v1811
  %1829 = vmatpush.bf16.msra.mxu0 %v1820
  %1830 = vmatpush.bf16.msra.mxu0 %v1819
  %1831 = vmatpush.bf16.msra.mxu0 %v1818
  %1832 = vmatpush.bf16.msra.mxu0 %v1817
  %1833 = vmatpush.bf16.msra.mxu0 %v1816
  %1834 = vmatpush.bf16.msra.mxu0 %v1815
  %1835 = vmatpush.bf16.msra.mxu0 %v1814
  %1836 = vmatpush.bf16.msra.mxu0 %v1813
  %1837 = vmatmul.bf16.gmra.mxu0 %v1780
  %v1838 = vpop.f32.mrf.mxu0
  %v1839 = vadd.f32 0.0, %v1838
  %v1840 = vpop.f32.mrf.mxu0
  %v1841 = vadd.f32 0.0, %v1840
  %1842 = vdwg.mxu0
  %v1843 = vadd.f32 %v1657, %v1839
  %v1844 = vadd.f32 %v1658, %v1841
  %v1845 = vperm.slane %v1226, 5
  %v1846 = vadd.f32 %v1843, %v1845
  %v1847 = vadd.f32 %v1844, %v1845
  %v1848 = vld [vmem:[%s9] sm:$0xf]
  %v1849 = vsel %vm594, %v1846, 0.0
  %1850 = vadd.xlane.f32.xlu0 %v1849
  %v1851 = vpop.xlane.xlu0 %1850
  %v1852 = vsel %vm598, %v1847, 0.0
  %1853 = vadd.xlane.f32.xlu0 %v1852
  %v1854 = vpop.xlane.xlu0 %1853
  %v1855 = vmul.f32 %v1851, %v608
  %v1856 = vmul.f32 %v1854, %v608
  %v1857 = vsub.f32 %v1846, %v1855
  %v1858 = vsub.f32 %v1847, %v1856
  %v1859 = vmul.f32 %v1857, %v1857
  %v1860 = vmul.f32 %v1858, %v1858
  %v1861 = vsel %vm594, %v1859, 0.0
  %1862 = vadd.xlane.f32.xlu0 %v1861
  %v1863 = vpop.xlane.xlu0 %1862
  %v1864 = vsel %vm598, %v1860, 0.0
  %1865 = vadd.xlane.f32.xlu0 %v1864
  %v1866 = vpop.xlane.xlu0 %1865
  %v1867 = vmul.f32 %v1863, %v608
  %v1868 = vmul.f32 %v1866, %v608
  %v1869 = vadd.f32 %v1867, 1e-06
  %v1870 = vadd.f32 %v1868, 1e-06
  %v1871 = vrsqrt.pop %v1869
  %v1872 = vmul.f32 %v1871, %v1869
  %v1873 = vmul.f32 %v1872, %v1871
  %v1874 = vmul.f32 0.5, %v1873
  %v1875 = vsub.f32 1.5, %v1874
  %v1876 = vmul.f32 %v1871, %v1875
  %vm1877 = vweird.f32 %v1869
  %vm1878 = vweird.f32 %v1871
  %vm1879 = vmor %vm1877, %vm1878
  %v1880 = vsel %vm1879, %v1871, %v1876
  %v1881 = vrsqrt.pop %v1870
  %v1882 = vmul.f32 %v1881, %v1870
  %v1883 = vmul.f32 %v1882, %v1881
  %v1884 = vmul.f32 0.5, %v1883
  %v1885 = vsub.f32 1.5, %v1884
  %v1886 = vmul.f32 %v1881, %v1885
  %vm1887 = vweird.f32 %v1870
  %vm1888 = vweird.f32 %v1881
  %vm1889 = vmor %vm1887, %vm1888
  %v1890 = vsel %vm1889, %v1881, %v1886
  %v1891 = vmul.f32 %v1857, %v1880
  %v1892 = vmul.f32 %v1858, %v1890
  %v1893 = vperm.slane %v1848, 0
  %v1894 = vmul.f32 %v1891, %v1893
  %v1895 = vmul.f32 %v1892, %v1893
  %v1896 = vperm.slane %v1848, 1
  %v1897 = vadd.f32 %v1894, %v1896
  %v1898 = vadd.f32 %v1895, %v1896
  %v1899 = vsel %vm594, %v1897, 0.0
  %1900 = vadd.xlane.f32.xlu0 %v1899
  %v1901 = vpop.xlane.xlu0 %1900
  %v1902 = vsel %vm598, %v1898, 0.0
  %1903 = vadd.xlane.f32.xlu0 %v1902
  %v1904 = vpop.xlane.xlu0 %1903
  %v1905 = vmul.f32 %v1901, %v608
  %v1906 = vmul.f32 %v1904, %v608
  %v1907 = vsub.f32 %v1897, %v1905
  %v1908 = vsub.f32 %v1898, %v1906
  %v1909 = vmul.f32 %v1907, %v1907
  %v1910 = vmul.f32 %v1908, %v1908
  %v1911 = vsel %vm594, %v1909, 0.0
  %1912 = vadd.xlane.f32.xlu0 %v1911
  %v1913 = vpop.xlane.xlu0 %1912
  %v1914 = vsel %vm598, %v1910, 0.0
  %1915 = vadd.xlane.f32.xlu0 %v1914
  %v1916 = vpop.xlane.xlu0 %1915
  %v1917 = vmul.f32 %v1913, %v608
  %v1918 = vmul.f32 %v1916, %v608
  %v1919 = vadd.f32 %v1917, 1e-06
  %v1920 = vadd.f32 %v1918, 1e-06
  %v1921 = vrsqrt.pop %v1919
  %v1922 = vmul.f32 %v1921, %v1919
  %v1923 = vmul.f32 %v1922, %v1921
  %v1924 = vmul.f32 0.5, %v1923
  %v1925 = vsub.f32 1.5, %v1924
  %v1926 = vmul.f32 %v1921, %v1925
  %vm1927 = vweird.f32 %v1919
  %vm1928 = vweird.f32 %v1921
  %vm1929 = vmor %vm1927, %vm1928
  %v1930 = vsel %vm1929, %v1921, %v1926
  %v1931 = vrsqrt.pop %v1920
  %v1932 = vmul.f32 %v1931, %v1920
  %v1933 = vmul.f32 %v1932, %v1931
  %v1934 = vmul.f32 0.5, %v1933
  %v1935 = vsub.f32 1.5, %v1934
  %v1936 = vmul.f32 %v1931, %v1935
  %vm1937 = vweird.f32 %v1920
  %vm1938 = vweird.f32 %v1931
  %vm1939 = vmor %vm1937, %vm1938
  %v1940 = vsel %vm1939, %v1931, %v1936
  %v1941 = vmul.f32 %v1907, %v1930
  %v1942 = vmul.f32 %v1908, %v1940
  %v1943 = vperm.slane %v1848, 2
  %v1944 = vmul.f32 %v1941, %v1943
  %v1945 = vmul.f32 %v1942, %v1943
  %v1946 = vperm.slane %v1848, 3
  %v1947 = vadd.f32 %v1944, %v1946
  %v1948 = vadd.f32 %v1945, %v1946
  %v1949 = vld [vmem:[%s10] sm:$0xf]
  %v1950 = vld [vmem:[%s10 + $0x4] sm:$0xf]
  %v1951 = vpack.c.bf16 %v1947, %v1947
  %v1952 = vld [vmem:[%s11] sm:$0xff]
  %v1953 = vld [vmem:[%s11 + $0x8] sm:$0xff]
  %1955 = vset.pattern.permute.xlu0 0
  %1956 = vperm.xlu0 %1955, %v1952
  %v1957 = vpop.permute.xlu0 %1956
  %1960 = vset.pattern.permute.xlu0 0
  %1961 = vperm.xlu0 %1960, %v1953
  %v1962 = vpop.permute.xlu0 %1961
  %v1966 = vunpack.c.l.b16 %v1949
  %v1967 = vunpack.c.l.b16 %v1950
  %v1968 = vpack.c.b16 %v1967, %v1966
  %v1970 = vshrl.u32 %v1951, 16
  %v1972 = vshll.u32 %v1951, 16
  %v1974 = vrot.slane %v1972, 1
  %v1975 = vor.u32 %v1970, %v1974
  %v1977 = vsel %vm594, %v1968, 0
  %v1980 = vsel %vm594, %v1975, 0
  %1982 = vmatpush.bf16.xpose.msra.mxu0 0
  %1983 = vmatpush.bf16.xpose.msra.mxu0 0
  %1984 = vmatpush.bf16.xpose.msra.mxu0 0
  %1985 = vmatpush.bf16.xpose.msra.mxu0 0
  %1986 = vmatpush.bf16.xpose.msra.mxu0 0
  %1987 = vmatpush.bf16.xpose.msra.mxu0 0
  %1988 = vmatpush.bf16.xpose.msra.mxu0 0
  %1989 = vmatpush.bf16.xpose.msra.mxu0 %v1980
  %1990 = vmatmul.bf16.gmra.mxu0 %v1977
  %v1991 = vpop.f32.mrf.mxu0
  %v1992 = vadd.f32 %v1957, %v1991
  %v1993 = vpop.f32.mrf.mxu0
  %v1994 = vadd.f32 %v1962, %v1993
  %1995 = vdwg.mxu0
  %v1996 = vmax.f32 %v1992, 0.0
  %v1997 = vmax.f32 %v1994, 0.0
  %v1998 = vld [vmem:[%s12] sm:$0x3]
  %v1999 = vpack.c.bf16 %v1997, %v1996
  %vm2000 = vcmask 31744
  %v2002 = vsel %vm2000, %v1999, 0
  %vm2004 = vcmask 1041408
  %v2006 = vsel %vm2004, %v1998, 0
  %2008 = vmatpush.bf16.msra.mxu0 0
  %2009 = vmatpush.bf16.msra.mxu0 0
  %2010 = vmatpush.bf16.msra.mxu0 0
  %2011 = vmatpush.bf16.msra.mxu0 0
  %2012 = vmatpush.bf16.msra.mxu0 0
  %2013 = vmatpush.bf16.msra.mxu0 0
  %2014 = vmatpush.bf16.msra.mxu0 0
  %2015 = vmatpush.bf16.msra.mxu0 %v2006
  %2016 = vmatmul.bf16.gmra.mxu0 %v2002
  %v2017 = vpop.f32.mrf.mxu0
  %v2018 = vadd.f32 0.0, %v2017
  %v2019 = vpop.f32.mrf.mxu0
  %v2020 = vadd.f32 0.0, %v2019
  %2021 = vdwg.mxu0
  %s2022 = scalar_lea.vmem %s10, 8
  %v2023 = vld [vmem:[%s2022] sm:$0xf]
  %v2024 = vld [vmem:[%s2022 + $0x4] sm:$0xf]
  %v2025 = vpack.c.bf16 %v2020, %v2018
  %2026 = vset.pattern.permute.xlu0 1
  %2027 = vperm.xlu0 %2026, %v1952
  %v2028 = vpop.permute.xlu0 %2027
  %2030 = vset.pattern.permute.xlu0 1
  %2031 = vperm.xlu0 %2030, %v1953
  %v2032 = vpop.permute.xlu0 %2031
  %v2036 = vunpack.c.l.b16 %v2023
  %v2037 = vunpack.c.l.b16 %v2024
  %v2038 = vpack.c.b16 %v2037, %v2036
  %v2040 = vsel %vm993, %v2038, 0
  %2042 = vmatpush.bf16.msra.mxu0 0
  %2043 = vmatpush.bf16.msra.mxu0 0
  %2044 = vmatpush.bf16.msra.mxu0 0
  %2045 = vmatpush.bf16.msra.mxu0 0
  %2046 = vmatpush.bf16.msra.mxu0 0
  %2047 = vmatpush.bf16.msra.mxu0 0
  %2048 = vmatpush.bf16.msra.mxu0 0
  %2049 = vmatpush.bf16.msra.mxu0 %v2025
  %2050 = vmatmul.bf16.gmra.mxu0 %v2040
  %v2051 = vpop.f32.mrf.mxu0
  %v2052 = vadd.f32 %v2028, %v2051
  %v2053 = vpop.f32.mrf.mxu0
  %v2054 = vadd.f32 %v2032, %v2053
  %2055 = vdwg.mxu0
  %v2056 = vmax.f32 %v2052, 0.0
  %v2057 = vmax.f32 %v2054, 0.0
  %v2058 = vld [vmem:[%s13] sm:$0xf]
  %v2059 = vld [vmem:[%s13 + $0x4] sm:$0xf]
  %v2060 = vpack.c.bf16 %v2057, %v2056
  %v2063 = vunpack.c.l.b16 %v2058
  %v2064 = vunpack.c.l.b16 %v2059
  %v2065 = vpack.c.b16 %v2064, %v2063
  %v2068 = vsel %vm993, %v2060, 0
  %2070 = vmatpush.bf16.msra.mxu0 0
  %2071 = vmatpush.bf16.msra.mxu0 0
  %2072 = vmatpush.bf16.msra.mxu0 0
  %2073 = vmatpush.bf16.msra.mxu0 0
  %2074 = vmatpush.bf16.msra.mxu0 0
  %2075 = vmatpush.bf16.msra.mxu0 0
  %2076 = vmatpush.bf16.msra.mxu0 0
  %2077 = vmatpush.bf16.msra.mxu0 %v2065
  %2078 = vmatmul.bf16.gmra.mxu0 %v2068
  %v2079 = vpop.f32.mrf.mxu0
  %v2080 = vadd.f32 0.0, %v2079
  %v2081 = vpop.f32.mrf.mxu0
  %v2082 = vadd.f32 0.0, %v2081
  %2083 = vdwg.mxu0
  %s2084 = scalar_lea.vmem %s10, 16
  %v2085 = vld [vmem:[%s2084] sm:$0xf]
  %v2086 = vld [vmem:[%s2084 + $0x4] sm:$0xf]
  %v2087 = vpack.c.bf16 %v2082, %v2080
  %2088 = vset.pattern.permute.xlu0 2
  %2089 = vperm.xlu0 %2088, %v1952
  %v2090 = vpop.permute.xlu0 %2089
  %2092 = vset.pattern.permute.xlu0 2
  %2093 = vperm.xlu0 %2092, %v1953
  %v2094 = vpop.permute.xlu0 %2093
  %v2098 = vunpack.c.l.b16 %v2085
  %v2099 = vunpack.c.l.b16 %v2086
  %v2100 = vpack.c.b16 %v2099, %v2098
  %v2102 = vsel %vm993, %v2100, 0
  %2104 = vmatpush.bf16.msra.mxu0 0
  %2105 = vmatpush.bf16.msra.mxu0 0
  %2106 = vmatpush.bf16.msra.mxu0 0
  %2107 = vmatpush.bf16.msra.mxu0 0
  %2108 = vmatpush.bf16.msra.mxu0 0
  %2109 = vmatpush.bf16.msra.mxu0 0
  %2110 = vmatpush.bf16.msra.mxu0 0
  %2111 = vmatpush.bf16.msra.mxu0 %v2087
  %2112 = vmatmul.bf16.gmra.mxu0 %v2102
  %v2113 = vpop.f32.mrf.mxu0
  %v2114 = vadd.f32 %v2090, %v2113
  %v2115 = vpop.f32.mrf.mxu0
  %v2116 = vadd.f32 %v2094, %v2115
  %2117 = vdwg.mxu0
  %v2118 = vmax.f32 %v2114, 0.0
  %v2119 = vmax.f32 %v2116, 0.0
  %v2120 = vld [vmem:[%s14] sm:$0xff]
  %v2121 = vld [vmem:[%s14 + $0x8] sm:$0xff]
  %v2122 = vld [vmem:[%s14 + $0x10] sm:$0xff]
  %v2123 = vld [vmem:[%s14 + $0x18] sm:$0xff]
  %v2124 = vld [vmem:[%s14 + $0x20] sm:$0xff]
  %v2125 = vld [vmem:[%s14 + $0x28] sm:$0xff]
  %v2126 = vld [vmem:[%s14 + $0x30] sm:$0xff]
  %v2127 = vld [vmem:[%s14 + $0x38] sm:$0xff]
  %v2128 = vpack.c.bf16 %v2119, %v2118
  %v2137 = vunpack.c.l.b16 %v2120
  %v2138 = vunpack.c.h.b16 %v2120
  %v2139 = vunpack.c.l.b16 %v2121
  %v2140 = vunpack.c.h.b16 %v2121
  %v2141 = vunpack.c.l.b16 %v2122
  %v2142 = vunpack.c.h.b16 %v2122
  %v2143 = vunpack.c.l.b16 %v2123
  %v2144 = vunpack.c.h.b16 %v2123
  %v2145 = vunpack.c.l.b16 %v2124
  %v2146 = vunpack.c.h.b16 %v2124
  %v2147 = vunpack.c.l.b16 %v2125
  %v2148 = vunpack.c.h.b16 %v2125
  %v2149 = vunpack.c.l.b16 %v2126
  %v2150 = vunpack.c.h.b16 %v2126
  %v2151 = vunpack.c.l.b16 %v2127
  %v2152 = vunpack.c.h.b16 %v2127
  %v2153 = vpack.c.b16 %v2139, %v2137
  %v2154 = vpack.c.b16 %v2140, %v2138
  %v2155 = vpack.c.b16 %v2143, %v2141
  %v2156 = vpack.c.b16 %v2144, %v2142
  %v2157 = vpack.c.b16 %v2147, %v2145
  %v2158 = vpack.c.b16 %v2148, %v2146
  %v2159 = vpack.c.b16 %v2151, %v2149
  %v2160 = vpack.c.b16 %v2152, %v2150
  %vm2169 = vcmask 523264
  %v2171 = vsel %vm2169, %v2128, 0
  %2173 = vmatpush.bf16.msra.mxu0 0
  %2174 = vmatpush.bf16.msra.mxu0 0
  %2175 = vmatpush.bf16.msra.mxu0 0
  %2176 = vmatpush.bf16.msra.mxu0 0
  %2177 = vmatpush.bf16.msra.mxu0 %v2159
  %2178 = vmatpush.bf16.msra.mxu0 %v2157
  %2179 = vmatpush.bf16.msra.mxu0 %v2155
  %2180 = vmatpush.bf16.msra.mxu0 %v2153
  %2181 = vmatmul.bf16.gmra.mxu0 %v2171
  %v2182 = vpop.f32.mrf.mxu0
  %v2183 = vadd.f32 0.0, %v2182
  %v2184 = vpop.f32.mrf.mxu0
  %v2185 = vadd.f32 0.0, %v2184
  %2186 = vdwg.mxu0
  %2187 = vmatpush.bf16.msra.mxu0 0
  %2188 = vmatpush.bf16.msra.mxu0 0
  %2189 = vmatpush.bf16.msra.mxu0 0
  %2190 = vmatpush.bf16.msra.mxu0 0
  %2191 = vmatpush.bf16.msra.mxu0 %v2160
  %2192 = vmatpush.bf16.msra.mxu0 %v2158
  %2193 = vmatpush.bf16.msra.mxu0 %v2156
  %2194 = vmatpush.bf16.msra.mxu0 %v2154
  %2195 = vmatmul.bf16.gmra.mxu0 %v2171
  %v2196 = vpop.f32.mrf.mxu0
  %v2197 = vadd.f32 0.0, %v2196
  %v2198 = vpop.f32.mrf.mxu0
  %v2199 = vadd.f32 0.0, %v2198
  %2200 = vdwg.mxu0
  %s2201 = scalar_lea.vmem %s10, 24
  %v2202 = vld [vmem:[%s2201] sm:$0x1]
  %v2203 = vpack.c.bf16 %v2185, %v2183
  %v2204 = vpack.c.bf16 %v2199, %v2197
  %v2205 = vld [vmem:[%s11] sm:$0x1]
  %2207 = vset.pattern.permute.xlu0 3
  %2208 = vperm.xlu0 %2207, %v2205
  %v2209 = vpop.permute.xlu0 %2208
  %v2212 = vsel %vm993, %v2202, 0
  %2214 = vmatpush.bf16.msra.mxu0 0
  %2215 = vmatpush.bf16.msra.mxu0 0
  %2216 = vmatpush.bf16.msra.mxu0 0
  %2217 = vmatpush.bf16.msra.mxu0 0
  %2218 = vmatpush.bf16.msra.mxu0 0
  %2219 = vmatpush.bf16.msra.mxu0 0
  %2220 = vmatpush.bf16.msra.mxu0 0
  %2221 = vmatpush.bf16.msra.mxu0 %v2203
  %2222 = vmatmul.bf16.gmra.mxu0 %v2212
  %v2223 = vpop.f32.mrf.mxu0
  %v2224 = vadd.f32 %v2209, %v2223
  %v2225 = vpop.f32.mrf.mxu0
  %2226 = vdwg.mxu0
  %2227 = vmatpush.bf16.msra.mxu0 0
  %2228 = vmatpush.bf16.msra.mxu0 0
  %2229 = vmatpush.bf16.msra.mxu0 0
  %2230 = vmatpush.bf16.msra.mxu0 0
  %2231 = vmatpush.bf16.msra.mxu0 0
  %2232 = vmatpush.bf16.msra.mxu0 0
  %2233 = vmatpush.bf16.msra.mxu0 0
  %2234 = vmatpush.bf16.msra.mxu0 %v2204
  %2235 = vmatmul.bf16.gmra.mxu0 %v2212
  %v2236 = vpop.f32.mrf.mxu0
  %v2237 = vadd.f32 %v2209, %v2236
  %v2238 = vpop.f32.mrf.mxu0
  %2239 = vdwg.mxu0
  %v2240 = vld [vmem:[%s15] sm:$0xff]
  %v2241 = vld [vmem:[%s15 + $0x8] sm:$0xff]
  %v2242 = vld [vmem:[%s15 + $0x10] sm:$0xff]
  %v2243 = vld [vmem:[%s15 + $0x18] sm:$0xff]
  %v2244 = vld [vmem:[%s15 + $0x20] sm:$0xff]
  %v2245 = vld [vmem:[%s15 + $0x28] sm:$0xff]
  %v2246 = vld [vmem:[%s15 + $0x30] sm:$0xff]
  %v2247 = vld [vmem:[%s15 + $0x38] sm:$0xff]
  %v2248 = vld [vmem:[%s15 + $0x40] sm:$0xff]
  %v2249 = vld [vmem:[%s15 + $0x48] sm:$0xff]
  %v2250 = vld [vmem:[%s15 + $0x50] sm:$0xff]
  %v2251 = vld [vmem:[%s15 + $0x58] sm:$0xff]
  %v2252 = vld [vmem:[%s15 + $0x60] sm:$0xff]
  %v2253 = vld [vmem:[%s15 + $0x68] sm:$0xff]
  %v2254 = vld [vmem:[%s15 + $0x70] sm:$0xff]
  %v2255 = vld [vmem:[%s15 + $0x78] sm:$0xff]
  %v2256 = vld [vmem:[%s15 + $0x80] sm:$0xff]
  %v2257 = vld [vmem:[%s15 + $0x88] sm:$0xff]
  %v2258 = vld [vmem:[%s15 + $0x90] sm:$0xff]
  %v2259 = vld [vmem:[%s15 + $0x98] sm:$0xff]
  %v2260 = vld [vmem:[%s15 + $0xa0] sm:$0xff]
  %v2261 = vld [vmem:[%s15 + $0xa8] sm:$0xff]
  %v2262 = vld [vmem:[%s15 + $0xb0] sm:$0xff]
  %v2263 = vld [vmem:[%s15 + $0xb8] sm:$0xff]
  %v2264 = vld [vmem:[%s15 + $0xc0] sm:$0xff]
  %v2265 = vld [vmem:[%s15 + $0xc8] sm:$0xff]
  %v2266 = vld [vmem:[%s15 + $0xd0] sm:$0xff]
  %v2267 = vld [vmem:[%s15 + $0xd8] sm:$0xff]
  %v2268 = vld [vmem:[%s15 + $0xe0] sm:$0xff]
  %v2269 = vld [vmem:[%s15 + $0xe8] sm:$0xff]
  %v2270 = vld [vmem:[%s15 + $0xf0] sm:$0xff]
  %v2271 = vld [vmem:[%s15 + $0xf8] sm:$0xff]
  %v2272 = vld [vmem:[%s15 + $0x100] sm:$0xff]
  %v2273 = vld [vmem:[%s15 + $0x108] sm:$0xff]
  %v2274 = vld [vmem:[%s15 + $0x110] sm:$0xff]
  %v2275 = vld [vmem:[%s15 + $0x118] sm:$0xff]
  %v2276 = vld [vmem:[%s15 + $0x120] sm:$0xff]
  %v2277 = vld [vmem:[%s15 + $0x128] sm:$0xff]
  %v2278 = vld [vmem:[%s15 + $0x130] sm:$0xff]
  %v2279 = vld [vmem:[%s15 + $0x138] sm:$0xff]
  %v2280 = vld [vmem:[%s15 + $0x140] sm:$0xff]
  %v2281 = vld [vmem:[%s15 + $0x148] sm:$0xff]
  %v2282 = vld [vmem:[%s15 + $0x150] sm:$0xff]
  %v2283 = vld [vmem:[%s15 + $0x158] sm:$0xff]
  %v2284 = vld [vmem:[%s15 + $0x160] sm:$0xff]
  %v2285 = vld [vmem:[%s15 + $0x168] sm:$0xff]
  %v2286 = vld [vmem:[%s15 + $0x170] sm:$0xff]
  %v2287 = vld [vmem:[%s15 + $0x178] sm:$0xff]
  %v2288 = vld [vmem:[%s15 + $0x180] sm:$0xff]
  %v2289 = vld [vmem:[%s15 + $0x188] sm:$0xff]
  %v2290 = vld [vmem:[%s15 + $0x190] sm:$0xff]
  %v2291 = vld [vmem:[%s15 + $0x198] sm:$0xff]
  %v2292 = vld [vmem:[%s15 + $0x1a0] sm:$0xff]
  %v2293 = vld [vmem:[%s15 + $0x1a8] sm:$0xff]
  %v2294 = vld [vmem:[%s15 + $0x1b0] sm:$0xff]
  %v2295 = vld [vmem:[%s15 + $0x1b8] sm:$0xff]
  %v2296 = vld [vmem:[%s15 + $0x1c0] sm:$0xff]
  %v2297 = vld [vmem:[%s15 + $0x1c8] sm:$0xff]
  %v2298 = vld [vmem:[%s15 + $0x1d0] sm:$0xff]
  %v2299 = vld [vmem:[%s15 + $0x1d8] sm:$0xff]
  %v2300 = vld [vmem:[%s15 + $0x1e0] sm:$0xff]
  %v2301 = vld [vmem:[%s15 + $0x1e8] sm:$0xff]
  %v2302 = vld [vmem:[%s15 + $0x1f0] sm:$0xff]
  %v2303 = vld [vmem:[%s15 + $0x1f8] sm:$0xff]
  %v2304 = vld [vmem:[%s15 + $0x200] sm:$0xff]
  %v2305 = vld [vmem:[%s15 + $0x208] sm:$0xff]
  %v2306 = vld [vmem:[%s15 + $0x210] sm:$0xff]
  %v2307 = vld [vmem:[%s15 + $0x218] sm:$0xff]
  %v2308 = vld [vmem:[%s15 + $0x220] sm:$0xff]
  %v2309 = vld [vmem:[%s15 + $0x228] sm:$0xff]
  %v2310 = vld [vmem:[%s15 + $0x230] sm:$0xff]
  %v2311 = vld [vmem:[%s15 + $0x238] sm:$0xff]
  %v2312 = vld [vmem:[%s15 + $0x240] sm:$0xff]
  %v2313 = vld [vmem:[%s15 + $0x248] sm:$0xff]
  %v2314 = vld [vmem:[%s15 + $0x250] sm:$0xff]
  %v2315 = vld [vmem:[%s15 + $0x258] sm:$0xff]
  %v2316 = vld [vmem:[%s15 + $0x260] sm:$0xff]
  %v2317 = vld [vmem:[%s15 + $0x268] sm:$0xff]
  %v2318 = vld [vmem:[%s15 + $0x270] sm:$0xff]
  %v2319 = vld [vmem:[%s15 + $0x278] sm:$0xff]
  %v2320 = vld [vmem:[%s15 + $0x280] sm:$0xff]
  %v2321 = vld [vmem:[%s15 + $0x288] sm:$0xff]
  %v2322 = vld [vmem:[%s15 + $0x290] sm:$0xff]
  %v2323 = vld [vmem:[%s15 + $0x298] sm:$0xff]
  %v2324 = vld [vmem:[%s15 + $0x2a0] sm:$0xff]
  %v2325 = vld [vmem:[%s15 + $0x2a8] sm:$0xff]
  %v2326 = vld [vmem:[%s15 + $0x2b0] sm:$0xff]
  %v2327 = vld [vmem:[%s15 + $0x2b8] sm:$0xff]
  %v2328 = vld [vmem:[%s15 + $0x2c0] sm:$0xff]
  %v2329 = vld [vmem:[%s15 + $0x2c8] sm:$0xff]
  %v2330 = vld [vmem:[%s15 + $0x2d0] sm:$0xff]
  %v2331 = vld [vmem:[%s15 + $0x2d8] sm:$0xff]
  %v2332 = vld [vmem:[%s15 + $0x2e0] sm:$0xff]
  %v2333 = vld [vmem:[%s15 + $0x2e8] sm:$0xff]
  %v2334 = vld [vmem:[%s15 + $0x2f0] sm:$0xff]
  %v2335 = vld [vmem:[%s15 + $0x2f8] sm:$0xff]
  %v2336 = vld [vmem:[%s15 + $0x300] sm:$0xff]
  %v2337 = vld [vmem:[%s15 + $0x308] sm:$0xff]
  %v2338 = vld [vmem:[%s15 + $0x310] sm:$0xff]
  %v2339 = vld [vmem:[%s15 + $0x318] sm:$0xff]
  %v2340 = vld [vmem:[%s15 + $0x320] sm:$0xff]
  %v2341 = vld [vmem:[%s15 + $0x328] sm:$0xff]
  %v2342 = vld [vmem:[%s15 + $0x330] sm:$0xff]
  %v2343 = vld [vmem:[%s15 + $0x338] sm:$0xff]
  %v2344 = vld [vmem:[%s15 + $0x340] sm:$0xff]
  %v2345 = vld [vmem:[%s15 + $0x348] sm:$0xff]
  %v2346 = vld [vmem:[%s15 + $0x350] sm:$0xff]
  %v2347 = vld [vmem:[%s15 + $0x358] sm:$0xff]
  %v2348 = vld [vmem:[%s15 + $0x360] sm:$0xff]
  %v2349 = vld [vmem:[%s15 + $0x368] sm:$0xff]
  %v2350 = vld [vmem:[%s15 + $0x370] sm:$0xff]
  %v2351 = vld [vmem:[%s15 + $0x378] sm:$0xff]
  %v2352 = vld [vmem:[%s15 + $0x380] sm:$0xff]
  %v2353 = vld [vmem:[%s15 + $0x388] sm:$0xff]
  %v2354 = vld [vmem:[%s15 + $0x390] sm:$0xff]
  %v2355 = vld [vmem:[%s15 + $0x398] sm:$0xff]
  %v2356 = vld [vmem:[%s15 + $0x3a0] sm:$0xff]
  %v2357 = vld [vmem:[%s15 + $0x3a8] sm:$0xff]
  %v2358 = vld [vmem:[%s15 + $0x3b0] sm:$0xff]
  %v2359 = vld [vmem:[%s15 + $0x3b8] sm:$0xff]
  %v2360 = vld [vmem:[%s15 + $0x3c0] sm:$0xff]
  %v2361 = vld [vmem:[%s15 + $0x3c8] sm:$0xff]
  %v2362 = vld [vmem:[%s15 + $0x3d0] sm:$0xff]
  %v2363 = vld [vmem:[%s15 + $0x3d8] sm:$0xff]
  %v2364 = vld [vmem:[%s15 + $0x3e0] sm:$0xff]
  %v2365 = vld [vmem:[%s15 + $0x3e8] sm:$0xff]
  %v2366 = vld [vmem:[%s15 + $0x3f0] sm:$0xff]
  %v2367 = vld [vmem:[%s15 + $0x3f8] sm:$0xff]
  %v2368 = vpack.c.bf16 %v2224, %v2224
  %v2369 = vpack.c.bf16 %v2237, %v2237
  %v2498 = vunpack.c.l.b16 %v2240
  %v2499 = vunpack.c.h.b16 %v2240
  %v2500 = vunpack.c.l.b16 %v2241
  %v2501 = vunpack.c.h.b16 %v2241
  %v2502 = vunpack.c.l.b16 %v2242
  %v2503 = vunpack.c.h.b16 %v2242
  %v2504 = vunpack.c.l.b16 %v2243
  %v2505 = vunpack.c.h.b16 %v2243
  %v2506 = vunpack.c.l.b16 %v2244
  %v2507 = vunpack.c.h.b16 %v2244
  %v2508 = vunpack.c.l.b16 %v2245
  %v2509 = vunpack.c.h.b16 %v2245
  %v2510 = vunpack.c.l.b16 %v2246
  %v2511 = vunpack.c.h.b16 %v2246
  %v2512 = vunpack.c.l.b16 %v2247
  %v2513 = vunpack.c.h.b16 %v2247
  %v2514 = vunpack.c.l.b16 %v2248
  %v2515 = vunpack.c.h.b16 %v2248
  %v2516 = vunpack.c.l.b16 %v2249
  %v2517 = vunpack.c.h.b16 %v2249
  %v2518 = vunpack.c.l.b16 %v2250
  %v2519 = vunpack.c.h.b16 %v2250
  %v2520 = vunpack.c.l.b16 %v2251
  %v2521 = vunpack.c.h.b16 %v2251
  %v2522 = vunpack.c.l.b16 %v2252
  %v2523 = vunpack.c.h.b16 %v2252
  %v2524 = vunpack.c.l.b16 %v2253
  %v2525 = vunpack.c.h.b16 %v2253
  %v2526 = vunpack.c.l.b16 %v2254
  %v2527 = vunpack.c.h.b16 %v2254
  %v2528 = vunpack.c.l.b16 %v2255
  %v2529 = vunpack.c.h.b16 %v2255
  %v2530 = vunpack.c.l.b16 %v2256
  %v2531 = vunpack.c.h.b16 %v2256
  %v2532 = vunpack.c.l.b16 %v2257
  %v2533 = vunpack.c.h.b16 %v2257
  %v2534 = vunpack.c.l.b16 %v2258
  %v2535 = vunpack.c.h.b16 %v2258
  %v2536 = vunpack.c.l.b16 %v2259
  %v2537 = vunpack.c.h.b16 %v2259
  %v2538 = vunpack.c.l.b16 %v2260
  %v2539 = vunpack.c.h.b16 %v2260
  %v2540 = vunpack.c.l.b16 %v2261
  %v2541 = vunpack.c.h.b16 %v2261
  %v2542 = vunpack.c.l.b16 %v2262
  %v2543 = vunpack.c.h.b16 %v2262
  %v2544 = vunpack.c.l.b16 %v2263
  %v2545 = vunpack.c.h.b16 %v2263
  %v2546 = vunpack.c.l.b16 %v2264
  %v2547 = vunpack.c.h.b16 %v2264
  %v2548 = vunpack.c.l.b16 %v2265
  %v2549 = vunpack.c.h.b16 %v2265
  %v2550 = vunpack.c.l.b16 %v2266
  %v2551 = vunpack.c.h.b16 %v2266
  %v2552 = vunpack.c.l.b16 %v2267
  %v2553 = vunpack.c.h.b16 %v2267
  %v2554 = vunpack.c.l.b16 %v2268
  %v2555 = vunpack.c.h.b16 %v2268
  %v2556 = vunpack.c.l.b16 %v2269
  %v2557 = vunpack.c.h.b16 %v2269
  %v2558 = vunpack.c.l.b16 %v2270
  %v2559 = vunpack.c.h.b16 %v2270
  %v2560 = vunpack.c.l.b16 %v2271
  %v2561 = vunpack.c.h.b16 %v2271
  %v2562 = vunpack.c.l.b16 %v2272
  %v2563 = vunpack.c.h.b16 %v2272
  %v2564 = vunpack.c.l.b16 %v2273
  %v2565 = vunpack.c.h.b16 %v2273
  %v2566 = vunpack.c.l.b16 %v2274
  %v2567 = vunpack.c.h.b16 %v2274
  %v2568 = vunpack.c.l.b16 %v2275
  %v2569 = vunpack.c.h.b16 %v2275
  %v2570 = vunpack.c.l.b16 %v2276
  %v2571 = vunpack.c.h.b16 %v2276
  %v2572 = vunpack.c.l.b16 %v2277
  %v2573 = vunpack.c.h.b16 %v2277
  %v2574 = vunpack.c.l.b16 %v2278
  %v2575 = vunpack.c.h.b16 %v2278
  %v2576 = vunpack.c.l.b16 %v2279
  %v2577 = vunpack.c.h.b16 %v2279
  %v2578 = vunpack.c.l.b16 %v2280
  %v2579 = vunpack.c.h.b16 %v2280
  %v2580 = vunpack.c.l.b16 %v2281
  %v2581 = vunpack.c.h.b16 %v2281
  %v2582 = vunpack.c.l.b16 %v2282
  %v2583 = vunpack.c.h.b16 %v2282
  %v2584 = vunpack.c.l.b16 %v2283
  %v2585 = vunpack.c.h.b16 %v2283
  %v2586 = vunpack.c.l.b16 %v2284
  %v2587 = vunpack.c.h.b16 %v2284
  %v2588 = vunpack.c.l.b16 %v2285
  %v2589 = vunpack.c.h.b16 %v2285
  %v2590 = vunpack.c.l.b16 %v2286
  %v2591 = vunpack.c.h.b16 %v2286
  %v2592 = vunpack.c.l.b16 %v2287
  %v2593 = vunpack.c.h.b16 %v2287
  %v2594 = vunpack.c.l.b16 %v2288
  %v2595 = vunpack.c.h.b16 %v2288
  %v2596 = vunpack.c.l.b16 %v2289
  %v2597 = vunpack.c.h.b16 %v2289
  %v2598 = vunpack.c.l.b16 %v2290
  %v2599 = vunpack.c.h.b16 %v2290
  %v2600 = vunpack.c.l.b16 %v2291
  %v2601 = vunpack.c.h.b16 %v2291
  %v2602 = vunpack.c.l.b16 %v2292
  %v2603 = vunpack.c.h.b16 %v2292
  %v2604 = vunpack.c.l.b16 %v2293
  %v2605 = vunpack.c.h.b16 %v2293
  %v2606 = vunpack.c.l.b16 %v2294
  %v2607 = vunpack.c.h.b16 %v2294
  %v2608 = vunpack.c.l.b16 %v2295
  %v2609 = vunpack.c.h.b16 %v2295
  %v2610 = vunpack.c.l.b16 %v2296
  %v2611 = vunpack.c.h.b16 %v2296
  %v2612 = vunpack.c.l.b16 %v2297
  %v2613 = vunpack.c.h.b16 %v2297
  %v2614 = vunpack.c.l.b16 %v2298
  %v2615 = vunpack.c.h.b16 %v2298
  %v2616 = vunpack.c.l.b16 %v2299
  %v2617 = vunpack.c.h.b16 %v2299
  %v2618 = vunpack.c.l.b16 %v2300
  %v2619 = vunpack.c.h.b16 %v2300
  %v2620 = vunpack.c.l.b16 %v2301
  %v2621 = vunpack.c.h.b16 %v2301
  %v2622 = vunpack.c.l.b16 %v2302
  %v2623 = vunpack.c.h.b16 %v2302
  %v2624 = vunpack.c.l.b16 %v2303
  %v2625 = vunpack.c.h.b16 %v2303
  %v2626 = vunpack.c.l.b16 %v2304
  %v2627 = vunpack.c.h.b16 %v2304
  %v2628 = vunpack.c.l.b16 %v2305
  %v2629 = vunpack.c.h.b16 %v2305
  %v2630 = vunpack.c.l.b16 %v2306
  %v2631 = vunpack.c.h.b16 %v2306
  %v2632 = vunpack.c.l.b16 %v2307
  %v2633 = vunpack.c.h.b16 %v2307
  %v2634 = vunpack.c.l.b16 %v2308
  %v2635 = vunpack.c.h.b16 %v2308
  %v2636 = vunpack.c.l.b16 %v2309
  %v2637 = vunpack.c.h.b16 %v2309
  %v2638 = vunpack.c.l.b16 %v2310
  %v2639 = vunpack.c.h.b16 %v2310
  %v2640 = vunpack.c.l.b16 %v2311
  %v2641 = vunpack.c.h.b16 %v2311
  %v2642 = vunpack.c.l.b16 %v2312
  %v2643 = vunpack.c.h.b16 %v2312
  %v2644 = vunpack.c.l.b16 %v2313
  %v2645 = vunpack.c.h.b16 %v2313
  %v2646 = vunpack.c.l.b16 %v2314
  %v2647 = vunpack.c.h.b16 %v2314
  %v2648 = vunpack.c.l.b16 %v2315
  %v2649 = vunpack.c.h.b16 %v2315
  %v2650 = vunpack.c.l.b16 %v2316
  %v2651 = vunpack.c.h.b16 %v2316
  %v2652 = vunpack.c.l.b16 %v2317
  %v2653 = vunpack.c.h.b16 %v2317
  %v2654 = vunpack.c.l.b16 %v2318
  %v2655 = vunpack.c.h.b16 %v2318
  %v2656 = vunpack.c.l.b16 %v2319
  %v2657 = vunpack.c.h.b16 %v2319
  %v2658 = vunpack.c.l.b16 %v2320
  %v2659 = vunpack.c.h.b16 %v2320
  %v2660 = vunpack.c.l.b16 %v2321
  %v2661 = vunpack.c.h.b16 %v2321
  %v2662 = vunpack.c.l.b16 %v2322
  %v2663 = vunpack.c.h.b16 %v2322
  %v2664 = vunpack.c.l.b16 %v2323
  %v2665 = vunpack.c.h.b16 %v2323
  %v2666 = vunpack.c.l.b16 %v2324
  %v2667 = vunpack.c.h.b16 %v2324
  %v2668 = vunpack.c.l.b16 %v2325
  %v2669 = vunpack.c.h.b16 %v2325
  %v2670 = vunpack.c.l.b16 %v2326
  %v2671 = vunpack.c.h.b16 %v2326
  %v2672 = vunpack.c.l.b16 %v2327
  %v2673 = vunpack.c.h.b16 %v2327
  %v2674 = vunpack.c.l.b16 %v2328
  %v2675 = vunpack.c.h.b16 %v2328
  %v2676 = vunpack.c.l.b16 %v2329
  %v2677 = vunpack.c.h.b16 %v2329
  %v2678 = vunpack.c.l.b16 %v2330
  %v2679 = vunpack.c.h.b16 %v2330
  %v2680 = vunpack.c.l.b16 %v2331
  %v2681 = vunpack.c.h.b16 %v2331
  %v2682 = vunpack.c.l.b16 %v2332
  %v2683 = vunpack.c.h.b16 %v2332
  %v2684 = vunpack.c.l.b16 %v2333
  %v2685 = vunpack.c.h.b16 %v2333
  %v2686 = vunpack.c.l.b16 %v2334
  %v2687 = vunpack.c.h.b16 %v2334
  %v2688 = vunpack.c.l.b16 %v2335
  %v2689 = vunpack.c.h.b16 %v2335
  %v2690 = vunpack.c.l.b16 %v2336
  %v2691 = vunpack.c.h.b16 %v2336
  %v2692 = vunpack.c.l.b16 %v2337
  %v2693 = vunpack.c.h.b16 %v2337
  %v2694 = vunpack.c.l.b16 %v2338
  %v2695 = vunpack.c.h.b16 %v2338
  %v2696 = vunpack.c.l.b16 %v2339
  %v2697 = vunpack.c.h.b16 %v2339
  %v2698 = vunpack.c.l.b16 %v2340
  %v2699 = vunpack.c.h.b16 %v2340
  %v2700 = vunpack.c.l.b16 %v2341
  %v2701 = vunpack.c.h.b16 %v2341
  %v2702 = vunpack.c.l.b16 %v2342
  %v2703 = vunpack.c.h.b16 %v2342
  %v2704 = vunpack.c.l.b16 %v2343
  %v2705 = vunpack.c.h.b16 %v2343
  %v2706 = vunpack.c.l.b16 %v2344
  %v2707 = vunpack.c.h.b16 %v2344
  %v2708 = vunpack.c.l.b16 %v2345
  %v2709 = vunpack.c.h.b16 %v2345
  %v2710 = vunpack.c.l.b16 %v2346
  %v2711 = vunpack.c.h.b16 %v2346
  %v2712 = vunpack.c.l.b16 %v2347
  %v2713 = vunpack.c.h.b16 %v2347
  %v2714 = vunpack.c.l.b16 %v2348
  %v2715 = vunpack.c.h.b16 %v2348
  %v2716 = vunpack.c.l.b16 %v2349
  %v2717 = vunpack.c.h.b16 %v2349
  %v2718 = vunpack.c.l.b16 %v2350
  %v2719 = vunpack.c.h.b16 %v2350
  %v2720 = vunpack.c.l.b16 %v2351
  %v2721 = vunpack.c.h.b16 %v2351
  %v2722 = vunpack.c.l.b16 %v2352
  %v2723 = vunpack.c.h.b16 %v2352
  %v2724 = vunpack.c.l.b16 %v2353
  %v2725 = vunpack.c.h.b16 %v2353
  %v2726 = vunpack.c.l.b16 %v2354
  %v2727 = vunpack.c.h.b16 %v2354
  %v2728 = vunpack.c.l.b16 %v2355
  %v2729 = vunpack.c.h.b16 %v2355
  %v2730 = vunpack.c.l.b16 %v2356
  %v2731 = vunpack.c.h.b16 %v2356
  %v2732 = vunpack.c.l.b16 %v2357
  %v2733 = vunpack.c.h.b16 %v2357
  %v2734 = vunpack.c.l.b16 %v2358
  %v2735 = vunpack.c.h.b16 %v2358
  %v2736 = vunpack.c.l.b16 %v2359
  %v2737 = vunpack.c.h.b16 %v2359
  %v2738 = vunpack.c.l.b16 %v2360
  %v2739 = vunpack.c.h.b16 %v2360
  %v2740 = vunpack.c.l.b16 %v2361
  %v2741 = vunpack.c.h.b16 %v2361
  %v2742 = vunpack.c.l.b16 %v2362
  %v2743 = vunpack.c.h.b16 %v2362
  %v2744 = vunpack.c.l.b16 %v2363
  %v2745 = vunpack.c.h.b16 %v2363
  %v2746 = vunpack.c.l.b16 %v2364
  %v2747 = vunpack.c.h.b16 %v2364
  %v2748 = vunpack.c.l.b16 %v2365
  %v2749 = vunpack.c.h.b16 %v2365
  %v2750 = vunpack.c.l.b16 %v2366
  %v2751 = vunpack.c.h.b16 %v2366
  %v2752 = vunpack.c.l.b16 %v2367
  %v2753 = vunpack.c.h.b16 %v2367
  %v2754 = vpack.c.b16 %v2506, %v2498
  %v2755 = vpack.c.b16 %v2507, %v2499
  %v2756 = vpack.c.b16 %v2508, %v2500
  %v2757 = vpack.c.b16 %v2509, %v2501
  %v2758 = vpack.c.b16 %v2510, %v2502
  %v2759 = vpack.c.b16 %v2511, %v2503
  %v2760 = vpack.c.b16 %v2512, %v2504
  %v2761 = vpack.c.b16 %v2513, %v2505
  %v2762 = vpack.c.b16 %v2522, %v2514
  %v2763 = vpack.c.b16 %v2523, %v2515
  %v2764 = vpack.c.b16 %v2524, %v2516
  %v2765 = vpack.c.b16 %v2525, %v2517
  %v2766 = vpack.c.b16 %v2526, %v2518
  %v2767 = vpack.c.b16 %v2527, %v2519
  %v2768 = vpack.c.b16 %v2528, %v2520
  %v2769 = vpack.c.b16 %v2529, %v2521
  %v2770 = vpack.c.b16 %v2538, %v2530
  %v2771 = vpack.c.b16 %v2539, %v2531
  %v2772 = vpack.c.b16 %v2540, %v2532
  %v2773 = vpack.c.b16 %v2541, %v2533
  %v2774 = vpack.c.b16 %v2542, %v2534
  %v2775 = vpack.c.b16 %v2543, %v2535
  %v2776 = vpack.c.b16 %v2544, %v2536
  %v2777 = vpack.c.b16 %v2545, %v2537
  %v2778 = vpack.c.b16 %v2554, %v2546
  %v2779 = vpack.c.b16 %v2555, %v2547
  %v2780 = vpack.c.b16 %v2556, %v2548
  %v2781 = vpack.c.b16 %v2557, %v2549
  %v2782 = vpack.c.b16 %v2558, %v2550
  %v2783 = vpack.c.b16 %v2559, %v2551
  %v2784 = vpack.c.b16 %v2560, %v2552
  %v2785 = vpack.c.b16 %v2561, %v2553
  %v2786 = vpack.c.b16 %v2570, %v2562
  %v2787 = vpack.c.b16 %v2571, %v2563
  %v2788 = vpack.c.b16 %v2572, %v2564
  %v2789 = vpack.c.b16 %v2573, %v2565
  %v2790 = vpack.c.b16 %v2574, %v2566
  %v2791 = vpack.c.b16 %v2575, %v2567
  %v2792 = vpack.c.b16 %v2576, %v2568
  %v2793 = vpack.c.b16 %v2577, %v2569
  %v2794 = vpack.c.b16 %v2586, %v2578
  %v2795 = vpack.c.b16 %v2587, %v2579
  %v2796 = vpack.c.b16 %v2588, %v2580
  %v2797 = vpack.c.b16 %v2589, %v2581
  %v2798 = vpack.c.b16 %v2590, %v2582
  %v2799 = vpack.c.b16 %v2591, %v2583
  %v2800 = vpack.c.b16 %v2592, %v2584
  %v2801 = vpack.c.b16 %v2593, %v2585
  %v2802 = vpack.c.b16 %v2602, %v2594
  %v2803 = vpack.c.b16 %v2603, %v2595
  %v2804 = vpack.c.b16 %v2604, %v2596
  %v2805 = vpack.c.b16 %v2605, %v2597
  %v2806 = vpack.c.b16 %v2606, %v2598
  %v2807 = vpack.c.b16 %v2607, %v2599
  %v2808 = vpack.c.b16 %v2608, %v2600
  %v2809 = vpack.c.b16 %v2609, %v2601
  %v2810 = vpack.c.b16 %v2618, %v2610
  %v2811 = vpack.c.b16 %v2619, %v2611
  %v2812 = vpack.c.b16 %v2620, %v2612
  %v2813 = vpack.c.b16 %v2621, %v2613
  %v2814 = vpack.c.b16 %v2622, %v2614
  %v2815 = vpack.c.b16 %v2623, %v2615
  %v2816 = vpack.c.b16 %v2624, %v2616
  %v2817 = vpack.c.b16 %v2625, %v2617
  %v2818 = vpack.c.b16 %v2634, %v2626
  %v2819 = vpack.c.b16 %v2635, %v2627
  %v2820 = vpack.c.b16 %v2636, %v2628
  %v2821 = vpack.c.b16 %v2637, %v2629
  %v2822 = vpack.c.b16 %v2638, %v2630
  %v2823 = vpack.c.b16 %v2639, %v2631
  %v2824 = vpack.c.b16 %v2640, %v2632
  %v2825 = vpack.c.b16 %v2641, %v2633
  %v2826 = vpack.c.b16 %v2650, %v2642
  %v2827 = vpack.c.b16 %v2651, %v2643
  %v2828 = vpack.c.b16 %v2652, %v2644
  %v2829 = vpack.c.b16 %v2653, %v2645
  %v2830 = vpack.c.b16 %v2654, %v2646
  %v2831 = vpack.c.b16 %v2655, %v2647
  %v2832 = vpack.c.b16 %v2656, %v2648
  %v2833 = vpack.c.b16 %v2657, %v2649
  %v2834 = vpack.c.b16 %v2666, %v2658
  %v2835 = vpack.c.b16 %v2667, %v2659
  %v2836 = vpack.c.b16 %v2668, %v2660
  %v2837 = vpack.c.b16 %v2669, %v2661
  %v2838 = vpack.c.b16 %v2670, %v2662
  %v2839 = vpack.c.b16 %v2671, %v2663
  %v2840 = vpack.c.b16 %v2672, %v2664
  %v2841 = vpack.c.b16 %v2673, %v2665
  %v2842 = vpack.c.b16 %v2682, %v2674
  %v2843 = vpack.c.b16 %v2683, %v2675
  %v2844 = vpack.c.b16 %v2684, %v2676
  %v2845 = vpack.c.b16 %v2685, %v2677
  %v2846 = vpack.c.b16 %v2686, %v2678
  %v2847 = vpack.c.b16 %v2687, %v2679
  %v2848 = vpack.c.b16 %v2688, %v2680
  %v2849 = vpack.c.b16 %v2689, %v2681
  %v2850 = vpack.c.b16 %v2698, %v2690
  %v2851 = vpack.c.b16 %v2699, %v2691
  %v2852 = vpack.c.b16 %v2700, %v2692
  %v2853 = vpack.c.b16 %v2701, %v2693
  %v2854 = vpack.c.b16 %v2702, %v2694
  %v2855 = vpack.c.b16 %v2703, %v2695
  %v2856 = vpack.c.b16 %v2704, %v2696
  %v2857 = vpack.c.b16 %v2705, %v2697
  %v2858 = vpack.c.b16 %v2714, %v2706
  %v2859 = vpack.c.b16 %v2715, %v2707
  %v2860 = vpack.c.b16 %v2716, %v2708
  %v2861 = vpack.c.b16 %v2717, %v2709
  %v2862 = vpack.c.b16 %v2718, %v2710
  %v2863 = vpack.c.b16 %v2719, %v2711
  %v2864 = vpack.c.b16 %v2720, %v2712
  %v2865 = vpack.c.b16 %v2721, %v2713
  %v2866 = vpack.c.b16 %v2730, %v2722
  %v2867 = vpack.c.b16 %v2731, %v2723
  %v2868 = vpack.c.b16 %v2732, %v2724
  %v2869 = vpack.c.b16 %v2733, %v2725
  %v2870 = vpack.c.b16 %v2734, %v2726
  %v2871 = vpack.c.b16 %v2735, %v2727
  %v2872 = vpack.c.b16 %v2736, %v2728
  %v2873 = vpack.c.b16 %v2737, %v2729
  %v2874 = vpack.c.b16 %v2746, %v2738
  %v2875 = vpack.c.b16 %v2747, %v2739
  %v2876 = vpack.c.b16 %v2748, %v2740
  %v2877 = vpack.c.b16 %v2749, %v2741
  %v2878 = vpack.c.b16 %v2750, %v2742
  %v2879 = vpack.c.b16 %v2751, %v2743
  %v2880 = vpack.c.b16 %v2752, %v2744
  %v2881 = vpack.c.b16 %v2753, %v2745
  %3010 = vmatpush.bf16.msra.mxu0 %v2810
  %3011 = vmatpush.bf16.msra.mxu0 %v2802
  %3012 = vmatpush.bf16.msra.mxu0 %v2794
  %3013 = vmatpush.bf16.msra.mxu0 %v2786
  %3014 = vmatpush.bf16.msra.mxu0 %v2778
  %3015 = vmatpush.bf16.msra.mxu0 %v2770
  %3016 = vmatpush.bf16.msra.mxu0 %v2762
  %3017 = vmatpush.bf16.msra.mxu0 %v2754
  %3018 = vmatmul.bf16.gmra.mxu0 %v2368
  %v3019 = vpop.f32.mrf.mxu0
  %v3020 = vadd.f32 0.0, %v3019
  %v3021 = vpop.f32.mrf.mxu0
  %3022 = vdwg.mxu0
  %3023 = vmatpush.bf16.msra.mxu0 %v2874
  %3024 = vmatpush.bf16.msra.mxu0 %v2866
  %3025 = vmatpush.bf16.msra.mxu0 %v2858
  %3026 = vmatpush.bf16.msra.mxu0 %v2850
  %3027 = vmatpush.bf16.msra.mxu0 %v2842
  %3028 = vmatpush.bf16.msra.mxu0 %v2834
  %3029 = vmatpush.bf16.msra.mxu0 %v2826
  %3030 = vmatpush.bf16.msra.mxu0 %v2818
  %3031 = vmatmul.bf16.gmra.mxu0 %v2369
  %v3032 = vpop.f32.mrf.mxu0
  %v3033 = vadd.f32 %v3020, %v3032
  %v3034 = vpop.f32.mrf.mxu0
  %3035 = vdwg.mxu0
  %3036 = vmatpush.bf16.msra.mxu0 %v2811
  %3037 = vmatpush.bf16.msra.mxu0 %v2803
  %3038 = vmatpush.bf16.msra.mxu0 %v2795
  %3039 = vmatpush.bf16.msra.mxu0 %v2787
  %3040 = vmatpush.bf16.msra.mxu0 %v2779
  %3041 = vmatpush.bf16.msra.mxu0 %v2771
  %3042 = vmatpush.bf16.msra.mxu0 %v2763
  %3043 = vmatpush.bf16.msra.mxu0 %v2755
  %3044 = vmatmul.bf16.gmra.mxu0 %v2368
  %v3045 = vpop.f32.mrf.mxu0
  %v3046 = vadd.f32 0.0, %v3045
  %v3047 = vpop.f32.mrf.mxu0
  %3048 = vdwg.mxu0
  %3049 = vmatpush.bf16.msra.mxu0 %v2875
  %3050 = vmatpush.bf16.msra.mxu0 %v2867
  %3051 = vmatpush.bf16.msra.mxu0 %v2859
  %3052 = vmatpush.bf16.msra.mxu0 %v2851
  %3053 = vmatpush.bf16.msra.mxu0 %v2843
  %3054 = vmatpush.bf16.msra.mxu0 %v2835
  %3055 = vmatpush.bf16.msra.mxu0 %v2827
  %3056 = vmatpush.bf16.msra.mxu0 %v2819
  %3057 = vmatmul.bf16.gmra.mxu0 %v2369
  %v3058 = vpop.f32.mrf.mxu0
  %v3059 = vadd.f32 %v3046, %v3058
  %v3060 = vpop.f32.mrf.mxu0
  %3061 = vdwg.mxu0
  %3062 = vmatpush.bf16.msra.mxu0 %v2812
  %3063 = vmatpush.bf16.msra.mxu0 %v2804
  %3064 = vmatpush.bf16.msra.mxu0 %v2796
  %3065 = vmatpush.bf16.msra.mxu0 %v2788
  %3066 = vmatpush.bf16.msra.mxu0 %v2780
  %3067 = vmatpush.bf16.msra.mxu0 %v2772
  %3068 = vmatpush.bf16.msra.mxu0 %v2764
  %3069 = vmatpush.bf16.msra.mxu0 %v2756
  %3070 = vmatmul.bf16.gmra.mxu0 %v2368
  %v3071 = vpop.f32.mrf.mxu0
  %v3072 = vadd.f32 0.0, %v3071
  %v3073 = vpop.f32.mrf.mxu0
  %3074 = vdwg.mxu0
  %3075 = vmatpush.bf16.msra.mxu0 %v2876
  %3076 = vmatpush.bf16.msra.mxu0 %v2868
  %3077 = vmatpush.bf16.msra.mxu0 %v2860
  %3078 = vmatpush.bf16.msra.mxu0 %v2852
  %3079 = vmatpush.bf16.msra.mxu0 %v2844
  %3080 = vmatpush.bf16.msra.mxu0 %v2836
  %3081 = vmatpush.bf16.msra.mxu0 %v2828
  %3082 = vmatpush.bf16.msra.mxu0 %v2820
  %3083 = vmatmul.bf16.gmra.mxu0 %v2369
  %v3084 = vpop.f32.mrf.mxu0
  %v3085 = vadd.f32 %v3072, %v3084
  %v3086 = vpop.f32.mrf.mxu0
  %3087 = vdwg.mxu0
  %3088 = vmatpush.bf16.msra.mxu0 %v2813
  %3089 = vmatpush.bf16.msra.mxu0 %v2805
  %3090 = vmatpush.bf16.msra.mxu0 %v2797
  %3091 = vmatpush.bf16.msra.mxu0 %v2789
  %3092 = vmatpush.bf16.msra.mxu0 %v2781
  %3093 = vmatpush.bf16.msra.mxu0 %v2773
  %3094 = vmatpush.bf16.msra.mxu0 %v2765
  %3095 = vmatpush.bf16.msra.mxu0 %v2757
  %3096 = vmatmul.bf16.gmra.mxu0 %v2368
  %v3097 = vpop.f32.mrf.mxu0
  %v3098 = vadd.f32 0.0, %v3097
  %v3099 = vpop.f32.mrf.mxu0
  %3100 = vdwg.mxu0
  %3101 = vmatpush.bf16.msra.mxu0 %v2877
  %3102 = vmatpush.bf16.msra.mxu0 %v2869
  %3103 = vmatpush.bf16.msra.mxu0 %v2861
  %3104 = vmatpush.bf16.msra.mxu0 %v2853
  %3105 = vmatpush.bf16.msra.mxu0 %v2845
  %3106 = vmatpush.bf16.msra.mxu0 %v2837
  %3107 = vmatpush.bf16.msra.mxu0 %v2829
  %3108 = vmatpush.bf16.msra.mxu0 %v2821
  %3109 = vmatmul.bf16.gmra.mxu0 %v2369
  %v3110 = vpop.f32.mrf.mxu0
  %v3111 = vadd.f32 %v3098, %v3110
  %v3112 = vpop.f32.mrf.mxu0
  %3113 = vdwg.mxu0
  %3114 = vmatpush.bf16.msra.mxu0 %v2814
  %3115 = vmatpush.bf16.msra.mxu0 %v2806
  %3116 = vmatpush.bf16.msra.mxu0 %v2798
  %3117 = vmatpush.bf16.msra.mxu0 %v2790
  %3118 = vmatpush.bf16.msra.mxu0 %v2782
  %3119 = vmatpush.bf16.msra.mxu0 %v2774
  %3120 = vmatpush.bf16.msra.mxu0 %v2766
  %3121 = vmatpush.bf16.msra.mxu0 %v2758
  %3122 = vmatmul.bf16.gmra.mxu0 %v2368
  %v3123 = vpop.f32.mrf.mxu0
  %v3124 = vadd.f32 0.0, %v3123
  %v3125 = vpop.f32.mrf.mxu0
  %3126 = vdwg.mxu0
  %3127 = vmatpush.bf16.msra.mxu0 %v2878
  %3128 = vmatpush.bf16.msra.mxu0 %v2870
  %3129 = vmatpush.bf16.msra.mxu0 %v2862
  %3130 = vmatpush.bf16.msra.mxu0 %v2854
  %3131 = vmatpush.bf16.msra.mxu0 %v2846
  %3132 = vmatpush.bf16.msra.mxu0 %v2838
  %3133 = vmatpush.bf16.msra.mxu0 %v2830
  %3134 = vmatpush.bf16.msra.mxu0 %v2822
  %3135 = vmatmul.bf16.gmra.mxu0 %v2369
  %v3136 = vpop.f32.mrf.mxu0
  %v3137 = vadd.f32 %v3124, %v3136
  %v3138 = vpop.f32.mrf.mxu0
  %3139 = vdwg.mxu0
  %3140 = vmatpush.bf16.msra.mxu0 %v2815
  %3141 = vmatpush.bf16.msra.mxu0 %v2807
  %3142 = vmatpush.bf16.msra.mxu0 %v2799
  %3143 = vmatpush.bf16.msra.mxu0 %v2791
  %3144 = vmatpush.bf16.msra.mxu0 %v2783
  %3145 = vmatpush.bf16.msra.mxu0 %v2775
  %3146 = vmatpush.bf16.msra.mxu0 %v2767
  %3147 = vmatpush.bf16.msra.mxu0 %v2759
  %3148 = vmatmul.bf16.gmra.mxu0 %v2368
  %v3149 = vpop.f32.mrf.mxu0
  %v3150 = vadd.f32 0.0, %v3149
  %v3151 = vpop.f32.mrf.mxu0
  %3152 = vdwg.mxu0
  %3153 = vmatpush.bf16.msra.mxu0 %v2879
  %3154 = vmatpush.bf16.msra.mxu0 %v2871
  %3155 = vmatpush.bf16.msra.mxu0 %v2863
  %3156 = vmatpush.bf16.msra.mxu0 %v2855
  %3157 = vmatpush.bf16.msra.mxu0 %v2847
  %3158 = vmatpush.bf16.msra.mxu0 %v2839
  %3159 = vmatpush.bf16.msra.mxu0 %v2831
  %3160 = vmatpush.bf16.msra.mxu0 %v2823
  %3161 = vmatmul.bf16.gmra.mxu0 %v2369
  %v3162 = vpop.f32.mrf.mxu0
  %v3163 = vadd.f32 %v3150, %v3162
  %v3164 = vpop.f32.mrf.mxu0
  %3165 = vdwg.mxu0
  %3166 = vmatpush.bf16.msra.mxu0 %v2816
  %3167 = vmatpush.bf16.msra.mxu0 %v2808
  %3168 = vmatpush.bf16.msra.mxu0 %v2800
  %3169 = vmatpush.bf16.msra.mxu0 %v2792
  %3170 = vmatpush.bf16.msra.mxu0 %v2784
  %3171 = vmatpush.bf16.msra.mxu0 %v2776
  %3172 = vmatpush.bf16.msra.mxu0 %v2768
  %3173 = vmatpush.bf16.msra.mxu0 %v2760
  %3174 = vmatmul.bf16.gmra.mxu0 %v2368
  %v3175 = vpop.f32.mrf.mxu0
  %v3176 = vadd.f32 0.0, %v3175
  %v3177 = vpop.f32.mrf.mxu0
  %3178 = vdwg.mxu0
  %3179 = vmatpush.bf16.msra.mxu0 %v2880
  %3180 = vmatpush.bf16.msra.mxu0 %v2872
  %3181 = vmatpush.bf16.msra.mxu0 %v2864
  %3182 = vmatpush.bf16.msra.mxu0 %v2856
  %3183 = vmatpush.bf16.msra.mxu0 %v2848
  %3184 = vmatpush.bf16.msra.mxu0 %v2840
  %3185 = vmatpush.bf16.msra.mxu0 %v2832
  %3186 = vmatpush.bf16.msra.mxu0 %v2824
  %3187 = vmatmul.bf16.gmra.mxu0 %v2369
  %v3188 = vpop.f32.mrf.mxu0
  %v3189 = vadd.f32 %v3176, %v3188
  %v3190 = vpop.f32.mrf.mxu0
  %3191 = vdwg.mxu0
  %3192 = vmatpush.bf16.msra.mxu0 %v2817
  %3193 = vmatpush.bf16.msra.mxu0 %v2809
  %3194 = vmatpush.bf16.msra.mxu0 %v2801
  %3195 = vmatpush.bf16.msra.mxu0 %v2793
  %3196 = vmatpush.bf16.msra.mxu0 %v2785
  %3197 = vmatpush.bf16.msra.mxu0 %v2777
  %3198 = vmatpush.bf16.msra.mxu0 %v2769
  %3199 = vmatpush.bf16.msra.mxu0 %v2761
  %3200 = vmatmul.bf16.gmra.mxu0 %v2368
  %v3201 = vpop.f32.mrf.mxu0
  %v3202 = vadd.f32 0.0, %v3201
  %v3203 = vpop.f32.mrf.mxu0
  %3204 = vdwg.mxu0
  %3205 = vmatpush.bf16.msra.mxu0 %v2881
  %3206 = vmatpush.bf16.msra.mxu0 %v2873
  %3207 = vmatpush.bf16.msra.mxu0 %v2865
  %3208 = vmatpush.bf16.msra.mxu0 %v2857
  %3209 = vmatpush.bf16.msra.mxu0 %v2849
  %3210 = vmatpush.bf16.msra.mxu0 %v2841
  %3211 = vmatpush.bf16.msra.mxu0 %v2833
  %3212 = vmatpush.bf16.msra.mxu0 %v2825
  %3213 = vmatmul.bf16.gmra.mxu0 %v2369
  %v3214 = vpop.f32.mrf.mxu0
  %v3215 = vadd.f32 %v3202, %v3214
  %v3216 = vpop.f32.mrf.mxu0
  %3217 = vdwg.mxu0
  %v3226 = vrot.slane %v3059, 7
  %v3227 = vrot.slane %v3085, 6
  %v3228 = vrot.slane %v3111, 5
  %v3229 = vrot.slane %v3137, 4
  %v3230 = vrot.slane %v3163, 3
  %v3231 = vrot.slane %v3189, 2
  %v3232 = vrot.slane %v3215, 1
  %vm3233 = vcmask 1040384
  %v3234 = vsel %vm3233, %v3033, %v3226
  %vm3235 = vcmask 1042434
  %v3236 = vsel %vm3235, %v3227, %v3228
  %v3237 = vsel %vm2004, %v3234, %v3236
  %vm3238 = vcmask 1044484
  %v3239 = vsel %vm3238, %v3229, %v3230
  %vm3240 = vcmask 1046534
  %v3241 = vsel %vm3240, %v3231, %v3232
  %vm3242 = vcmask 1045508
  %v3243 = vsel %vm3242, %v3239, %v3241
  %vm3244 = vcmask 1043456
  %v3245 = vsel %vm3244, %v3237, %v3243
  %3247 = vst [vmem:[%s16] sm:$0xff] %v3245
  %v3248 = vld [vmem:[%s10] sm:$0xf]
  %v3249 = vld [vmem:[%s10 + $0x4] sm:$0xf]
  %v3250 = vpack.c.bf16 %v1948, %v1947
  %v3251 = vld [vmem:[%s11] sm:$0xff]
  %v3252 = vld [vmem:[%s11 + $0x8] sm:$0xff]
  %3254 = vset.pattern.permute.xlu0 0
  %3255 = vperm.xlu0 %3254, %v3251
  %v3256 = vpop.permute.xlu0 %3255
  %3259 = vset.pattern.permute.xlu0 0
  %3260 = vperm.xlu0 %3259, %v3252
  %v3261 = vpop.permute.xlu0 %3260
  %v3265 = vunpack.c.l.b16 %v3248
  %v3266 = vunpack.c.l.b16 %v3249
  %v3267 = vpack.c.b16 %v3266, %v3265
  %v3269 = vrot.slane %v3250, 3
  %v3271 = vsel %vm594, %v3267, 0
  %v3274 = vsel %vm594, %v3269, 0
  %3276 = vmatpush.bf16.xpose.msra.mxu0 0
  %3277 = vmatpush.bf16.xpose.msra.mxu0 0
  %3278 = vmatpush.bf16.xpose.msra.mxu0 0
  %3279 = vmatpush.bf16.xpose.msra.mxu0 0
  %3280 = vmatpush.bf16.xpose.msra.mxu0 0
  %3281 = vmatpush.bf16.xpose.msra.mxu0 0
  %3282 = vmatpush.bf16.xpose.msra.mxu0 0
  %3283 = vmatpush.bf16.xpose.msra.mxu0 %v3274
  %3284 = vmatmul.bf16.gmra.mxu0 %v3271
  %v3285 = vpop.f32.mrf.mxu0
  %v3286 = vadd.f32 %v3256, %v3285
  %v3287 = vpop.f32.mrf.mxu0
  %v3288 = vadd.f32 %v3261, %v3287
  %3289 = vdwg.mxu0
  %v3290 = vmax.f32 %v3286, 0.0
  %v3291 = vmax.f32 %v3288, 0.0
  %v3292 = vld [vmem:[%s12] sm:$0x3]
  %v3293 = vpack.c.bf16 %v3291, %v3290
  %v3295 = vsel %vm2000, %v3293, 0
  %v3298 = vsel %vm2004, %v3292, 0
  %3300 = vmatpush.bf16.msra.mxu0 0
  %3301 = vmatpush.bf16.msra.mxu0 0
  %3302 = vmatpush.bf16.msra.mxu0 0
  %3303 = vmatpush.bf16.msra.mxu0 0
  %3304 = vmatpush.bf16.msra.mxu0 0
  %3305 = vmatpush.bf16.msra.mxu0 0
  %3306 = vmatpush.bf16.msra.mxu0 0
  %3307 = vmatpush.bf16.msra.mxu0 %v3298
  %3308 = vmatmul.bf16.gmra.mxu0 %v3295
  %v3309 = vpop.f32.mrf.mxu0
  %v3310 = vadd.f32 0.0, %v3309
  %v3311 = vpop.f32.mrf.mxu0
  %v3312 = vadd.f32 0.0, %v3311
  %3313 = vdwg.mxu0
  %v3314 = vld [vmem:[%s2022] sm:$0xf]
  %v3315 = vld [vmem:[%s2022 + $0x4] sm:$0xf]
  %v3316 = vpack.c.bf16 %v3312, %v3310
  %3317 = vset.pattern.permute.xlu0 1
  %3318 = vperm.xlu0 %3317, %v3251
  %v3319 = vpop.permute.xlu0 %3318
  %3321 = vset.pattern.permute.xlu0 1
  %3322 = vperm.xlu0 %3321, %v3252
  %v3323 = vpop.permute.xlu0 %3322
  %v3327 = vunpack.c.l.b16 %v3314
  %v3328 = vunpack.c.l.b16 %v3315
  %v3329 = vpack.c.b16 %v3328, %v3327
  %v3331 = vsel %vm993, %v3329, 0
  %3333 = vmatpush.bf16.msra.mxu0 0
  %3334 = vmatpush.bf16.msra.mxu0 0
  %3335 = vmatpush.bf16.msra.mxu0 0
  %3336 = vmatpush.bf16.msra.mxu0 0
  %3337 = vmatpush.bf16.msra.mxu0 0
  %3338 = vmatpush.bf16.msra.mxu0 0
  %3339 = vmatpush.bf16.msra.mxu0 0
  %3340 = vmatpush.bf16.msra.mxu0 %v3316
  %3341 = vmatmul.bf16.gmra.mxu0 %v3331
  %v3342 = vpop.f32.mrf.mxu0
  %v3343 = vadd.f32 %v3319, %v3342
  %v3344 = vpop.f32.mrf.mxu0
  %v3345 = vadd.f32 %v3323, %v3344
  %3346 = vdwg.mxu0
  %v3347 = vmax.f32 %v3343, 0.0
  %v3348 = vmax.f32 %v3345, 0.0
  %v3349 = vld [vmem:[%s13] sm:$0xf]
  %v3350 = vld [vmem:[%s13 + $0x4] sm:$0xf]
  %v3351 = vpack.c.bf16 %v3348, %v3347
  %v3354 = vunpack.c.l.b16 %v3349
  %v3355 = vunpack.c.l.b16 %v3350
  %v3356 = vpack.c.b16 %v3355, %v3354
  %v3359 = vsel %vm993, %v3351, 0
  %3361 = vmatpush.bf16.msra.mxu0 0
  %3362 = vmatpush.bf16.msra.mxu0 0
  %3363 = vmatpush.bf16.msra.mxu0 0
  %3364 = vmatpush.bf16.msra.mxu0 0
  %3365 = vmatpush.bf16.msra.mxu0 0
  %3366 = vmatpush.bf16.msra.mxu0 0
  %3367 = vmatpush.bf16.msra.mxu0 0
  %3368 = vmatpush.bf16.msra.mxu0 %v3356
  %3369 = vmatmul.bf16.gmra.mxu0 %v3359
  %v3370 = vpop.f32.mrf.mxu0
  %v3371 = vadd.f32 0.0, %v3370
  %v3372 = vpop.f32.mrf.mxu0
  %v3373 = vadd.f32 0.0, %v3372
  %3374 = vdwg.mxu0
  %v3375 = vld [vmem:[%s2084] sm:$0xf]
  %v3376 = vld [vmem:[%s2084 + $0x4] sm:$0xf]
  %v3377 = vpack.c.bf16 %v3373, %v3371
  %3378 = vset.pattern.permute.xlu0 2
  %3379 = vperm.xlu0 %3378, %v3251
  %v3380 = vpop.permute.xlu0 %3379
  %3382 = vset.pattern.permute.xlu0 2
  %3383 = vperm.xlu0 %3382, %v3252
  %v3384 = vpop.permute.xlu0 %3383
  %v3388 = vunpack.c.l.b16 %v3375
  %v3389 = vunpack.c.l.b16 %v3376
  %v3390 = vpack.c.b16 %v3389, %v3388
  %v3392 = vsel %vm993, %v3390, 0
  %3394 = vmatpush.bf16.msra.mxu0 0
  %3395 = vmatpush.bf16.msra.mxu0 0
  %3396 = vmatpush.bf16.msra.mxu0 0
  %3397 = vmatpush.bf16.msra.mxu0 0
  %3398 = vmatpush.bf16.msra.mxu0 0
  %3399 = vmatpush.bf16.msra.mxu0 0
  %3400 = vmatpush.bf16.msra.mxu0 0
  %3401 = vmatpush.bf16.msra.mxu0 %v3377
  %3402 = vmatmul.bf16.gmra.mxu0 %v3392
  %v3403 = vpop.f32.mrf.mxu0
  %v3404 = vadd.f32 %v3380, %v3403
  %v3405 = vpop.f32.mrf.mxu0
  %v3406 = vadd.f32 %v3384, %v3405
  %3407 = vdwg.mxu0
  %v3408 = vmax.f32 %v3404, 0.0
  %v3409 = vmax.f32 %v3406, 0.0
  %v3410 = vld [vmem:[%s14] sm:$0xff]
  %v3411 = vld [vmem:[%s14 + $0x8] sm:$0xff]
  %v3412 = vld [vmem:[%s14 + $0x10] sm:$0xff]
  %v3413 = vld [vmem:[%s14 + $0x18] sm:$0xff]
  %v3414 = vld [vmem:[%s14 + $0x20] sm:$0xff]
  %v3415 = vld [vmem:[%s14 + $0x28] sm:$0xff]
  %v3416 = vld [vmem:[%s14 + $0x30] sm:$0xff]
  %v3417 = vld [vmem:[%s14 + $0x38] sm:$0xff]
  %v3418 = vpack.c.bf16 %v3409, %v3408
  %v3427 = vunpack.c.l.b16 %v3410
  %v3428 = vunpack.c.h.b16 %v3410
  %v3429 = vunpack.c.l.b16 %v3411
  %v3430 = vunpack.c.h.b16 %v3411
  %v3431 = vunpack.c.l.b16 %v3412
  %v3432 = vunpack.c.h.b16 %v3412
  %v3433 = vunpack.c.l.b16 %v3413
  %v3434 = vunpack.c.h.b16 %v3413
  %v3435 = vunpack.c.l.b16 %v3414
  %v3436 = vunpack.c.h.b16 %v3414
  %v3437 = vunpack.c.l.b16 %v3415
  %v3438 = vunpack.c.h.b16 %v3415
  %v3439 = vunpack.c.l.b16 %v3416
  %v3440 = vunpack.c.h.b16 %v3416
  %v3441 = vunpack.c.l.b16 %v3417
  %v3442 = vunpack.c.h.b16 %v3417
  %v3443 = vpack.c.b16 %v3429, %v3427
  %v3444 = vpack.c.b16 %v3430, %v3428
  %v3445 = vpack.c.b16 %v3433, %v3431
  %v3446 = vpack.c.b16 %v3434, %v3432
  %v3447 = vpack.c.b16 %v3437, %v3435
  %v3448 = vpack.c.b16 %v3438, %v3436
  %v3449 = vpack.c.b16 %v3441, %v3439
  %v3450 = vpack.c.b16 %v3442, %v3440
  %v3460 = vsel %vm2169, %v3418, 0
  %3462 = vmatpush.bf16.msra.mxu0 0
  %3463 = vmatpush.bf16.msra.mxu0 0
  %3464 = vmatpush.bf16.msra.mxu0 0
  %3465 = vmatpush.bf16.msra.mxu0 0
  %3466 = vmatpush.bf16.msra.mxu0 %v3449
  %3467 = vmatpush.bf16.msra.mxu0 %v3447
  %3468 = vmatpush.bf16.msra.mxu0 %v3445
  %3469 = vmatpush.bf16.msra.mxu0 %v3443
  %3470 = vmatmul.bf16.gmra.mxu0 %v3460
  %v3471 = vpop.f32.mrf.mxu0
  %v3472 = vadd.f32 0.0, %v3471
  %v3473 = vpop.f32.mrf.mxu0
  %v3474 = vadd.f32 0.0, %v3473
  %3475 = vdwg.mxu0
  %3476 = vmatpush.bf16.msra.mxu0 0
  %3477 = vmatpush.bf16.msra.mxu0 0
  %3478 = vmatpush.bf16.msra.mxu0 0
  %3479 = vmatpush.bf16.msra.mxu0 0
  %3480 = vmatpush.bf16.msra.mxu0 %v3450
  %3481 = vmatpush.bf16.msra.mxu0 %v3448
  %3482 = vmatpush.bf16.msra.mxu0 %v3446
  %3483 = vmatpush.bf16.msra.mxu0 %v3444
  %3484 = vmatmul.bf16.gmra.mxu0 %v3460
  %v3485 = vpop.f32.mrf.mxu0
  %v3486 = vadd.f32 0.0, %v3485
  %v3487 = vpop.f32.mrf.mxu0
  %v3488 = vadd.f32 0.0, %v3487
  %3489 = vdwg.mxu0
  %v3490 = vld [vmem:[%s2201] sm:$0x1]
  %v3491 = vpack.c.bf16 %v3474, %v3472
  %v3492 = vpack.c.bf16 %v3488, %v3486
  %v3493 = vld [vmem:[%s11] sm:$0x1]
  %3495 = vset.pattern.permute.xlu0 3
  %3496 = vperm.xlu0 %3495, %v3493
  %v3497 = vpop.permute.xlu0 %3496
  %v3500 = vsel %vm993, %v3490, 0
  %3502 = vmatpush.bf16.msra.mxu0 0
  %3503 = vmatpush.bf16.msra.mxu0 0
  %3504 = vmatpush.bf16.msra.mxu0 0
  %3505 = vmatpush.bf16.msra.mxu0 0
  %3506 = vmatpush.bf16.msra.mxu0 0
  %3507 = vmatpush.bf16.msra.mxu0 0
  %3508 = vmatpush.bf16.msra.mxu0 0
  %3509 = vmatpush.bf16.msra.mxu0 %v3491
  %3510 = vmatmul.bf16.gmra.mxu0 %v3500
  %v3511 = vpop.f32.mrf.mxu0
  %v3512 = vadd.f32 %v3497, %v3511
  %v3513 = vpop.f32.mrf.mxu0
  %3514 = vdwg.mxu0
  %3515 = vmatpush.bf16.msra.mxu0 0
  %3516 = vmatpush.bf16.msra.mxu0 0
  %3517 = vmatpush.bf16.msra.mxu0 0
  %3518 = vmatpush.bf16.msra.mxu0 0
  %3519 = vmatpush.bf16.msra.mxu0 0
  %3520 = vmatpush.bf16.msra.mxu0 0
  %3521 = vmatpush.bf16.msra.mxu0 0
  %3522 = vmatpush.bf16.msra.mxu0 %v3492
  %3523 = vmatmul.bf16.gmra.mxu0 %v3500
  %v3524 = vpop.f32.mrf.mxu0
  %v3525 = vadd.f32 %v3497, %v3524
  %v3526 = vpop.f32.mrf.mxu0
  %3527 = vdwg.mxu0
  %v3528 = vld [vmem:[%s15] sm:$0xff]
  %v3529 = vld [vmem:[%s15 + $0x8] sm:$0xff]
  %v3530 = vld [vmem:[%s15 + $0x10] sm:$0xff]
  %v3531 = vld [vmem:[%s15 + $0x18] sm:$0xff]
  %v3532 = vld [vmem:[%s15 + $0x20] sm:$0xff]
  %v3533 = vld [vmem:[%s15 + $0x28] sm:$0xff]
  %v3534 = vld [vmem:[%s15 + $0x30] sm:$0xff]
  %v3535 = vld [vmem:[%s15 + $0x38] sm:$0xff]
  %v3536 = vld [vmem:[%s15 + $0x40] sm:$0xff]
  %v3537 = vld [vmem:[%s15 + $0x48] sm:$0xff]
  %v3538 = vld [vmem:[%s15 + $0x50] sm:$0xff]
  %v3539 = vld [vmem:[%s15 + $0x58] sm:$0xff]
  %v3540 = vld [vmem:[%s15 + $0x60] sm:$0xff]
  %v3541 = vld [vmem:[%s15 + $0x68] sm:$0xff]
  %v3542 = vld [vmem:[%s15 + $0x70] sm:$0xff]
  %v3543 = vld [vmem:[%s15 + $0x78] sm:$0xff]
  %v3544 = vld [vmem:[%s15 + $0x80] sm:$0xff]
  %v3545 = vld [vmem:[%s15 + $0x88] sm:$0xff]
  %v3546 = vld [vmem:[%s15 + $0x90] sm:$0xff]
  %v3547 = vld [vmem:[%s15 + $0x98] sm:$0xff]
  %v3548 = vld [vmem:[%s15 + $0xa0] sm:$0xff]
  %v3549 = vld [vmem:[%s15 + $0xa8] sm:$0xff]
  %v3550 = vld [vmem:[%s15 + $0xb0] sm:$0xff]
  %v3551 = vld [vmem:[%s15 + $0xb8] sm:$0xff]
  %v3552 = vld [vmem:[%s15 + $0xc0] sm:$0xff]
  %v3553 = vld [vmem:[%s15 + $0xc8] sm:$0xff]
  %v3554 = vld [vmem:[%s15 + $0xd0] sm:$0xff]
  %v3555 = vld [vmem:[%s15 + $0xd8] sm:$0xff]
  %v3556 = vld [vmem:[%s15 + $0xe0] sm:$0xff]
  %v3557 = vld [vmem:[%s15 + $0xe8] sm:$0xff]
  %v3558 = vld [vmem:[%s15 + $0xf0] sm:$0xff]
  %v3559 = vld [vmem:[%s15 + $0xf8] sm:$0xff]
  %v3560 = vld [vmem:[%s15 + $0x100] sm:$0xff]
  %v3561 = vld [vmem:[%s15 + $0x108] sm:$0xff]
  %v3562 = vld [vmem:[%s15 + $0x110] sm:$0xff]
  %v3563 = vld [vmem:[%s15 + $0x118] sm:$0xff]
  %v3564 = vld [vmem:[%s15 + $0x120] sm:$0xff]
  %v3565 = vld [vmem:[%s15 + $0x128] sm:$0xff]
  %v3566 = vld [vmem:[%s15 + $0x130] sm:$0xff]
  %v3567 = vld [vmem:[%s15 + $0x138] sm:$0xff]
  %v3568 = vld [vmem:[%s15 + $0x140] sm:$0xff]
  %v3569 = vld [vmem:[%s15 + $0x148] sm:$0xff]
  %v3570 = vld [vmem:[%s15 + $0x150] sm:$0xff]
  %v3571 = vld [vmem:[%s15 + $0x158] sm:$0xff]
  %v3572 = vld [vmem:[%s15 + $0x160] sm:$0xff]
  %v3573 = vld [vmem:[%s15 + $0x168] sm:$0xff]
  %v3574 = vld [vmem:[%s15 + $0x170] sm:$0xff]
  %v3575 = vld [vmem:[%s15 + $0x178] sm:$0xff]
  %v3576 = vld [vmem:[%s15 + $0x180] sm:$0xff]
  %v3577 = vld [vmem:[%s15 + $0x188] sm:$0xff]
  %v3578 = vld [vmem:[%s15 + $0x190] sm:$0xff]
  %v3579 = vld [vmem:[%s15 + $0x198] sm:$0xff]
  %v3580 = vld [vmem:[%s15 + $0x1a0] sm:$0xff]
  %v3581 = vld [vmem:[%s15 + $0x1a8] sm:$0xff]
  %v3582 = vld [vmem:[%s15 + $0x1b0] sm:$0xff]
  %v3583 = vld [vmem:[%s15 + $0x1b8] sm:$0xff]
  %v3584 = vld [vmem:[%s15 + $0x1c0] sm:$0xff]
  %v3585 = vld [vmem:[%s15 + $0x1c8] sm:$0xff]
  %v3586 = vld [vmem:[%s15 + $0x1d0] sm:$0xff]
  %v3587 = vld [vmem:[%s15 + $0x1d8] sm:$0xff]
  %v3588 = vld [vmem:[%s15 + $0x1e0] sm:$0xff]
  %v3589 = vld [vmem:[%s15 + $0x1e8] sm:$0xff]
  %v3590 = vld [vmem:[%s15 + $0x1f0] sm:$0xff]
  %v3591 = vld [vmem:[%s15 + $0x1f8] sm:$0xff]
  %v3592 = vld [vmem:[%s15 + $0x200] sm:$0xff]
  %v3593 = vld [vmem:[%s15 + $0x208] sm:$0xff]
  %v3594 = vld [vmem:[%s15 + $0x210] sm:$0xff]
  %v3595 = vld [vmem:[%s15 + $0x218] sm:$0xff]
  %v3596 = vld [vmem:[%s15 + $0x220] sm:$0xff]
  %v3597 = vld [vmem:[%s15 + $0x228] sm:$0xff]
  %v3598 = vld [vmem:[%s15 + $0x230] sm:$0xff]
  %v3599 = vld [vmem:[%s15 + $0x238] sm:$0xff]
  %v3600 = vld [vmem:[%s15 + $0x240] sm:$0xff]
  %v3601 = vld [vmem:[%s15 + $0x248] sm:$0xff]
  %v3602 = vld [vmem:[%s15 + $0x250] sm:$0xff]
  %v3603 = vld [vmem:[%s15 + $0x258] sm:$0xff]
  %v3604 = vld [vmem:[%s15 + $0x260] sm:$0xff]
  %v3605 = vld [vmem:[%s15 + $0x268] sm:$0xff]
  %v3606 = vld [vmem:[%s15 + $0x270] sm:$0xff]
  %v3607 = vld [vmem:[%s15 + $0x278] sm:$0xff]
  %v3608 = vld [vmem:[%s15 + $0x280] sm:$0xff]
  %v3609 = vld [vmem:[%s15 + $0x288] sm:$0xff]
  %v3610 = vld [vmem:[%s15 + $0x290] sm:$0xff]
  %v3611 = vld [vmem:[%s15 + $0x298] sm:$0xff]
  %v3612 = vld [vmem:[%s15 + $0x2a0] sm:$0xff]
  %v3613 = vld [vmem:[%s15 + $0x2a8] sm:$0xff]
  %v3614 = vld [vmem:[%s15 + $0x2b0] sm:$0xff]
  %v3615 = vld [vmem:[%s15 + $0x2b8] sm:$0xff]
  %v3616 = vld [vmem:[%s15 + $0x2c0] sm:$0xff]
  %v3617 = vld [vmem:[%s15 + $0x2c8] sm:$0xff]
  %v3618 = vld [vmem:[%s15 + $0x2d0] sm:$0xff]
  %v3619 = vld [vmem:[%s15 + $0x2d8] sm:$0xff]
  %v3620 = vld [vmem:[%s15 + $0x2e0] sm:$0xff]
  %v3621 = vld [vmem:[%s15 + $0x2e8] sm:$0xff]
  %v3622 = vld [vmem:[%s15 + $0x2f0] sm:$0xff]
  %v3623 = vld [vmem:[%s15 + $0x2f8] sm:$0xff]
  %v3624 = vld [vmem:[%s15 + $0x300] sm:$0xff]
  %v3625 = vld [vmem:[%s15 + $0x308] sm:$0xff]
  %v3626 = vld [vmem:[%s15 + $0x310] sm:$0xff]
  %v3627 = vld [vmem:[%s15 + $0x318] sm:$0xff]
  %v3628 = vld [vmem:[%s15 + $0x320] sm:$0xff]
  %v3629 = vld [vmem:[%s15 + $0x328] sm:$0xff]
  %v3630 = vld [vmem:[%s15 + $0x330] sm:$0xff]
  %v3631 = vld [vmem:[%s15 + $0x338] sm:$0xff]
  %v3632 = vld [vmem:[%s15 + $0x340] sm:$0xff]
  %v3633 = vld [vmem:[%s15 + $0x348] sm:$0xff]
  %v3634 = vld [vmem:[%s15 + $0x350] sm:$0xff]
  %v3635 = vld [vmem:[%s15 + $0x358] sm:$0xff]
  %v3636 = vld [vmem:[%s15 + $0x360] sm:$0xff]
  %v3637 = vld [vmem:[%s15 + $0x368] sm:$0xff]
  %v3638 = vld [vmem:[%s15 + $0x370] sm:$0xff]
  %v3639 = vld [vmem:[%s15 + $0x378] sm:$0xff]
  %v3640 = vld [vmem:[%s15 + $0x380] sm:$0xff]
  %v3641 = vld [vmem:[%s15 + $0x388] sm:$0xff]
  %v3642 = vld [vmem:[%s15 + $0x390] sm:$0xff]
  %v3643 = vld [vmem:[%s15 + $0x398] sm:$0xff]
  %v3644 = vld [vmem:[%s15 + $0x3a0] sm:$0xff]
  %v3645 = vld [vmem:[%s15 + $0x3a8] sm:$0xff]
  %v3646 = vld [vmem:[%s15 + $0x3b0] sm:$0xff]
  %v3647 = vld [vmem:[%s15 + $0x3b8] sm:$0xff]
  %v3648 = vld [vmem:[%s15 + $0x3c0] sm:$0xff]
  %v3649 = vld [vmem:[%s15 + $0x3c8] sm:$0xff]
  %v3650 = vld [vmem:[%s15 + $0x3d0] sm:$0xff]
  %v3651 = vld [vmem:[%s15 + $0x3d8] sm:$0xff]
  %v3652 = vld [vmem:[%s15 + $0x3e0] sm:$0xff]
  %v3653 = vld [vmem:[%s15 + $0x3e8] sm:$0xff]
  %v3654 = vld [vmem:[%s15 + $0x3f0] sm:$0xff]
  %v3655 = vld [vmem:[%s15 + $0x3f8] sm:$0xff]
  %v3656 = vpack.c.bf16 %v3512, %v3512
  %v3657 = vpack.c.bf16 %v3525, %v3525
  %v3786 = vunpack.c.l.b16 %v3528
  %v3787 = vunpack.c.h.b16 %v3528
  %v3788 = vunpack.c.l.b16 %v3529
  %v3789 = vunpack.c.h.b16 %v3529
  %v3790 = vunpack.c.l.b16 %v3530
  %v3791 = vunpack.c.h.b16 %v3530
  %v3792 = vunpack.c.l.b16 %v3531
  %v3793 = vunpack.c.h.b16 %v3531
  %v3794 = vunpack.c.l.b16 %v3532
  %v3795 = vunpack.c.h.b16 %v3532
  %v3796 = vunpack.c.l.b16 %v3533
  %v3797 = vunpack.c.h.b16 %v3533
  %v3798 = vunpack.c.l.b16 %v3534
  %v3799 = vunpack.c.h.b16 %v3534
  %v3800 = vunpack.c.l.b16 %v3535
  %v3801 = vunpack.c.h.b16 %v3535
  %v3802 = vunpack.c.l.b16 %v3536
  %v3803 = vunpack.c.h.b16 %v3536
  %v3804 = vunpack.c.l.b16 %v3537
  %v3805 = vunpack.c.h.b16 %v3537
  %v3806 = vunpack.c.l.b16 %v3538
  %v3807 = vunpack.c.h.b16 %v3538
  %v3808 = vunpack.c.l.b16 %v3539
  %v3809 = vunpack.c.h.b16 %v3539
  %v3810 = vunpack.c.l.b16 %v3540
  %v3811 = vunpack.c.h.b16 %v3540
  %v3812 = vunpack.c.l.b16 %v3541
  %v3813 = vunpack.c.h.b16 %v3541
  %v3814 = vunpack.c.l.b16 %v3542
  %v3815 = vunpack.c.h.b16 %v3542
  %v3816 = vunpack.c.l.b16 %v3543
  %v3817 = vunpack.c.h.b16 %v3543
  %v3818 = vunpack.c.l.b16 %v3544
  %v3819 = vunpack.c.h.b16 %v3544
  %v3820 = vunpack.c.l.b16 %v3545
  %v3821 = vunpack.c.h.b16 %v3545
  %v3822 = vunpack.c.l.b16 %v3546
  %v3823 = vunpack.c.h.b16 %v3546
  %v3824 = vunpack.c.l.b16 %v3547
  %v3825 = vunpack.c.h.b16 %v3547
  %v3826 = vunpack.c.l.b16 %v3548
  %v3827 = vunpack.c.h.b16 %v3548
  %v3828 = vunpack.c.l.b16 %v3549
  %v3829 = vunpack.c.h.b16 %v3549
  %v3830 = vunpack.c.l.b16 %v3550
  %v3831 = vunpack.c.h.b16 %v3550
  %v3832 = vunpack.c.l.b16 %v3551
  %v3833 = vunpack.c.h.b16 %v3551
  %v3834 = vunpack.c.l.b16 %v3552
  %v3835 = vunpack.c.h.b16 %v3552
  %v3836 = vunpack.c.l.b16 %v3553
  %v3837 = vunpack.c.h.b16 %v3553
  %v3838 = vunpack.c.l.b16 %v3554
  %v3839 = vunpack.c.h.b16 %v3554
  %v3840 = vunpack.c.l.b16 %v3555
  %v3841 = vunpack.c.h.b16 %v3555
  %v3842 = vunpack.c.l.b16 %v3556
  %v3843 = vunpack.c.h.b16 %v3556
  %v3844 = vunpack.c.l.b16 %v3557
  %v3845 = vunpack.c.h.b16 %v3557
  %v3846 = vunpack.c.l.b16 %v3558
  %v3847 = vunpack.c.h.b16 %v3558
  %v3848 = vunpack.c.l.b16 %v3559
  %v3849 = vunpack.c.h.b16 %v3559
  %v3850 = vunpack.c.l.b16 %v3560
  %v3851 = vunpack.c.h.b16 %v3560
  %v3852 = vunpack.c.l.b16 %v3561
  %v3853 = vunpack.c.h.b16 %v3561
  %v3854 = vunpack.c.l.b16 %v3562
  %v3855 = vunpack.c.h.b16 %v3562
  %v3856 = vunpack.c.l.b16 %v3563
  %v3857 = vunpack.c.h.b16 %v3563
  %v3858 = vunpack.c.l.b16 %v3564
  %v3859 = vunpack.c.h.b16 %v3564
  %v3860 = vunpack.c.l.b16 %v3565
  %v3861 = vunpack.c.h.b16 %v3565
  %v3862 = vunpack.c.l.b16 %v3566
  %v3863 = vunpack.c.h.b16 %v3566
  %v3864 = vunpack.c.l.b16 %v3567
  %v3865 = vunpack.c.h.b16 %v3567
  %v3866 = vunpack.c.l.b16 %v3568
  %v3867 = vunpack.c.h.b16 %v3568
  %v3868 = vunpack.c.l.b16 %v3569
  %v3869 = vunpack.c.h.b16 %v3569
  %v3870 = vunpack.c.l.b16 %v3570
  %v3871 = vunpack.c.h.b16 %v3570
  %v3872 = vunpack.c.l.b16 %v3571
  %v3873 = vunpack.c.h.b16 %v3571
  %v3874 = vunpack.c.l.b16 %v3572
  %v3875 = vunpack.c.h.b16 %v3572
  %v3876 = vunpack.c.l.b16 %v3573
  %v3877 = vunpack.c.h.b16 %v3573
  %v3878 = vunpack.c.l.b16 %v3574
  %v3879 = vunpack.c.h.b16 %v3574
  %v3880 = vunpack.c.l.b16 %v3575
  %v3881 = vunpack.c.h.b16 %v3575
  %v3882 = vunpack.c.l.b16 %v3576
  %v3883 = vunpack.c.h.b16 %v3576
  %v3884 = vunpack.c.l.b16 %v3577
  %v3885 = vunpack.c.h.b16 %v3577
  %v3886 = vunpack.c.l.b16 %v3578
  %v3887 = vunpack.c.h.b16 %v3578
  %v3888 = vunpack.c.l.b16 %v3579
  %v3889 = vunpack.c.h.b16 %v3579
  %v3890 = vunpack.c.l.b16 %v3580
  %v3891 = vunpack.c.h.b16 %v3580
  %v3892 = vunpack.c.l.b16 %v3581
  %v3893 = vunpack.c.h.b16 %v3581
  %v3894 = vunpack.c.l.b16 %v3582
  %v3895 = vunpack.c.h.b16 %v3582
  %v3896 = vunpack.c.l.b16 %v3583
  %v3897 = vunpack.c.h.b16 %v3583
  %v3898 = vunpack.c.l.b16 %v3584
  %v3899 = vunpack.c.h.b16 %v3584
  %v3900 = vunpack.c.l.b16 %v3585
  %v3901 = vunpack.c.h.b16 %v3585
  %v3902 = vunpack.c.l.b16 %v3586
  %v3903 = vunpack.c.h.b16 %v3586
  %v3904 = vunpack.c.l.b16 %v3587
  %v3905 = vunpack.c.h.b16 %v3587
  %v3906 = vunpack.c.l.b16 %v3588
  %v3907 = vunpack.c.h.b16 %v3588
  %v3908 = vunpack.c.l.b16 %v3589
  %v3909 = vunpack.c.h.b16 %v3589
  %v3910 = vunpack.c.l.b16 %v3590
  %v3911 = vunpack.c.h.b16 %v3590
  %v3912 = vunpack.c.l.b16 %v3591
  %v3913 = vunpack.c.h.b16 %v3591
  %v3914 = vunpack.c.l.b16 %v3592
  %v3915 = vunpack.c.h.b16 %v3592
  %v3916 = vunpack.c.l.b16 %v3593
  %v3917 = vunpack.c.h.b16 %v3593
  %v3918 = vunpack.c.l.b16 %v3594
  %v3919 = vunpack.c.h.b16 %v3594
  %v3920 = vunpack.c.l.b16 %v3595
  %v3921 = vunpack.c.h.b16 %v3595
  %v3922 = vunpack.c.l.b16 %v3596
  %v3923 = vunpack.c.h.b16 %v3596
  %v3924 = vunpack.c.l.b16 %v3597
  %v3925 = vunpack.c.h.b16 %v3597
  %v3926 = vunpack.c.l.b16 %v3598
  %v3927 = vunpack.c.h.b16 %v3598
  %v3928 = vunpack.c.l.b16 %v3599
  %v3929 = vunpack.c.h.b16 %v3599
  %v3930 = vunpack.c.l.b16 %v3600
  %v3931 = vunpack.c.h.b16 %v3600
  %v3932 = vunpack.c.l.b16 %v3601
  %v3933 = vunpack.c.h.b16 %v3601
  %v3934 = vunpack.c.l.b16 %v3602
  %v3935 = vunpack.c.h.b16 %v3602
  %v3936 = vunpack.c.l.b16 %v3603
  %v3937 = vunpack.c.h.b16 %v3603
  %v3938 = vunpack.c.l.b16 %v3604
  %v3939 = vunpack.c.h.b16 %v3604
  %v3940 = vunpack.c.l.b16 %v3605
  %v3941 = vunpack.c.h.b16 %v3605
  %v3942 = vunpack.c.l.b16 %v3606
  %v3943 = vunpack.c.h.b16 %v3606
  %v3944 = vunpack.c.l.b16 %v3607
  %v3945 = vunpack.c.h.b16 %v3607
  %v3946 = vunpack.c.l.b16 %v3608
  %v3947 = vunpack.c.h.b16 %v3608
  %v3948 = vunpack.c.l.b16 %v3609
  %v3949 = vunpack.c.h.b16 %v3609
  %v3950 = vunpack.c.l.b16 %v3610
  %v3951 = vunpack.c.h.b16 %v3610
  %v3952 = vunpack.c.l.b16 %v3611
  %v3953 = vunpack.c.h.b16 %v3611
  %v3954 = vunpack.c.l.b16 %v3612
  %v3955 = vunpack.c.h.b16 %v3612
  %v3956 = vunpack.c.l.b16 %v3613
  %v3957 = vunpack.c.h.b16 %v3613
  %v3958 = vunpack.c.l.b16 %v3614
  %v3959 = vunpack.c.h.b16 %v3614
  %v3960 = vunpack.c.l.b16 %v3615
  %v3961 = vunpack.c.h.b16 %v3615
  %v3962 = vunpack.c.l.b16 %v3616
  %v3963 = vunpack.c.h.b16 %v3616
  %v3964 = vunpack.c.l.b16 %v3617
  %v3965 = vunpack.c.h.b16 %v3617
  %v3966 = vunpack.c.l.b16 %v3618
  %v3967 = vunpack.c.h.b16 %v3618
  %v3968 = vunpack.c.l.b16 %v3619
  %v3969 = vunpack.c.h.b16 %v3619
  %v3970 = vunpack.c.l.b16 %v3620
  %v3971 = vunpack.c.h.b16 %v3620
  %v3972 = vunpack.c.l.b16 %v3621
  %v3973 = vunpack.c.h.b16 %v3621
  %v3974 = vunpack.c.l.b16 %v3622
  %v3975 = vunpack.c.h.b16 %v3622
  %v3976 = vunpack.c.l.b16 %v3623
  %v3977 = vunpack.c.h.b16 %v3623
  %v3978 = vunpack.c.l.b16 %v3624
  %v3979 = vunpack.c.h.b16 %v3624
  %v3980 = vunpack.c.l.b16 %v3625
  %v3981 = vunpack.c.h.b16 %v3625
  %v3982 = vunpack.c.l.b16 %v3626
  %v3983 = vunpack.c.h.b16 %v3626
  %v3984 = vunpack.c.l.b16 %v3627
  %v3985 = vunpack.c.h.b16 %v3627
  %v3986 = vunpack.c.l.b16 %v3628
  %v3987 = vunpack.c.h.b16 %v3628
  %v3988 = vunpack.c.l.b16 %v3629
  %v3989 = vunpack.c.h.b16 %v3629
  %v3990 = vunpack.c.l.b16 %v3630
  %v3991 = vunpack.c.h.b16 %v3630
  %v3992 = vunpack.c.l.b16 %v3631
  %v3993 = vunpack.c.h.b16 %v3631
  %v3994 = vunpack.c.l.b16 %v3632
  %v3995 = vunpack.c.h.b16 %v3632
  %v3996 = vunpack.c.l.b16 %v3633
  %v3997 = vunpack.c.h.b16 %v3633
  %v3998 = vunpack.c.l.b16 %v3634
  %v3999 = vunpack.c.h.b16 %v3634
  %v4000 = vunpack.c.l.b16 %v3635
  %v4001 = vunpack.c.h.b16 %v3635
  %v4002 = vunpack.c.l.b16 %v3636
  %v4003 = vunpack.c.h.b16 %v3636
  %v4004 = vunpack.c.l.b16 %v3637
  %v4005 = vunpack.c.h.b16 %v3637
  %v4006 = vunpack.c.l.b16 %v3638
  %v4007 = vunpack.c.h.b16 %v3638
  %v4008 = vunpack.c.l.b16 %v3639
  %v4009 = vunpack.c.h.b16 %v3639
  %v4010 = vunpack.c.l.b16 %v3640
  %v4011 = vunpack.c.h.b16 %v3640
  %v4012 = vunpack.c.l.b16 %v3641
  %v4013 = vunpack.c.h.b16 %v3641
  %v4014 = vunpack.c.l.b16 %v3642
  %v4015 = vunpack.c.h.b16 %v3642
  %v4016 = vunpack.c.l.b16 %v3643
  %v4017 = vunpack.c.h.b16 %v3643
  %v4018 = vunpack.c.l.b16 %v3644
  %v4019 = vunpack.c.h.b16 %v3644
  %v4020 = vunpack.c.l.b16 %v3645
  %v4021 = vunpack.c.h.b16 %v3645
  %v4022 = vunpack.c.l.b16 %v3646
  %v4023 = vunpack.c.h.b16 %v3646
  %v4024 = vunpack.c.l.b16 %v3647
  %v4025 = vunpack.c.h.b16 %v3647
  %v4026 = vunpack.c.l.b16 %v3648
  %v4027 = vunpack.c.h.b16 %v3648
  %v4028 = vunpack.c.l.b16 %v3649
  %v4029 = vunpack.c.h.b16 %v3649
  %v4030 = vunpack.c.l.b16 %v3650
  %v4031 = vunpack.c.h.b16 %v3650
  %v4032 = vunpack.c.l.b16 %v3651
  %v4033 = vunpack.c.h.b16 %v3651
  %v4034 = vunpack.c.l.b16 %v3652
  %v4035 = vunpack.c.h.b16 %v3652
  %v4036 = vunpack.c.l.b16 %v3653
  %v4037 = vunpack.c.h.b16 %v3653
  %v4038 = vunpack.c.l.b16 %v3654
  %v4039 = vunpack.c.h.b16 %v3654
  %v4040 = vunpack.c.l.b16 %v3655
  %v4041 = vunpack.c.h.b16 %v3655
  %v4042 = vpack.c.b16 %v3794, %v3786
  %v4043 = vpack.c.b16 %v3795, %v3787
  %v4044 = vpack.c.b16 %v3796, %v3788
  %v4045 = vpack.c.b16 %v3797, %v3789
  %v4046 = vpack.c.b16 %v3798, %v3790
  %v4047 = vpack.c.b16 %v3799, %v3791
  %v4048 = vpack.c.b16 %v3800, %v3792
  %v4049 = vpack.c.b16 %v3801, %v3793
  %v4050 = vpack.c.b16 %v3810, %v3802
  %v4051 = vpack.c.b16 %v3811, %v3803
  %v4052 = vpack.c.b16 %v3812, %v3804
  %v4053 = vpack.c.b16 %v3813, %v3805
  %v4054 = vpack.c.b16 %v3814, %v3806
  %v4055 = vpack.c.b16 %v3815, %v3807
  %v4056 = vpack.c.b16 %v3816, %v3808
  %v4057 = vpack.c.b16 %v3817, %v3809
  %v4058 = vpack.c.b16 %v3826, %v3818
  %v4059 = vpack.c.b16 %v3827, %v3819
  %v4060 = vpack.c.b16 %v3828, %v3820
  %v4061 = vpack.c.b16 %v3829, %v3821
  %v4062 = vpack.c.b16 %v3830, %v3822
  %v4063 = vpack.c.b16 %v3831, %v3823
  %v4064 = vpack.c.b16 %v3832, %v3824
  %v4065 = vpack.c.b16 %v3833, %v3825
  %v4066 = vpack.c.b16 %v3842, %v3834
  %v4067 = vpack.c.b16 %v3843, %v3835
  %v4068 = vpack.c.b16 %v3844, %v3836
  %v4069 = vpack.c.b16 %v3845, %v3837
  %v4070 = vpack.c.b16 %v3846, %v3838
  %v4071 = vpack.c.b16 %v3847, %v3839
  %v4072 = vpack.c.b16 %v3848, %v3840
  %v4073 = vpack.c.b16 %v3849, %v3841
  %v4074 = vpack.c.b16 %v3858, %v3850
  %v4075 = vpack.c.b16 %v3859, %v3851
  %v4076 = vpack.c.b16 %v3860, %v3852
  %v4077 = vpack.c.b16 %v3861, %v3853
  %v4078 = vpack.c.b16 %v3862, %v3854
  %v4079 = vpack.c.b16 %v3863, %v3855
  %v4080 = vpack.c.b16 %v3864, %v3856
  %v4081 = vpack.c.b16 %v3865, %v3857
  %v4082 = vpack.c.b16 %v3874, %v3866
  %v4083 = vpack.c.b16 %v3875, %v3867
  %v4084 = vpack.c.b16 %v3876, %v3868
  %v4085 = vpack.c.b16 %v3877, %v3869
  %v4086 = vpack.c.b16 %v3878, %v3870
  %v4087 = vpack.c.b16 %v3879, %v3871
  %v4088 = vpack.c.b16 %v3880, %v3872
  %v4089 = vpack.c.b16 %v3881, %v3873
  %v4090 = vpack.c.b16 %v3890, %v3882
  %v4091 = vpack.c.b16 %v3891, %v3883
  %v4092 = vpack.c.b16 %v3892, %v3884
  %v4093 = vpack.c.b16 %v3893, %v3885
  %v4094 = vpack.c.b16 %v3894, %v3886
  %v4095 = vpack.c.b16 %v3895, %v3887
  %v4096 = vpack.c.b16 %v3896, %v3888
  %v4097 = vpack.c.b16 %v3897, %v3889
  %v4098 = vpack.c.b16 %v3906, %v3898
  %v4099 = vpack.c.b16 %v3907, %v3899
  %v4100 = vpack.c.b16 %v3908, %v3900
  %v4101 = vpack.c.b16 %v3909, %v3901
  %v4102 = vpack.c.b16 %v3910, %v3902
  %v4103 = vpack.c.b16 %v3911, %v3903
  %v4104 = vpack.c.b16 %v3912, %v3904
  %v4105 = vpack.c.b16 %v3913, %v3905
  %v4106 = vpack.c.b16 %v3922, %v3914
  %v4107 = vpack.c.b16 %v3923, %v3915
  %v4108 = vpack.c.b16 %v3924, %v3916
  %v4109 = vpack.c.b16 %v3925, %v3917
  %v4110 = vpack.c.b16 %v3926, %v3918
  %v4111 = vpack.c.b16 %v3927, %v3919
  %v4112 = vpack.c.b16 %v3928, %v3920
  %v4113 = vpack.c.b16 %v3929, %v3921
  %v4114 = vpack.c.b16 %v3938, %v3930
  %v4115 = vpack.c.b16 %v3939, %v3931
  %v4116 = vpack.c.b16 %v3940, %v3932
  %v4117 = vpack.c.b16 %v3941, %v3933
  %v4118 = vpack.c.b16 %v3942, %v3934
  %v4119 = vpack.c.b16 %v3943, %v3935
  %v4120 = vpack.c.b16 %v3944, %v3936
  %v4121 = vpack.c.b16 %v3945, %v3937
  %v4122 = vpack.c.b16 %v3954, %v3946
  %v4123 = vpack.c.b16 %v3955, %v3947
  %v4124 = vpack.c.b16 %v3956, %v3948
  %v4125 = vpack.c.b16 %v3957, %v3949
  %v4126 = vpack.c.b16 %v3958, %v3950
  %v4127 = vpack.c.b16 %v3959, %v3951
  %v4128 = vpack.c.b16 %v3960, %v3952
  %v4129 = vpack.c.b16 %v3961, %v3953
  %v4130 = vpack.c.b16 %v3970, %v3962
  %v4131 = vpack.c.b16 %v3971, %v3963
  %v4132 = vpack.c.b16 %v3972, %v3964
  %v4133 = vpack.c.b16 %v3973, %v3965
  %v4134 = vpack.c.b16 %v3974, %v3966
  %v4135 = vpack.c.b16 %v3975, %v3967
  %v4136 = vpack.c.b16 %v3976, %v3968
  %v4137 = vpack.c.b16 %v3977, %v3969
  %v4138 = vpack.c.b16 %v3986, %v3978
  %v4139 = vpack.c.b16 %v3987, %v3979
  %v4140 = vpack.c.b16 %v3988, %v3980
  %v4141 = vpack.c.b16 %v3989, %v3981
  %v4142 = vpack.c.b16 %v3990, %v3982
  %v4143 = vpack.c.b16 %v3991, %v3983
  %v4144 = vpack.c.b16 %v3992, %v3984
  %v4145 = vpack.c.b16 %v3993, %v3985
  %v4146 = vpack.c.b16 %v4002, %v3994
  %v4147 = vpack.c.b16 %v4003, %v3995
  %v4148 = vpack.c.b16 %v4004, %v3996
  %v4149 = vpack.c.b16 %v4005, %v3997
  %v4150 = vpack.c.b16 %v4006, %v3998
  %v4151 = vpack.c.b16 %v4007, %v3999
  %v4152 = vpack.c.b16 %v4008, %v4000
  %v4153 = vpack.c.b16 %v4009, %v4001
  %v4154 = vpack.c.b16 %v4018, %v4010
  %v4155 = vpack.c.b16 %v4019, %v4011
  %v4156 = vpack.c.b16 %v4020, %v4012
  %v4157 = vpack.c.b16 %v4021, %v4013
  %v4158 = vpack.c.b16 %v4022, %v4014
  %v4159 = vpack.c.b16 %v4023, %v4015
  %v4160 = vpack.c.b16 %v4024, %v4016
  %v4161 = vpack.c.b16 %v4025, %v4017
  %v4162 = vpack.c.b16 %v4034, %v4026
  %v4163 = vpack.c.b16 %v4035, %v4027
  %v4164 = vpack.c.b16 %v4036, %v4028
  %v4165 = vpack.c.b16 %v4037, %v4029
  %v4166 = vpack.c.b16 %v4038, %v4030
  %v4167 = vpack.c.b16 %v4039, %v4031
  %v4168 = vpack.c.b16 %v4040, %v4032
  %v4169 = vpack.c.b16 %v4041, %v4033
  %4298 = vmatpush.bf16.msra.mxu0 %v4098
  %4299 = vmatpush.bf16.msra.mxu0 %v4090
  %4300 = vmatpush.bf16.msra.mxu0 %v4082
  %4301 = vmatpush.bf16.msra.mxu0 %v4074
  %4302 = vmatpush.bf16.msra.mxu0 %v4066
  %4303 = vmatpush.bf16.msra.mxu0 %v4058
  %4304 = vmatpush.bf16.msra.mxu0 %v4050
  %4305 = vmatpush.bf16.msra.mxu0 %v4042
  %4306 = vmatmul.bf16.gmra.mxu0 %v3656
  %v4307 = vpop.f32.mrf.mxu0
  %v4308 = vadd.f32 0.0, %v4307
  %v4309 = vpop.f32.mrf.mxu0
  %4310 = vdwg.mxu0
  %4311 = vmatpush.bf16.msra.mxu0 %v4162
  %4312 = vmatpush.bf16.msra.mxu0 %v4154
  %4313 = vmatpush.bf16.msra.mxu0 %v4146
  %4314 = vmatpush.bf16.msra.mxu0 %v4138
  %4315 = vmatpush.bf16.msra.mxu0 %v4130
  %4316 = vmatpush.bf16.msra.mxu0 %v4122
  %4317 = vmatpush.bf16.msra.mxu0 %v4114
  %4318 = vmatpush.bf16.msra.mxu0 %v4106
  %4319 = vmatmul.bf16.gmra.mxu0 %v3657
  %v4320 = vpop.f32.mrf.mxu0
  %v4321 = vadd.f32 %v4308, %v4320
  %v4322 = vpop.f32.mrf.mxu0
  %4323 = vdwg.mxu0
  %4324 = vmatpush.bf16.msra.mxu0 %v4099
  %4325 = vmatpush.bf16.msra.mxu0 %v4091
  %4326 = vmatpush.bf16.msra.mxu0 %v4083
  %4327 = vmatpush.bf16.msra.mxu0 %v4075
  %4328 = vmatpush.bf16.msra.mxu0 %v4067
  %4329 = vmatpush.bf16.msra.mxu0 %v4059
  %4330 = vmatpush.bf16.msra.mxu0 %v4051
  %4331 = vmatpush.bf16.msra.mxu0 %v4043
  %4332 = vmatmul.bf16.gmra.mxu0 %v3656
  %v4333 = vpop.f32.mrf.mxu0
  %v4334 = vadd.f32 0.0, %v4333
  %v4335 = vpop.f32.mrf.mxu0
  %4336 = vdwg.mxu0
  %4337 = vmatpush.bf16.msra.mxu0 %v4163
  %4338 = vmatpush.bf16.msra.mxu0 %v4155
  %4339 = vmatpush.bf16.msra.mxu0 %v4147
  %4340 = vmatpush.bf16.msra.mxu0 %v4139
  %4341 = vmatpush.bf16.msra.mxu0 %v4131
  %4342 = vmatpush.bf16.msra.mxu0 %v4123
  %4343 = vmatpush.bf16.msra.mxu0 %v4115
  %4344 = vmatpush.bf16.msra.mxu0 %v4107
  %4345 = vmatmul.bf16.gmra.mxu0 %v3657
  %v4346 = vpop.f32.mrf.mxu0
  %v4347 = vadd.f32 %v4334, %v4346
  %v4348 = vpop.f32.mrf.mxu0
  %4349 = vdwg.mxu0
  %4350 = vmatpush.bf16.msra.mxu0 %v4100
  %4351 = vmatpush.bf16.msra.mxu0 %v4092
  %4352 = vmatpush.bf16.msra.mxu0 %v4084
  %4353 = vmatpush.bf16.msra.mxu0 %v4076
  %4354 = vmatpush.bf16.msra.mxu0 %v4068
  %4355 = vmatpush.bf16.msra.mxu0 %v4060
  %4356 = vmatpush.bf16.msra.mxu0 %v4052
  %4357 = vmatpush.bf16.msra.mxu0 %v4044
  %4358 = vmatmul.bf16.gmra.mxu0 %v3656
  %v4359 = vpop.f32.mrf.mxu0
  %v4360 = vadd.f32 0.0, %v4359
  %v4361 = vpop.f32.mrf.mxu0
  %4362 = vdwg.mxu0
  %4363 = vmatpush.bf16.msra.mxu0 %v4164
  %4364 = vmatpush.bf16.msra.mxu0 %v4156
  %4365 = vmatpush.bf16.msra.mxu0 %v4148
  %4366 = vmatpush.bf16.msra.mxu0 %v4140
  %4367 = vmatpush.bf16.msra.mxu0 %v4132
  %4368 = vmatpush.bf16.msra.mxu0 %v4124
  %4369 = vmatpush.bf16.msra.mxu0 %v4116
  %4370 = vmatpush.bf16.msra.mxu0 %v4108
  %4371 = vmatmul.bf16.gmra.mxu0 %v3657
  %v4372 = vpop.f32.mrf.mxu0
  %v4373 = vadd.f32 %v4360, %v4372
  %v4374 = vpop.f32.mrf.mxu0
  %4375 = vdwg.mxu0
  %4376 = vmatpush.bf16.msra.mxu0 %v4101
  %4377 = vmatpush.bf16.msra.mxu0 %v4093
  %4378 = vmatpush.bf16.msra.mxu0 %v4085
  %4379 = vmatpush.bf16.msra.mxu0 %v4077
  %4380 = vmatpush.bf16.msra.mxu0 %v4069
  %4381 = vmatpush.bf16.msra.mxu0 %v4061
  %4382 = vmatpush.bf16.msra.mxu0 %v4053
  %4383 = vmatpush.bf16.msra.mxu0 %v4045
  %4384 = vmatmul.bf16.gmra.mxu0 %v3656
  %v4385 = vpop.f32.mrf.mxu0
  %v4386 = vadd.f32 0.0, %v4385
  %v4387 = vpop.f32.mrf.mxu0
  %4388 = vdwg.mxu0
  %4389 = vmatpush.bf16.msra.mxu0 %v4165
  %4390 = vmatpush.bf16.msra.mxu0 %v4157
  %4391 = vmatpush.bf16.msra.mxu0 %v4149
  %4392 = vmatpush.bf16.msra.mxu0 %v4141
  %4393 = vmatpush.bf16.msra.mxu0 %v4133
  %4394 = vmatpush.bf16.msra.mxu0 %v4125
  %4395 = vmatpush.bf16.msra.mxu0 %v4117
  %4396 = vmatpush.bf16.msra.mxu0 %v4109
  %4397 = vmatmul.bf16.gmra.mxu0 %v3657
  %v4398 = vpop.f32.mrf.mxu0
  %v4399 = vadd.f32 %v4386, %v4398
  %v4400 = vpop.f32.mrf.mxu0
  %4401 = vdwg.mxu0
  %4402 = vmatpush.bf16.msra.mxu0 %v4102
  %4403 = vmatpush.bf16.msra.mxu0 %v4094
  %4404 = vmatpush.bf16.msra.mxu0 %v4086
  %4405 = vmatpush.bf16.msra.mxu0 %v4078
  %4406 = vmatpush.bf16.msra.mxu0 %v4070
  %4407 = vmatpush.bf16.msra.mxu0 %v4062
  %4408 = vmatpush.bf16.msra.mxu0 %v4054
  %4409 = vmatpush.bf16.msra.mxu0 %v4046
  %4410 = vmatmul.bf16.gmra.mxu0 %v3656
  %v4411 = vpop.f32.mrf.mxu0
  %v4412 = vadd.f32 0.0, %v4411
  %v4413 = vpop.f32.mrf.mxu0
  %4414 = vdwg.mxu0
  %4415 = vmatpush.bf16.msra.mxu0 %v4166
  %4416 = vmatpush.bf16.msra.mxu0 %v4158
  %4417 = vmatpush.bf16.msra.mxu0 %v4150
  %4418 = vmatpush.bf16.msra.mxu0 %v4142
  %4419 = vmatpush.bf16.msra.mxu0 %v4134
  %4420 = vmatpush.bf16.msra.mxu0 %v4126
  %4421 = vmatpush.bf16.msra.mxu0 %v4118
  %4422 = vmatpush.bf16.msra.mxu0 %v4110
  %4423 = vmatmul.bf16.gmra.mxu0 %v3657
  %v4424 = vpop.f32.mrf.mxu0
  %v4425 = vadd.f32 %v4412, %v4424
  %v4426 = vpop.f32.mrf.mxu0
  %4427 = vdwg.mxu0
  %4428 = vmatpush.bf16.msra.mxu0 %v4103
  %4429 = vmatpush.bf16.msra.mxu0 %v4095
  %4430 = vmatpush.bf16.msra.mxu0 %v4087
  %4431 = vmatpush.bf16.msra.mxu0 %v4079
  %4432 = vmatpush.bf16.msra.mxu0 %v4071
  %4433 = vmatpush.bf16.msra.mxu0 %v4063
  %4434 = vmatpush.bf16.msra.mxu0 %v4055
  %4435 = vmatpush.bf16.msra.mxu0 %v4047
  %4436 = vmatmul.bf16.gmra.mxu0 %v3656
  %v4437 = vpop.f32.mrf.mxu0
  %v4438 = vadd.f32 0.0, %v4437
  %v4439 = vpop.f32.mrf.mxu0
  %4440 = vdwg.mxu0
  %4441 = vmatpush.bf16.msra.mxu0 %v4167
  %4442 = vmatpush.bf16.msra.mxu0 %v4159
  %4443 = vmatpush.bf16.msra.mxu0 %v4151
  %4444 = vmatpush.bf16.msra.mxu0 %v4143
  %4445 = vmatpush.bf16.msra.mxu0 %v4135
  %4446 = vmatpush.bf16.msra.mxu0 %v4127
  %4447 = vmatpush.bf16.msra.mxu0 %v4119
  %4448 = vmatpush.bf16.msra.mxu0 %v4111
  %4449 = vmatmul.bf16.gmra.mxu0 %v3657
  %v4450 = vpop.f32.mrf.mxu0
  %v4451 = vadd.f32 %v4438, %v4450
  %v4452 = vpop.f32.mrf.mxu0
  %4453 = vdwg.mxu0
  %4454 = vmatpush.bf16.msra.mxu0 %v4104
  %4455 = vmatpush.bf16.msra.mxu0 %v4096
  %4456 = vmatpush.bf16.msra.mxu0 %v4088
  %4457 = vmatpush.bf16.msra.mxu0 %v4080
  %4458 = vmatpush.bf16.msra.mxu0 %v4072
  %4459 = vmatpush.bf16.msra.mxu0 %v4064
  %4460 = vmatpush.bf16.msra.mxu0 %v4056
  %4461 = vmatpush.bf16.msra.mxu0 %v4048
  %4462 = vmatmul.bf16.gmra.mxu0 %v3656
  %v4463 = vpop.f32.mrf.mxu0
  %v4464 = vadd.f32 0.0, %v4463
  %v4465 = vpop.f32.mrf.mxu0
  %4466 = vdwg.mxu0
  %4467 = vmatpush.bf16.msra.mxu0 %v4168
  %4468 = vmatpush.bf16.msra.mxu0 %v4160
  %4469 = vmatpush.bf16.msra.mxu0 %v4152
  %4470 = vmatpush.bf16.msra.mxu0 %v4144
  %4471 = vmatpush.bf16.msra.mxu0 %v4136
  %4472 = vmatpush.bf16.msra.mxu0 %v4128
  %4473 = vmatpush.bf16.msra.mxu0 %v4120
  %4474 = vmatpush.bf16.msra.mxu0 %v4112
  %4475 = vmatmul.bf16.gmra.mxu0 %v3657
  %v4476 = vpop.f32.mrf.mxu0
  %v4477 = vadd.f32 %v4464, %v4476
  %v4478 = vpop.f32.mrf.mxu0
  %4479 = vdwg.mxu0
  %4480 = vmatpush.bf16.msra.mxu0 %v4105
  %4481 = vmatpush.bf16.msra.mxu0 %v4097
  %4482 = vmatpush.bf16.msra.mxu0 %v4089
  %4483 = vmatpush.bf16.msra.mxu0 %v4081
  %4484 = vmatpush.bf16.msra.mxu0 %v4073
  %4485 = vmatpush.bf16.msra.mxu0 %v4065
  %4486 = vmatpush.bf16.msra.mxu0 %v4057
  %4487 = vmatpush.bf16.msra.mxu0 %v4049
  %4488 = vmatmul.bf16.gmra.mxu0 %v3656
  %v4489 = vpop.f32.mrf.mxu0
  %v4490 = vadd.f32 0.0, %v4489
  %v4491 = vpop.f32.mrf.mxu0
  %4492 = vdwg.mxu0
  %4493 = vmatpush.bf16.msra.mxu0 %v4169
  %4494 = vmatpush.bf16.msra.mxu0 %v4161
  %4495 = vmatpush.bf16.msra.mxu0 %v4153
  %4496 = vmatpush.bf16.msra.mxu0 %v4145
  %4497 = vmatpush.bf16.msra.mxu0 %v4137
  %4498 = vmatpush.bf16.msra.mxu0 %v4129
  %4499 = vmatpush.bf16.msra.mxu0 %v4121
  %4500 = vmatpush.bf16.msra.mxu0 %v4113
  %4501 = vmatmul.bf16.gmra.mxu0 %v3657
  %v4502 = vpop.f32.mrf.mxu0
  %v4503 = vadd.f32 %v4490, %v4502
  %v4504 = vpop.f32.mrf.mxu0
  %4505 = vdwg.mxu0
  %v4514 = vrot.slane %v4347, 7
  %v4515 = vrot.slane %v4373, 6
  %v4516 = vrot.slane %v4399, 5
  %v4517 = vrot.slane %v4425, 4
  %v4518 = vrot.slane %v4451, 3
  %v4519 = vrot.slane %v4477, 2
  %v4520 = vrot.slane %v4503, 1
  %v4521 = vsel %vm3233, %v4321, %v4514
  %v4522 = vsel %vm3235, %v4515, %v4516
  %v4523 = vsel %vm2004, %v4521, %v4522
  %v4524 = vsel %vm3238, %v4517, %v4518
  %v4525 = vsel %vm3240, %v4519, %v4520
  %v4526 = vsel %vm3242, %v4524, %v4525
  %v4527 = vsel %vm3244, %v4523, %v4526
  %s4529 = scalar_lea.vmem %s16, 8
  %4530 = vst [vmem:[%s4529] sm:$0xff] %v4527
  // Predicated region
  $region66: #{setr_forward.1} parent=0 // pred_check
    _
  $region67: #{setr_forward.1} parent=0 // pred_check_branch
    %4532 = sbr.rel (0) target = $region69
  $region68: #{setr_forward.1} parent=0 // pred_region
    _
  $region69: #{setr_forward.1} parent=0 // pred_fallthru
    _
  // Predicated region
  $region70: #{setr_forward.1} parent=0 // pred_check
    _
  $region71: #{setr_forward.1} parent=0 // pred_check_branch
    %4534 = sbr.rel (0) target = $region73
  $region72: #{setr_forward.1} parent=0 // pred_region
    _
  $region73: #{setr_forward.1} parent=0 // pred_fallthru
    _

</llo_original>
